<compile_context>
chip_gen: v5e
topology: v5e:2x2
jax: 0.10.0
libtpu: 0.0.40
codegen_flags: <defaults>
</compile_context>

<pallas_src>
import numpy as np
import jax
import jax.numpy as jnp
from jax import lax
from jax.experimental import pallas as pl
from jax.experimental.pallas import tpu as pltpu

# ---------------- Module hyperparameters ("args") ----------------------------
TAU = 0.25
CNSTS = (1.0, 2.0)
EPSILON = CNSTS[0] / TAU           # args.cnsts[0] / args.tau
ITER_NUM = 2                       # > 0  ->  iterative sigAct1 path
ALPHA = 0.8
TAU_EXPLICIT = True
BN_EPS = 1e-5                      # PyTorch BatchNorm2d default
KERNEL_SIZE = 3                    # min(kernel_size, kernel_size_bound)
PAD = KERNEL_SIZE // 2
TIMES = 2
IN_CHANNELS = 4
OUT_CHANNELS = 4
CPAD = 8                           # conv-input channels padded to a full sublane tile

# Trace-time folded constants (exact powers of two here).
_SIG_SCALE = 1.0 / (TAU * EPSILON)     # (u - x)/tau/eps == (u - x) * _SIG_SCALE
_CONV_SCALE = OUT_CHANNELS * TAU       # out_channels * tau


# ---------------- Fused kernel ------------------------------------------------
def _make_fused_kernel(N, H, W, cin_x, cout, num_blocks):
    K = KERNEL_SIZE
    L = H * W
    NL = N * L
    inv_nl = 1.0 / NL

    taps = [(dy * K + dx, (dy - PAD) * W + (dx - PAD))
            for dy in range(K) for dx in range(K)]

    def _build_patch(inp_pad, masks_all, patch_ref):
        # inp_pad: (CPAD, NL); patch_ref: (K*K*CPAD, NL)
        for t, s in taps:
            if s == 0:                                  # center tap: mask == 1
                slab = inp_pad
            else:
                slab = pltpu.roll(inp_pad, (-s) % NL, axis=1)   # out[q]=inp[(q+s)%NL]
                slab = slab * masks_all[t:t + 1, :]             # zero padding
            patch_ref[t * CPAD:(t + 1) * CPAD, :] = slab

    def _block(inp_pad, res, w2d, gamma, beta, masks_all, patch_ref):
        """conv3x3(SAME) -> tau-scale + residual -> BN (batch stats) -> sigAct1."""
        _build_patch(inp_pad, masks_all, patch_ref)
        conv = jnp.dot(w2d, patch_ref[...],
                       preferred_element_type=jnp.float32,
                       precision=jax.lax.Precision.HIGHEST)     # (cout, NL), MXU
        out = conv if _CONV_SCALE == 1.0 else conv * _CONV_SCALE
        if TAU_EXPLICIT:
            out = out + res                                      # (1, NL) broadcast

        # BatchNorm2d training batch stats, centered two-pass variance.
        mean = jnp.sum(out, axis=1, keepdims=True) * inv_nl      # (cout, 1)
        cen = out - mean
        var = jnp.sum(cen * cen, axis=1, keepdims=True) * inv_nl
        out = cen * lax.rsqrt(var + BN_EPS) * gamma + beta

        # sigAct1 (iter_num > 0 branch); scale folded at trace time (== 1 here).
        u = 0.5
        for _ in range(abs(ITER_NUM)):
            z = u - out
            if _SIG_SCALE != 1.0:
                z = z * _SIG_SCALE
            uu = jax.nn.sigmoid(-z)                              # EUP
            u = (1.0 - ALPHA) * u + ALPHA * uu
        return u

    def kernel(*refs):
        inp0_ref, masks_ref = refs[0], refs[1]
        block_refs = refs[2:2 + 3 * num_blocks]
        out_ref = refs[2 + 3 * num_blocks]
        patch_ref = refs[2 + 3 * num_blocks + 1]

        masks_all = masks_ref[...]                               # (K*K, NL)
        inp0 = inp0_ref[...]                                     # (CPAD, NL)

        # Residual of block 0: channel mean of x (first cin_x rows).
        res0 = jnp.sum(inp0[:cin_x, :], axis=0, keepdims=True) * (1.0 / cin_x)

        w = block_refs[0][...]                                   # (cout, K*K*CPAD)
        g = block_refs[1][...]                                   # (cout, 1)
        b = block_refs[2][...]
        u = _block(inp0, res0, w, g, b, masks_all, patch_ref)

        for tb in range(1, num_blocks):
            res = jnp.sum(u, axis=0, keepdims=True) * (1.0 / cout)
            if CPAD == cout:
                u_pad = u
            else:
                u_pad = jnp.concatenate(
                    [u, jnp.zeros((CPAD - cout, NL), jnp.float32)], axis=0)
            w = block_refs[3 * tb][...]
            g = block_refs[3 * tb + 1][...]
            b = block_refs[3 * tb + 2][...]
            u = _block(u_pad, res, w, g, b, masks_all, patch_ref)

        out_ref[...] = u.astype(out_ref.dtype)

    return kernel


# ---------------- Wrapper glue (boundary layout plumbing only) ----------------
def _zmap(nd):
    def imap(i):
        return (0,) * nd
    return imap


def _pack_weight(w_hwio, cpad):
    """(K, K, Cin, Cout) HWIO -> (Cout, K*K*cpad); column j = tap*cpad + ci."""
    k0, k1, cin, cout = w_hwio.shape
    wt = jnp.zeros((k0 * k1, cpad, cout), jnp.float32)
    wt = wt.at[:, :cin, :].set(w_hwio.reshape(k0 * k1, cin, cout).astype(jnp.float32))
    return wt.reshape(k0 * k1 * cpad, cout).T


def _make_tap_masks(H, W, N):
    """(K*K, N*H*W) f32 per-tap validity masks, tiled over the batch."""
    K = KERNEL_SIZE
    p = np.arange(H * W)
    row, col = p // W, p % W
    masks = np.zeros((K * K, N * H * W), np.float32)
    for dy in range(K):
        for dx in range(K):
            ady, adx = dy - PAD, dx - PAD
            valid = ((row + ady >= 0) & (row + ady < H)
                     & (col + adx >= 0) & (col + adx < W)).astype(np.float32)
            masks[dy * K + dx] = np.tile(valid, N)
    return jnp.asarray(masks)


def mgpc_conv_first(x_nchw, f_nchw, params):
    """x_nchw: (N, in_channels, H, W);  f_nchw = flist[0]: (N, 3, H, W)."""
    N, cin_x, H, W = x_nchw.shape
    cin_f = f_nchw.shape[1]
    cout = params["w0"].shape[-1]
    L = H * W
    NL = N * L

    # (N, C, H, W) -> (C, N*H*W): lane-dense layout on the last axis.
    def to_cl(a):
        return jnp.transpose(a, (1, 0, 2, 3)).reshape(a.shape[1], NL).astype(jnp.float32)

    pieces = [to_cl(x_nchw), to_cl(f_nchw)]
    pad_rows = CPAD - (cin_x + cin_f)
    if pad_rows:
        pieces.append(jnp.zeros((pad_rows, NL), jnp.float32))
    inp0 = jnp.concatenate(pieces, axis=0)                       # (CPAD, NL)

    inputs = [inp0, _make_tap_masks(H, W, N)]
    for t in range(TIMES):
        inputs.append(_pack_weight(params[f"w{t}"], CPAD))
        inputs.append(params[f"g{t}"].reshape(cout, 1).astype(jnp.float32))
        inputs.append(params[f"b{t}"].reshape(cout, 1).astype(jnp.float32))

    kernel = _make_fused_kernel(N, H, W, cin_x, cout, TIMES)
    out_cl = pl.pallas_call(
        kernel,
        out_shape=jax.ShapeDtypeStruct((cout, NL), jnp.float32),
        grid=(1,),
        in_specs=[pl.BlockSpec(a.shape, _zmap(a.ndim)) for a in inputs],
        out_specs=pl.BlockSpec((cout, NL), _zmap(2)),
        scratch_shapes=[pltpu.VMEM((KERNEL_SIZE * KERNEL_SIZE * CPAD, NL),
                                   jnp.float32)],
        compiler_params=pltpu.CompilerParams(
            dimension_semantics=("arbitrary",)),
    )(*inputs)
    return jnp.transpose(out_cl.reshape(cout, N, H, W), (1, 0, 2, 3))


# ---------------- Pure-JAX reference (for correctness check) -----------------
def reference_forward(x_nchw, f_nchw, params):
    x = jnp.transpose(x_nchw, (0, 2, 3, 1))
    f = jnp.transpose(f_nchw, (0, 2, 3, 1))

    def block(inp, res, w, g, b):
        conv = lax.conv_general_dilated(
            inp, w, (1, 1), "SAME",
            dimension_numbers=("NHWC", "HWIO", "NHWC"),
            precision=lax.Precision.HIGHEST)
        if TAU_EXPLICIT:
            out = (OUT_CHANNELS * TAU * conv
                   + jnp.sum(res, -1, keepdims=True) / res.shape[-1])
        else:
            out = conv
        mean = jnp.mean(out, axis=(0, 1, 2), keepdims=True)
        var = jnp.mean((out - mean) ** 2, axis=(0, 1, 2), keepdims=True)
        out = (out - mean) * lax.rsqrt(var + BN_EPS)
        out = out * g.reshape(1, 1, 1, -1) + b.reshape(1, 1, 1, -1)
        u = 0.5
        for _ in range(abs(ITER_NUM)):
            uu = (u - out) / TAU / EPSILON
            uu = jax.nn.sigmoid(-uu)
            u = (1.0 - ALPHA) * u + ALPHA * uu
        return u

    out = block(jnp.concatenate([x, f], -1), x,
                params["w0"], params["g0"], params["b0"])
    for i in range(TIMES - 1):
        out = block(out, out,
                    params[f"w{i + 1}"], params[f"g{i + 1}"], params[f"b{i + 1}"])
    return jnp.transpose(out, (0, 3, 1, 2))


# ---------------- Driver ------------------------------------------------------
if __name__ == "__main__":
    key = jax.random.PRNGKey(0)
    kx, kf, kw0, kw1, kg0, kb0, kg1, kb1 = jax.random.split(key, 8)

    N, H, W = 2, 16, 16
    x = jax.random.normal(kx, (N, IN_CHANNELS, H, W), jnp.float32)
    f = jax.random.normal(kf, (N, 3, H, W), jnp.float32)   # flist[0]

    params = {
        # Conv2d(in_channels+3 -> out_channels, K, bias=False), HWIO layout
        "w0": 0.1 * jax.random.normal(
            kw0, (KERNEL_SIZE, KERNEL_SIZE, IN_CHANNELS + 3, OUT_CHANNELS), jnp.float32),
        "g0": 1.0 + 0.1 * jax.random.normal(kg0, (1, OUT_CHANNELS), jnp.float32),
        "b0": 0.1 * jax.random.normal(kb0, (1, OUT_CHANNELS), jnp.float32),
        # Conv2d(out_channels -> out_channels, K, bias=False)
        "w1": 0.1 * jax.random.normal(
            kw1, (KERNEL_SIZE, KERNEL_SIZE, OUT_CHANNELS, OUT_CHANNELS), jnp.float32),
        "g1": 1.0 + 0.1 * jax.random.normal(kg1, (1, OUT_CHANNELS), jnp.float32),
        "b1": 0.1 * jax.random.normal(kb1, (1, OUT_CHANNELS), jnp.float32),
    }

    out = jax.jit(mgpc_conv_first)(x, f, params)
    out = jax.block_until_ready(out)

    ref = reference_forward(x, f, params)
    assert out.shape == (N, OUT_CHANNELS, H, W), out.shape
    max_err = float(jnp.max(jnp.abs(out - ref)))
    assert max_err < 5e-4, f"mismatch vs reference: {max_err}"
    print("KERNEL_OK")
</pallas_src>

<mosaic_0001>
module attributes {stable_mosaic.version = 11 : i64} {
  func.func @kernel(%arg0: i32, %arg1: memref<8x512xf32, #tpu.memory_space<vmem>>, %arg2: memref<9x512xf32, #tpu.memory_space<vmem>>, %arg3: memref<4x72xf32, #tpu.memory_space<vmem>>, %arg4: memref<4x1xf32, #tpu.memory_space<vmem>>, %arg5: memref<4x1xf32, #tpu.memory_space<vmem>>, %arg6: memref<4x72xf32, #tpu.memory_space<vmem>>, %arg7: memref<4x1xf32, #tpu.memory_space<vmem>>, %arg8: memref<4x1xf32, #tpu.memory_space<vmem>>, %arg9: memref<4x512xf32, #tpu.memory_space<vmem>>, %arg10: memref<72x512xf32, #tpu.memory_space<vmem>>) attributes {dimension_semantics = [#tpu.dimension_semantics<arbitrary>], iteration_bounds = array<i64: 1>, scalar_prefetch = 0 : i64, scratch_operands = 1 : i64, tpu.core_type = #tpu.core_type<tc>, window_params = [{pipeline_mode = #tpu.pipeline_mode<synchronous>, transform_indices = @transform_0, window_bounds = array<i64: 8, 512>}, {pipeline_mode = #tpu.pipeline_mode<synchronous>, transform_indices = @transform_1, window_bounds = array<i64: 9, 512>}, {pipeline_mode = #tpu.pipeline_mode<synchronous>, transform_indices = @transform_2, window_bounds = array<i64: 4, 72>}, {pipeline_mode = #tpu.pipeline_mode<synchronous>, transform_indices = @transform_3, window_bounds = array<i64: 4, 1>}, {pipeline_mode = #tpu.pipeline_mode<synchronous>, transform_indices = @transform_4, window_bounds = array<i64: 4, 1>}, {pipeline_mode = #tpu.pipeline_mode<synchronous>, transform_indices = @transform_5, window_bounds = array<i64: 4, 72>}, {pipeline_mode = #tpu.pipeline_mode<synchronous>, transform_indices = @transform_6, window_bounds = array<i64: 4, 1>}, {pipeline_mode = #tpu.pipeline_mode<synchronous>, transform_indices = @transform_7, window_bounds = array<i64: 4, 1>}, {pipeline_mode = #tpu.pipeline_mode<synchronous>, transform_indices = @transform_8, window_bounds = array<i64: 4, 512>}]} {
    %c0 = arith.constant 0 : index
    %c0_0 = arith.constant 0 : index
    %0 = vector.load %arg2[%c0, %c0_0] : memref<9x512xf32, #tpu.memory_space<vmem>>, vector<9x512xf32>
    %c0_1 = arith.constant 0 : index
    %c0_2 = arith.constant 0 : index
    %1 = vector.load %arg1[%c0_1, %c0_2] : memref<8x512xf32, #tpu.memory_space<vmem>>, vector<8x512xf32>
    %2 = vector.extract_strided_slice %1 {offsets = [0, 0], sizes = [4, 512], strides = [1, 1]} : vector<8x512xf32> to vector<4x512xf32>
    %cst = arith.constant dense<0.000000e+00> : vector<512xf32>
    %3 = vector.multi_reduction <add>, %2, %cst [0] : vector<4x512xf32> to vector<512xf32>
    %4 = vector.shape_cast %3 : vector<512xf32> to vector<1x512xf32>
    %cst_3 = arith.constant 2.500000e-01 : f32
    %5 = vector.broadcast %cst_3 : f32 to vector<1x512xf32>
    %6 = arith.mulf %4, %5 : vector<1x512xf32>
    %c0_4 = arith.constant 0 : index
    %c0_5 = arith.constant 0 : index
    %7 = vector.load %arg3[%c0_4, %c0_5] : memref<4x72xf32, #tpu.memory_space<vmem>>, vector<4x72xf32>
    %c0_6 = arith.constant 0 : index
    %c0_7 = arith.constant 0 : index
    %8 = vector.load %arg4[%c0_6, %c0_7] : memref<4x1xf32, #tpu.memory_space<vmem>>, vector<4x1xf32>
    %c0_8 = arith.constant 0 : index
    %c0_9 = arith.constant 0 : index
    %9 = vector.load %arg5[%c0_8, %c0_9] : memref<4x1xf32, #tpu.memory_space<vmem>>, vector<4x1xf32>
    %c17_i32 = arith.constant 17 : i32
    %10 = tpu.dynamic_rotate %1 by %c17_i32 dim 1 : vector<8x512xf32>, i32 -> vector<8x512xf32>
    %11 = vector.extract_strided_slice %0 {offsets = [0, 0], sizes = [1, 512], strides = [1, 1]} : vector<9x512xf32> to vector<1x512xf32>
    %12 = vector.broadcast %11 : vector<1x512xf32> to vector<8x512xf32>
    %13 = arith.mulf %10, %12 : vector<8x512xf32>
    %c0_10 = arith.constant 0 : index
    %c0_11 = arith.constant 0 : index
    %14 = vector.load %arg10[%c0_10, %c0_11] : memref<72x512xf32, #tpu.memory_space<vmem>>, vector<8x512xf32>
    tpu.vector_store %arg10[%c0_10, %c0_11], %13 {strides = array<i32>} : memref<72x512xf32, #tpu.memory_space<vmem>>, vector<8x512xf32>,
    %c16_i32 = arith.constant 16 : i32
    %15 = tpu.dynamic_rotate %1 by %c16_i32 dim 1 : vector<8x512xf32>, i32 -> vector<8x512xf32>
    %16 = vector.extract_strided_slice %0 {offsets = [1, 0], sizes = [1, 512], strides = [1, 1]} : vector<9x512xf32> to vector<1x512xf32>
    %17 = vector.broadcast %16 : vector<1x512xf32> to vector<8x512xf32>
    %18 = arith.mulf %15, %17 : vector<8x512xf32>
    %c8 = arith.constant 8 : index
    %c0_12 = arith.constant 0 : index
    %19 = vector.load %arg10[%c8, %c0_12] : memref<72x512xf32, #tpu.memory_space<vmem>>, vector<8x512xf32>
    tpu.vector_store %arg10[%c8, %c0_12], %18 {strides = array<i32>} : memref<72x512xf32, #tpu.memory_space<vmem>>, vector<8x512xf32>,
    %c15_i32 = arith.constant 15 : i32
    %20 = tpu.dynamic_rotate %1 by %c15_i32 dim 1 : vector<8x512xf32>, i32 -> vector<8x512xf32>
    %21 = vector.extract_strided_slice %0 {offsets = [2, 0], sizes = [1, 512], strides = [1, 1]} : vector<9x512xf32> to vector<1x512xf32>
    %22 = vector.broadcast %21 : vector<1x512xf32> to vector<8x512xf32>
    %23 = arith.mulf %20, %22 : vector<8x512xf32>
    %c16 = arith.constant 16 : index
    %c0_13 = arith.constant 0 : index
    %24 = vector.load %arg10[%c16, %c0_13] : memref<72x512xf32, #tpu.memory_space<vmem>>, vector<8x512xf32>
    tpu.vector_store %arg10[%c16, %c0_13], %23 {strides = array<i32>} : memref<72x512xf32, #tpu.memory_space<vmem>>, vector<8x512xf32>,
    %c1_i32 = arith.constant 1 : i32
    %25 = tpu.dynamic_rotate %1 by %c1_i32 dim 1 : vector<8x512xf32>, i32 -> vector<8x512xf32>
    %26 = vector.extract_strided_slice %0 {offsets = [3, 0], sizes = [1, 512], strides = [1, 1]} : vector<9x512xf32> to vector<1x512xf32>
    %27 = vector.broadcast %26 : vector<1x512xf32> to vector<8x512xf32>
    %28 = arith.mulf %25, %27 : vector<8x512xf32>
    %c24 = arith.constant 24 : index
    %c0_14 = arith.constant 0 : index
    %29 = vector.load %arg10[%c24, %c0_14] : memref<72x512xf32, #tpu.memory_space<vmem>>, vector<8x512xf32>
    tpu.vector_store %arg10[%c24, %c0_14], %28 {strides = array<i32>} : memref<72x512xf32, #tpu.memory_space<vmem>>, vector<8x512xf32>,
    %c32 = arith.constant 32 : index
    %c0_15 = arith.constant 0 : index
    %30 = vector.load %arg10[%c32, %c0_15] : memref<72x512xf32, #tpu.memory_space<vmem>>, vector<8x512xf32>
    tpu.vector_store %arg10[%c32, %c0_15], %1 {strides = array<i32>} : memref<72x512xf32, #tpu.memory_space<vmem>>, vector<8x512xf32>,
    %c511_i32 = arith.constant 511 : i32
    %31 = tpu.dynamic_rotate %1 by %c511_i32 dim 1 : vector<8x512xf32>, i32 -> vector<8x512xf32>
    %32 = vector.extract_strided_slice %0 {offsets = [5, 0], sizes = [1, 512], strides = [1, 1]} : vector<9x512xf32> to vector<1x512xf32>
    %33 = vector.broadcast %32 : vector<1x512xf32> to vector<8x512xf32>
    %34 = arith.mulf %31, %33 : vector<8x512xf32>
    %c40 = arith.constant 40 : index
    %c0_16 = arith.constant 0 : index
    %35 = vector.load %arg10[%c40, %c0_16] : memref<72x512xf32, #tpu.memory_space<vmem>>, vector<8x512xf32>
    tpu.vector_store %arg10[%c40, %c0_16], %34 {strides = array<i32>} : memref<72x512xf32, #tpu.memory_space<vmem>>, vector<8x512xf32>,
    %c497_i32 = arith.constant 497 : i32
    %36 = tpu.dynamic_rotate %1 by %c497_i32 dim 1 : vector<8x512xf32>, i32 -> vector<8x512xf32>
    %37 = vector.extract_strided_slice %0 {offsets = [6, 0], sizes = [1, 512], strides = [1, 1]} : vector<9x512xf32> to vector<1x512xf32>
    %38 = vector.broadcast %37 : vector<1x512xf32> to vector<8x512xf32>
    %39 = arith.mulf %36, %38 : vector<8x512xf32>
    %c48 = arith.constant 48 : index
    %c0_17 = arith.constant 0 : index
    %40 = vector.load %arg10[%c48, %c0_17] : memref<72x512xf32, #tpu.memory_space<vmem>>, vector<8x512xf32>
    tpu.vector_store %arg10[%c48, %c0_17], %39 {strides = array<i32>} : memref<72x512xf32, #tpu.memory_space<vmem>>, vector<8x512xf32>,
    %c496_i32 = arith.constant 496 : i32
    %41 = tpu.dynamic_rotate %1 by %c496_i32 dim 1 : vector<8x512xf32>, i32 -> vector<8x512xf32>
    %42 = vector.extract_strided_slice %0 {offsets = [7, 0], sizes = [1, 512], strides = [1, 1]} : vector<9x512xf32> to vector<1x512xf32>
    %43 = vector.broadcast %42 : vector<1x512xf32> to vector<8x512xf32>
    %44 = arith.mulf %41, %43 : vector<8x512xf32>
    %c56 = arith.constant 56 : index
    %c0_18 = arith.constant 0 : index
    %45 = vector.load %arg10[%c56, %c0_18] : memref<72x512xf32, #tpu.memory_space<vmem>>, vector<8x512xf32>
    tpu.vector_store %arg10[%c56, %c0_18], %44 {strides = array<i32>} : memref<72x512xf32, #tpu.memory_space<vmem>>, vector<8x512xf32>,
    %c495_i32 = arith.constant 495 : i32
    %46 = tpu.dynamic_rotate %1 by %c495_i32 dim 1 : vector<8x512xf32>, i32 -> vector<8x512xf32>
    %47 = vector.extract_strided_slice %0 {offsets = [8, 0], sizes = [1, 512], strides = [1, 1]} : vector<9x512xf32> to vector<1x512xf32>
    %48 = vector.broadcast %47 : vector<1x512xf32> to vector<8x512xf32>
    %49 = arith.mulf %46, %48 : vector<8x512xf32>
    %c64 = arith.constant 64 : index
    %c0_19 = arith.constant 0 : index
    %50 = vector.load %arg10[%c64, %c0_19] : memref<72x512xf32, #tpu.memory_space<vmem>>, vector<8x512xf32>
    tpu.vector_store %arg10[%c64, %c0_19], %49 {strides = array<i32>} : memref<72x512xf32, #tpu.memory_space<vmem>>, vector<8x512xf32>,
    %c0_20 = arith.constant 0 : index
    %c0_21 = arith.constant 0 : index
    %51 = vector.load %arg10[%c0_20, %c0_21] : memref<72x512xf32, #tpu.memory_space<vmem>>, vector<72x512xf32>
    %cst_22 = arith.constant dense<0.000000e+00> : vector<4x512xf32>
    %52 = tpu.matmul %7, %51, %cst_22 {dimension_numbers = #tpu.dot_dimension_numbers<[1], [0], [0], [1], [0, 0, 1, 1], [], []>, precision = #tpu.contract_precision<fp32>} : vector<4x72xf32>, vector<72x512xf32>, vector<4x512xf32> -> vector<4x512xf32>
    %53 = vector.broadcast %6 : vector<1x512xf32> to vector<4x512xf32>
    %54 = arith.addf %52, %53 : vector<4x512xf32>
    %cst_23 = arith.constant dense<0.000000e+00> : vector<4xf32>
    %55 = vector.multi_reduction <add>, %54, %cst_23 [1] : vector<4x512xf32> to vector<4xf32>
    %56 = vector.shape_cast %55 : vector<4xf32> to vector<4x1xf32>
    %cst_24 = arith.constant 0.001953125 : f32
    %57 = vector.broadcast %cst_24 : f32 to vector<4x1xf32>
    %58 = arith.mulf %56, %57 : vector<4x1xf32>
    %59 = vector.broadcast %58 : vector<4x1xf32> to vector<4x512xf32>
    %60 = arith.subf %54, %59 : vector<4x512xf32>
    %61 = arith.mulf %60, %60 : vector<4x512xf32>
    %cst_25 = arith.constant dense<0.000000e+00> : vector<4xf32>
    %62 = vector.multi_reduction <add>, %61, %cst_25 [1] : vector<4x512xf32> to vector<4xf32>
    %63 = vector.shape_cast %62 : vector<4xf32> to vector<4x1xf32>
    %cst_26 = arith.constant 0.001953125 : f32
    %64 = vector.broadcast %cst_26 : f32 to vector<4x1xf32>
    %65 = arith.mulf %63, %64 : vector<4x1xf32>
    %cst_27 = arith.constant 9.99999974E-6 : f32
    %66 = vector.broadcast %cst_27 : f32 to vector<4x1xf32>
    %67 = arith.addf %65, %66 : vector<4x1xf32>
    %68 = math.rsqrt %67 : vector<4x1xf32>
    %69 = vector.broadcast %68 : vector<4x1xf32> to vector<4x512xf32>
    %70 = arith.mulf %60, %69 : vector<4x512xf32>
    %71 = vector.broadcast %8 : vector<4x1xf32> to vector<4x512xf32>
    %72 = arith.mulf %70, %71 : vector<4x512xf32>
    %73 = vector.broadcast %9 : vector<4x1xf32> to vector<4x512xf32>
    %74 = arith.addf %72, %73 : vector<4x512xf32>
    %cst_28 = arith.constant 5.000000e-01 : f32
    %75 = vector.broadcast %cst_28 : f32 to vector<4x512xf32>
    %76 = arith.subf %75, %74 : vector<4x512xf32>
    %cst_29 = arith.constant 0.000000e+00 : f32
    %77 = vector.broadcast %cst_29 : f32 to vector<4x512xf32>
    %78 = arith.subf %77, %76 : vector<4x512xf32>
    %79 = arith.negf %78 : vector<4x512xf32>
    %80 = math.exp %79 : vector<4x512xf32>
    %cst_30 = arith.constant 1.000000e+00 : f32
    %81 = vector.broadcast %cst_30 : f32 to vector<4x512xf32>
    %82 = arith.addf %81, %80 : vector<4x512xf32>
    %83 = arith.divf %81, %82 : vector<4x512xf32>
    %cst_31 = arith.constant 8.000000e-01 : f32
    %84 = vector.broadcast %cst_31 : f32 to vector<4x512xf32>
    %85 = arith.mulf %84, %83 : vector<4x512xf32>
    %cst_32 = arith.constant 1.000000e-01 : f32
    %86 = vector.broadcast %cst_32 : f32 to vector<4x512xf32>
    %87 = arith.addf %86, %85 : vector<4x512xf32>
    %88 = arith.subf %87, %74 : vector<4x512xf32>
    %cst_33 = arith.constant 0.000000e+00 : f32
    %89 = vector.broadcast %cst_33 : f32 to vector<4x512xf32>
    %90 = arith.subf %89, %88 : vector<4x512xf32>
    %91 = arith.negf %90 : vector<4x512xf32>
    %92 = math.exp %91 : vector<4x512xf32>
    %cst_34 = arith.constant 1.000000e+00 : f32
    %93 = vector.broadcast %cst_34 : f32 to vector<4x512xf32>
    %94 = arith.addf %93, %92 : vector<4x512xf32>
    %95 = arith.divf %93, %94 : vector<4x512xf32>
    %cst_35 = arith.constant 2.000000e-01 : f32
    %96 = vector.broadcast %cst_35 : f32 to vector<4x512xf32>
    %97 = arith.mulf %96, %87 : vector<4x512xf32>
    %cst_36 = arith.constant 8.000000e-01 : f32
    %98 = vector.broadcast %cst_36 : f32 to vector<4x512xf32>
    %99 = arith.mulf %98, %95 : vector<4x512xf32>
    %100 = arith.addf %97, %99 : vector<4x512xf32>
    %cst_37 = arith.constant dense<0.000000e+00> : vector<512xf32>
    %101 = vector.multi_reduction <add>, %100, %cst_37 [0] : vector<4x512xf32> to vector<512xf32>
    %102 = vector.shape_cast %101 : vector<512xf32> to vector<1x512xf32>
    %cst_38 = arith.constant 2.500000e-01 : f32
    %103 = vector.broadcast %cst_38 : f32 to vector<1x512xf32>
    %104 = arith.mulf %102, %103 : vector<1x512xf32>
    %cst_39 = arith.constant 0.000000e+00 : f32
    %105 = vector.broadcast %cst_39 : f32 to vector<4x512xf32>
    %106 = tpu.concatenate %100, %105 in 0 : vector<4x512xf32>, vector<4x512xf32> -> vector<8x512xf32>
    %c0_40 = arith.constant 0 : index
    %c0_41 = arith.constant 0 : index
    %107 = vector.load %arg6[%c0_40, %c0_41] : memref<4x72xf32, #tpu.memory_space<vmem>>, vector<4x72xf32>
    %c0_42 = arith.constant 0 : index
    %c0_43 = arith.constant 0 : index
    %108 = vector.load %arg7[%c0_42, %c0_43] : memref<4x1xf32, #tpu.memory_space<vmem>>, vector<4x1xf32>
    %c0_44 = arith.constant 0 : index
    %c0_45 = arith.constant 0 : index
    %109 = vector.load %arg8[%c0_44, %c0_45] : memref<4x1xf32, #tpu.memory_space<vmem>>, vector<4x1xf32>
    %c17_i32_46 = arith.constant 17 : i32
    %110 = tpu.dynamic_rotate %106 by %c17_i32_46 dim 1 : vector<8x512xf32>, i32 -> vector<8x512xf32>
    %111 = vector.extract_strided_slice %0 {offsets = [0, 0], sizes = [1, 512], strides = [1, 1]} : vector<9x512xf32> to vector<1x512xf32>
    %112 = vector.broadcast %111 : vector<1x512xf32> to vector<8x512xf32>
    %113 = arith.mulf %110, %112 : vector<8x512xf32>
    %c0_47 = arith.constant 0 : index
    %c0_48 = arith.constant 0 : index
    %114 = vector.load %arg10[%c0_47, %c0_48] : memref<72x512xf32, #tpu.memory_space<vmem>>, vector<8x512xf32>
    tpu.vector_store %arg10[%c0_47, %c0_48], %113 {strides = array<i32>} : memref<72x512xf32, #tpu.memory_space<vmem>>, vector<8x512xf32>,
    %c16_i32_49 = arith.constant 16 : i32
    %115 = tpu.dynamic_rotate %106 by %c16_i32_49 dim 1 : vector<8x512xf32>, i32 -> vector<8x512xf32>
    %116 = vector.extract_strided_slice %0 {offsets = [1, 0], sizes = [1, 512], strides = [1, 1]} : vector<9x512xf32> to vector<1x512xf32>
    %117 = vector.broadcast %116 : vector<1x512xf32> to vector<8x512xf32>
    %118 = arith.mulf %115, %117 : vector<8x512xf32>
    %c8_50 = arith.constant 8 : index
    %c0_51 = arith.constant 0 : index
    %119 = vector.load %arg10[%c8_50, %c0_51] : memref<72x512xf32, #tpu.memory_space<vmem>>, vector<8x512xf32>
    tpu.vector_store %arg10[%c8_50, %c0_51], %118 {strides = array<i32>} : memref<72x512xf32, #tpu.memory_space<vmem>>, vector<8x512xf32>,
    %c15_i32_52 = arith.constant 15 : i32
    %120 = tpu.dynamic_rotate %106 by %c15_i32_52 dim 1 : vector<8x512xf32>, i32 -> vector<8x512xf32>
    %121 = vector.extract_strided_slice %0 {offsets = [2, 0], sizes = [1, 512], strides = [1, 1]} : vector<9x512xf32> to vector<1x512xf32>
    %122 = vector.broadcast %121 : vector<1x512xf32> to vector<8x512xf32>
    %123 = arith.mulf %120, %122 : vector<8x512xf32>
    %c16_53 = arith.constant 16 : index
    %c0_54 = arith.constant 0 : index
    %124 = vector.load %arg10[%c16_53, %c0_54] : memref<72x512xf32, #tpu.memory_space<vmem>>, vector<8x512xf32>
    tpu.vector_store %arg10[%c16_53, %c0_54], %123 {strides = array<i32>} : memref<72x512xf32, #tpu.memory_space<vmem>>, vector<8x512xf32>,
    %c1_i32_55 = arith.constant 1 : i32
    %125 = tpu.dynamic_rotate %106 by %c1_i32_55 dim 1 : vector<8x512xf32>, i32 -> vector<8x512xf32>
    %126 = vector.extract_strided_slice %0 {offsets = [3, 0], sizes = [1, 512], strides = [1, 1]} : vector<9x512xf32> to vector<1x512xf32>
    %127 = vector.broadcast %126 : vector<1x512xf32> to vector<8x512xf32>
    %128 = arith.mulf %125, %127 : vector<8x512xf32>
    %c24_56 = arith.constant 24 : index
    %c0_57 = arith.constant 0 : index
    %129 = vector.load %arg10[%c24_56, %c0_57] : memref<72x512xf32, #tpu.memory_space<vmem>>, vector<8x512xf32>
    tpu.vector_store %arg10[%c24_56, %c0_57], %128 {strides = array<i32>} : memref<72x512xf32, #tpu.memory_space<vmem>>, vector<8x512xf32>,
    %c32_58 = arith.constant 32 : index
    %c0_59 = arith.constant 0 : index
    %130 = vector.load %arg10[%c32_58, %c0_59] : memref<72x512xf32, #tpu.memory_space<vmem>>, vector<8x512xf32>
    tpu.vector_store %arg10[%c32_58, %c0_59], %106 {strides = array<i32>} : memref<72x512xf32, #tpu.memory_space<vmem>>, vector<8x512xf32>,
    %c511_i32_60 = arith.constant 511 : i32
    %131 = tpu.dynamic_rotate %106 by %c511_i32_60 dim 1 : vector<8x512xf32>, i32 -> vector<8x512xf32>
    %132 = vector.extract_strided_slice %0 {offsets = [5, 0], sizes = [1, 512], strides = [1, 1]} : vector<9x512xf32> to vector<1x512xf32>
    %133 = vector.broadcast %132 : vector<1x512xf32> to vector<8x512xf32>
    %134 = arith.mulf %131, %133 : vector<8x512xf32>
    %c40_61 = arith.constant 40 : index
    %c0_62 = arith.constant 0 : index
    %135 = vector.load %arg10[%c40_61, %c0_62] : memref<72x512xf32, #tpu.memory_space<vmem>>, vector<8x512xf32>
    tpu.vector_store %arg10[%c40_61, %c0_62], %134 {strides = array<i32>} : memref<72x512xf32, #tpu.memory_space<vmem>>, vector<8x512xf32>,
    %c497_i32_63 = arith.constant 497 : i32
    %136 = tpu.dynamic_rotate %106 by %c497_i32_63 dim 1 : vector<8x512xf32>, i32 -> vector<8x512xf32>
    %137 = vector.extract_strided_slice %0 {offsets = [6, 0], sizes = [1, 512], strides = [1, 1]} : vector<9x512xf32> to vector<1x512xf32>
    %138 = vector.broadcast %137 : vector<1x512xf32> to vector<8x512xf32>
    %139 = arith.mulf %136, %138 : vector<8x512xf32>
    %c48_64 = arith.constant 48 : index
    %c0_65 = arith.constant 0 : index
    %140 = vector.load %arg10[%c48_64, %c0_65] : memref<72x512xf32, #tpu.memory_space<vmem>>, vector<8x512xf32>
    tpu.vector_store %arg10[%c48_64, %c0_65], %139 {strides = array<i32>} : memref<72x512xf32, #tpu.memory_space<vmem>>, vector<8x512xf32>,
    %c496_i32_66 = arith.constant 496 : i32
    %141 = tpu.dynamic_rotate %106 by %c496_i32_66 dim 1 : vector<8x512xf32>, i32 -> vector<8x512xf32>
    %142 = vector.extract_strided_slice %0 {offsets = [7, 0], sizes = [1, 512], strides = [1, 1]} : vector<9x512xf32> to vector<1x512xf32>
    %143 = vector.broadcast %142 : vector<1x512xf32> to vector<8x512xf32>
    %144 = arith.mulf %141, %143 : vector<8x512xf32>
    %c56_67 = arith.constant 56 : index
    %c0_68 = arith.constant 0 : index
    %145 = vector.load %arg10[%c56_67, %c0_68] : memref<72x512xf32, #tpu.memory_space<vmem>>, vector<8x512xf32>
    tpu.vector_store %arg10[%c56_67, %c0_68], %144 {strides = array<i32>} : memref<72x512xf32, #tpu.memory_space<vmem>>, vector<8x512xf32>,
    %c495_i32_69 = arith.constant 495 : i32
    %146 = tpu.dynamic_rotate %106 by %c495_i32_69 dim 1 : vector<8x512xf32>, i32 -> vector<8x512xf32>
    %147 = vector.extract_strided_slice %0 {offsets = [8, 0], sizes = [1, 512], strides = [1, 1]} : vector<9x512xf32> to vector<1x512xf32>
    %148 = vector.broadcast %147 : vector<1x512xf32> to vector<8x512xf32>
    %149 = arith.mulf %146, %148 : vector<8x512xf32>
    %c64_70 = arith.constant 64 : index
    %c0_71 = arith.constant 0 : index
    %150 = vector.load %arg10[%c64_70, %c0_71] : memref<72x512xf32, #tpu.memory_space<vmem>>, vector<8x512xf32>
    tpu.vector_store %arg10[%c64_70, %c0_71], %149 {strides = array<i32>} : memref<72x512xf32, #tpu.memory_space<vmem>>, vector<8x512xf32>,
    %c0_72 = arith.constant 0 : index
    %c0_73 = arith.constant 0 : index
    %151 = vector.load %arg10[%c0_72, %c0_73] : memref<72x512xf32, #tpu.memory_space<vmem>>, vector<72x512xf32>
    %cst_74 = arith.constant dense<0.000000e+00> : vector<4x512xf32>
    %152 = tpu.matmul %107, %151, %cst_74 {dimension_numbers = #tpu.dot_dimension_numbers<[1], [0], [0], [1], [0, 0, 1, 1], [], []>, precision = #tpu.contract_precision<fp32>} : vector<4x72xf32>, vector<72x512xf32>, vector<4x512xf32> -> vector<4x512xf32>
    %153 = vector.broadcast %104 : vector<1x512xf32> to vector<4x512xf32>
    %154 = arith.addf %152, %153 : vector<4x512xf32>
    %cst_75 = arith.constant dense<0.000000e+00> : vector<4xf32>
    %155 = vector.multi_reduction <add>, %154, %cst_75 [1] : vector<4x512xf32> to vector<4xf32>
    %156 = vector.shape_cast %155 : vector<4xf32> to vector<4x1xf32>
    %cst_76 = arith.constant 0.001953125 : f32
    %157 = vector.broadcast %cst_76 : f32 to vector<4x1xf32>
    %158 = arith.mulf %156, %157 : vector<4x1xf32>
    %159 = vector.broadcast %158 : vector<4x1xf32> to vector<4x512xf32>
    %160 = arith.subf %154, %159 : vector<4x512xf32>
    %161 = arith.mulf %160, %160 : vector<4x512xf32>
    %cst_77 = arith.constant dense<0.000000e+00> : vector<4xf32>
    %162 = vector.multi_reduction <add>, %161, %cst_77 [1] : vector<4x512xf32> to vector<4xf32>
    %163 = vector.shape_cast %162 : vector<4xf32> to vector<4x1xf32>
    %cst_78 = arith.constant 0.001953125 : f32
    %164 = vector.broadcast %cst_78 : f32 to vector<4x1xf32>
    %165 = arith.mulf %163, %164 : vector<4x1xf32>
    %cst_79 = arith.constant 9.99999974E-6 : f32
    %166 = vector.broadcast %cst_79 : f32 to vector<4x1xf32>
    %167 = arith.addf %165, %166 : vector<4x1xf32>
    %168 = math.rsqrt %167 : vector<4x1xf32>
    %169 = vector.broadcast %168 : vector<4x1xf32> to vector<4x512xf32>
    %170 = arith.mulf %160, %169 : vector<4x512xf32>
    %171 = vector.broadcast %108 : vector<4x1xf32> to vector<4x512xf32>
    %172 = arith.mulf %170, %171 : vector<4x512xf32>
    %173 = vector.broadcast %109 : vector<4x1xf32> to vector<4x512xf32>
    %174 = arith.addf %172, %173 : vector<4x512xf32>
    %cst_80 = arith.constant 5.000000e-01 : f32
    %175 = vector.broadcast %cst_80 : f32 to vector<4x512xf32>
    %176 = arith.subf %175, %174 : vector<4x512xf32>
    %cst_81 = arith.constant 0.000000e+00 : f32
    %177 = vector.broadcast %cst_81 : f32 to vector<4x512xf32>
    %178 = arith.subf %177, %176 : vector<4x512xf32>
    %179 = arith.negf %178 : vector<4x512xf32>
    %180 = math.exp %179 : vector<4x512xf32>
    %cst_82 = arith.constant 1.000000e+00 : f32
    %181 = vector.broadcast %cst_82 : f32 to vector<4x512xf32>
    %182 = arith.addf %181, %180 : vector<4x512xf32>
    %183 = arith.divf %181, %182 : vector<4x512xf32>
    %cst_83 = arith.constant 8.000000e-01 : f32
    %184 = vector.broadcast %cst_83 : f32 to vector<4x512xf32>
    %185 = arith.mulf %184, %183 : vector<4x512xf32>
    %cst_84 = arith.constant 1.000000e-01 : f32
    %186 = vector.broadcast %cst_84 : f32 to vector<4x512xf32>
    %187 = arith.addf %186, %185 : vector<4x512xf32>
    %188 = arith.subf %187, %174 : vector<4x512xf32>
    %cst_85 = arith.constant 0.000000e+00 : f32
    %189 = vector.broadcast %cst_85 : f32 to vector<4x512xf32>
    %190 = arith.subf %189, %188 : vector<4x512xf32>
    %191 = arith.negf %190 : vector<4x512xf32>
    %192 = math.exp %191 : vector<4x512xf32>
    %cst_86 = arith.constant 1.000000e+00 : f32
    %193 = vector.broadcast %cst_86 : f32 to vector<4x512xf32>
    %194 = arith.addf %193, %192 : vector<4x512xf32>
    %195 = arith.divf %193, %194 : vector<4x512xf32>
    %cst_87 = arith.constant 2.000000e-01 : f32
    %196 = vector.broadcast %cst_87 : f32 to vector<4x512xf32>
    %197 = arith.mulf %196, %187 : vector<4x512xf32>
    %cst_88 = arith.constant 8.000000e-01 : f32
    %198 = vector.broadcast %cst_88 : f32 to vector<4x512xf32>
    %199 = arith.mulf %198, %195 : vector<4x512xf32>
    %200 = arith.addf %197, %199 : vector<4x512xf32>
    %c0_89 = arith.constant 0 : index
    %c0_90 = arith.constant 0 : index
    %201 = vector.load %arg9[%c0_89, %c0_90] : memref<4x512xf32, #tpu.memory_space<vmem>>, vector<4x512xf32>
    tpu.vector_store %arg9[%c0_89, %c0_90], %200 {strides = array<i32>} : memref<4x512xf32, #tpu.memory_space<vmem>>, vector<4x512xf32>,
    return
  }
  func.func @transform_0(%arg0: i32) -> (i32, i32) {
    %c0_i32 = arith.constant 0 : i32
    %c0_i32_0 = arith.constant 0 : i32
    %c0_i32_1 = arith.constant 0 : i32
    return %c0_i32, %c0_i32_0 : i32, i32
  }
  func.func @transform_1(%arg0: i32) -> (i32, i32) {
    %c0_i32 = arith.constant 0 : i32
    %c0_i32_0 = arith.constant 0 : i32
    %c0_i32_1 = arith.constant 0 : i32
    return %c0_i32, %c0_i32_0 : i32, i32
  }
  func.func @transform_2(%arg0: i32) -> (i32, i32) {
    %c0_i32 = arith.constant 0 : i32
    %c0_i32_0 = arith.constant 0 : i32
    %c0_i32_1 = arith.constant 0 : i32
    return %c0_i32, %c0_i32_0 : i32, i32
  }
  func.func @transform_3(%arg0: i32) -> (i32, i32) {
    %c0_i32 = arith.constant 0 : i32
    %c0_i32_0 = arith.constant 0 : i32
    %c0_i32_1 = arith.constant 0 : i32
    return %c0_i32, %c0_i32_0 : i32, i32
  }
  func.func @transform_4(%arg0: i32) -> (i32, i32) {
    %c0_i32 = arith.constant 0 : i32
    %c0_i32_0 = arith.constant 0 : i32
    %c0_i32_1 = arith.constant 0 : i32
    return %c0_i32, %c0_i32_0 : i32, i32
  }
  func.func @transform_5(%arg0: i32) -> (i32, i32) {
    %c0_i32 = arith.constant 0 : i32
    %c0_i32_0 = arith.constant 0 : i32
    %c0_i32_1 = arith.constant 0 : i32
    return %c0_i32, %c0_i32_0 : i32, i32
  }
  func.func @transform_6(%arg0: i32) -> (i32, i32) {
    %c0_i32 = arith.constant 0 : i32
    %c0_i32_0 = arith.constant 0 : i32
    %c0_i32_1 = arith.constant 0 : i32
    return %c0_i32, %c0_i32_0 : i32, i32
  }
  func.func @transform_7(%arg0: i32) -> (i32, i32) {
    %c0_i32 = arith.constant 0 : i32
    %c0_i32_0 = arith.constant 0 : i32
    %c0_i32_1 = arith.constant 0 : i32
    return %c0_i32, %c0_i32_0 : i32, i32
  }
  func.func @transform_8(%arg0: i32) -> (i32, i32) {
    %c0_i32 = arith.constant 0 : i32
    %c0_i32_0 = arith.constant 0 : i32
    %c0_i32_1 = arith.constant 0 : i32
    return %c0_i32, %c0_i32_0 : i32, i32
  }
}

</mosaic_0001>

<llo_original>
// kernel: mgpc_conv_first.1
$region0: #{mgpc_conv_first.1}
  #allocation0 [shape = 'u32[]', space=smem, size = 0x4, offset = 0x4, fixed_abs, tag = 'smem constant byte address 0x4 - core index']
  #allocation1 [shape = 'u32[72,128]{1,0:T(1,128)}', space=vmem, size = 0x9000, scoped, tag = 'internal scratch']
  #allocation2 [shape = 'f32[72,512]{1,0:T(8,128)}', space=vmem, size = 0x24000, scoped, tag = 'scratch operand']
  %s0 = inlined_call_operand.vmem [shape: f32[8,512], index: 0, kind: input, shape index: {}]
  %s1 = inlined_call_operand.vmem [shape: f32[9,512], index: 1, kind: input, shape index: {}]
  %s2 = inlined_call_operand.vmem [shape: f32[4,72], index: 2, kind: input, shape index: {}]
  %s3 = inlined_call_operand.vmem [shape: f32[4,1], index: 3, kind: input, shape index: {}]
  %s4 = inlined_call_operand.vmem [shape: f32[4,1], index: 4, kind: input, shape index: {}]
  %s5 = inlined_call_operand.vmem [shape: f32[4,72], index: 5, kind: input, shape index: {}]
  %s6 = inlined_call_operand.vmem [shape: f32[4,1], index: 6, kind: input, shape index: {}]
  %s7 = inlined_call_operand.vmem [shape: f32[4,1], index: 7, kind: input, shape index: {}]
  %s8 = inlined_call_operand.vmem [shape: f32[4,512], index: 8, kind: output, shape index: {}]
  %s9 = sld [smem:[#allocation0]]
  $region42: #{mgpc_conv_first.1} parent=0
    _
  %s11 = ssub.s32 1, %s9
  %s12 = scalar_select 0, %s11, %s9
  // Predicated region
  $region2: #{mgpc_conv_first.1} parent=0 // pred_check
    _
  $region3: #{mgpc_conv_first.1} parent=0 // pred_check_branch
    %14 = sbr.rel (0) target = $region5
  $region4: #{mgpc_conv_first.1} parent=0 // pred_region
    _
  $region5: #{mgpc_conv_first.1} parent=0 // pred_fallthru
    _
  // Predicated region
  $region6: #{mgpc_conv_first.1} parent=0 // pred_check
    _
  $region7: #{mgpc_conv_first.1} parent=0 // pred_check_branch
    %16 = sbr.rel (0) target = $region9
  $region8: #{mgpc_conv_first.1} parent=0 // pred_region
    _
  $region9: #{mgpc_conv_first.1} parent=0 // pred_fallthru
    _
  // Predicated region
  $region10: #{mgpc_conv_first.1} parent=0 // pred_check
    _
  $region11: #{mgpc_conv_first.1} parent=0 // pred_check_branch
    %18 = sbr.rel (0) target = $region13
  $region12: #{mgpc_conv_first.1} parent=0 // pred_region
    _
  $region13: #{mgpc_conv_first.1} parent=0 // pred_fallthru
    _
  // Predicated region
  $region14: #{mgpc_conv_first.1} parent=0 // pred_check
    _
  $region15: #{mgpc_conv_first.1} parent=0 // pred_check_branch
    %20 = sbr.rel (0) target = $region17
  $region16: #{mgpc_conv_first.1} parent=0 // pred_region
    _
  $region17: #{mgpc_conv_first.1} parent=0 // pred_fallthru
    _
  // Predicated region
  $region18: #{mgpc_conv_first.1} parent=0 // pred_check
    _
  $region19: #{mgpc_conv_first.1} parent=0 // pred_check_branch
    %22 = sbr.rel (0) target = $region21
  $region20: #{mgpc_conv_first.1} parent=0 // pred_region
    _
  $region21: #{mgpc_conv_first.1} parent=0 // pred_fallthru
    _
  // Predicated region
  $region22: #{mgpc_conv_first.1} parent=0 // pred_check
    _
  $region23: #{mgpc_conv_first.1} parent=0 // pred_check_branch
    %24 = sbr.rel (0) target = $region25
  $region24: #{mgpc_conv_first.1} parent=0 // pred_region
    _
  $region25: #{mgpc_conv_first.1} parent=0 // pred_fallthru
    _
  // Predicated region
  $region26: #{mgpc_conv_first.1} parent=0 // pred_check
    _
  $region27: #{mgpc_conv_first.1} parent=0 // pred_check_branch
    %26 = sbr.rel (0) target = $region29
  $region28: #{mgpc_conv_first.1} parent=0 // pred_region
    _
  $region29: #{mgpc_conv_first.1} parent=0 // pred_fallthru
    _
  // Predicated region
  $region30: #{mgpc_conv_first.1} parent=0 // pred_check
    _
  $region31: #{mgpc_conv_first.1} parent=0 // pred_check_branch
    %28 = sbr.rel (0) target = $region33
  $region32: #{mgpc_conv_first.1} parent=0 // pred_region
    _
  $region33: #{mgpc_conv_first.1} parent=0 // pred_fallthru
    _
  %v29 = vld [vmem:[%s1] sm:$0xff]
  %v30 = vld [vmem:[%s1 + $0x8] sm:$0xff]
  %v31 = vld [vmem:[%s1 + $0x10] sm:$0xff]
  %v32 = vld [vmem:[%s1 + $0x18] sm:$0xff]
  %v33 = vld [vmem:[%s1 + $0x20] sm:$0x1]
  %v34 = vld [vmem:[%s1 + $0x28] sm:$0x1]
  %v35 = vld [vmem:[%s1 + $0x30] sm:$0x1]
  %v36 = vld [vmem:[%s1 + $0x38] sm:$0x1]
  %v37 = vld [vmem:[%s0] sm:$0xff]
  %v38 = vld [vmem:[%s0 + $0x8] sm:$0xff]
  %v39 = vld [vmem:[%s0 + $0x10] sm:$0xff]
  %v40 = vld [vmem:[%s0 + $0x18] sm:$0xff]
  %vm41 = vcmask 1043456
  %v42 = vsel %vm41, %v37, 0.0
  %v43 = vrot.slane %v42, 4
  %v44 = vadd.f32 %v42, %v43
  %v45 = vrot.slane %v44, 2
  %v46 = vadd.f32 %v44, %v45
  %v47 = vrot.slane %v46, 1
  %v48 = vadd.f32 %v46, %v47
  %v49 = vsel %vm41, %v38, 0.0
  %v50 = vrot.slane %v49, 4
  %v51 = vadd.f32 %v49, %v50
  %v52 = vrot.slane %v51, 2
  %v53 = vadd.f32 %v51, %v52
  %v54 = vrot.slane %v53, 1
  %v55 = vadd.f32 %v53, %v54
  %v56 = vsel %vm41, %v39, 0.0
  %v57 = vrot.slane %v56, 4
  %v58 = vadd.f32 %v56, %v57
  %v59 = vrot.slane %v58, 2
  %v60 = vadd.f32 %v58, %v59
  %v61 = vrot.slane %v60, 1
  %v62 = vadd.f32 %v60, %v61
  %v63 = vsel %vm41, %v40, 0.0
  %v64 = vrot.slane %v63, 4
  %v65 = vadd.f32 %v63, %v64
  %v66 = vrot.slane %v65, 2
  %v67 = vadd.f32 %v65, %v66
  %v68 = vrot.slane %v67, 1
  %v69 = vadd.f32 %v67, %v68
  %v70 = vmul.f32 %v48, 0.25
  %v71 = vmul.f32 %v55, 0.25
  %v72 = vmul.f32 %v62, 0.25
  %v73 = vmul.f32 %v69, 0.25
  %v74 = vld [vmem:[%s2] sm:$0xf]
  %v75 = vld [vmem:[%s3] sm:$0xf]
  %v76 = vld [vmem:[%s4] sm:$0xf]
  %77 = vrot.lane.b32.xlu0 %v37, 17
  %v78 = vpop.permute.xlu0 %77
  %79 = vrot.lane.b32.xlu0 %v38, 17
  %v80 = vpop.permute.xlu0 %79
  %81 = vrot.lane.b32.xlu0 %v39, 17
  %v82 = vpop.permute.xlu0 %81
  %83 = vrot.lane.b32.xlu0 %v40, 17
  %v84 = vpop.permute.xlu0 %83
  %v85 = vlaneseq
  %v86 = vand.u32 %v85, 127
  %vm87 = vcmp.lt.s32.totalorder %v86, 17
  %v88 = vsel %vm87, %v82, %v84
  %v89 = vsel %vm87, %v80, %v82
  %v90 = vsel %vm87, %v78, %v80
  %v91 = vsel %vm87, %v84, %v78
  %v92 = vperm.slane %v29, 0
  %v93 = vperm.slane %v30, 0
  %v94 = vperm.slane %v31, 0
  %v95 = vperm.slane %v32, 0
  %v96 = vmul.f32 %v91, %v92
  %v97 = vmul.f32 %v90, %v93
  %v98 = vmul.f32 %v89, %v94
  %v99 = vmul.f32 %v88, %v95
  %100 = vst [vmem:[#allocation2] sm:$0xff] %v96
  %101 = vst [vmem:[#allocation2 + $0x8] sm:$0xff] %v97
  %102 = vst [vmem:[#allocation2 + $0x10] sm:$0xff] %v98
  %103 = vst [vmem:[#allocation2 + $0x18] sm:$0xff] %v99
  %104 = vrot.lane.b32.xlu0 %v37, 16
  %v105 = vpop.permute.xlu0 %104
  %106 = vrot.lane.b32.xlu0 %v38, 16
  %v107 = vpop.permute.xlu0 %106
  %108 = vrot.lane.b32.xlu0 %v39, 16
  %v109 = vpop.permute.xlu0 %108
  %110 = vrot.lane.b32.xlu0 %v40, 16
  %v111 = vpop.permute.xlu0 %110
  %vm112 = vcmp.lt.s32.totalorder %v86, 16
  %v113 = vsel %vm112, %v109, %v111
  %v114 = vsel %vm112, %v107, %v109
  %v115 = vsel %vm112, %v105, %v107
  %v116 = vsel %vm112, %v111, %v105
  %v117 = vperm.slane %v29, 1
  %v118 = vperm.slane %v30, 1
  %v119 = vperm.slane %v31, 1
  %v120 = vperm.slane %v32, 1
  %v121 = vmul.f32 %v116, %v117
  %v122 = vmul.f32 %v115, %v118
  %v123 = vmul.f32 %v114, %v119
  %v124 = vmul.f32 %v113, %v120
  %125 = vst [vmem:[#allocation2 + $0x20] sm:$0xff] %v121
  %126 = vst [vmem:[#allocation2 + $0x28] sm:$0xff] %v122
  %127 = vst [vmem:[#allocation2 + $0x30] sm:$0xff] %v123
  %128 = vst [vmem:[#allocation2 + $0x38] sm:$0xff] %v124
  %129 = vrot.lane.b32.xlu0 %v37, 15
  %v130 = vpop.permute.xlu0 %129
  %131 = vrot.lane.b32.xlu0 %v38, 15
  %v132 = vpop.permute.xlu0 %131
  %133 = vrot.lane.b32.xlu0 %v39, 15
  %v134 = vpop.permute.xlu0 %133
  %135 = vrot.lane.b32.xlu0 %v40, 15
  %v136 = vpop.permute.xlu0 %135
  %vm137 = vcmp.lt.s32.totalorder %v86, 15
  %v138 = vsel %vm137, %v134, %v136
  %v139 = vsel %vm137, %v132, %v134
  %v140 = vsel %vm137, %v130, %v132
  %v141 = vsel %vm137, %v136, %v130
  %v142 = vperm.slane %v29, 2
  %v143 = vperm.slane %v30, 2
  %v144 = vperm.slane %v31, 2
  %v145 = vperm.slane %v32, 2
  %v146 = vmul.f32 %v141, %v142
  %v147 = vmul.f32 %v140, %v143
  %v148 = vmul.f32 %v139, %v144
  %v149 = vmul.f32 %v138, %v145
  %150 = vst [vmem:[#allocation2 + $0x40] sm:$0xff] %v146
  %151 = vst [vmem:[#allocation2 + $0x48] sm:$0xff] %v147
  %152 = vst [vmem:[#allocation2 + $0x50] sm:$0xff] %v148
  %153 = vst [vmem:[#allocation2 + $0x58] sm:$0xff] %v149
  %154 = vrot.lane.b32.xlu0 %v37, 1
  %v155 = vpop.permute.xlu0 %154
  %156 = vrot.lane.b32.xlu0 %v38, 1
  %v157 = vpop.permute.xlu0 %156
  %158 = vrot.lane.b32.xlu0 %v39, 1
  %v159 = vpop.permute.xlu0 %158
  %160 = vrot.lane.b32.xlu0 %v40, 1
  %v161 = vpop.permute.xlu0 %160
  %vm162 = vcmp.lt.s32.totalorder %v86, 1
  %v163 = vsel %vm162, %v159, %v161
  %v164 = vsel %vm162, %v157, %v159
  %v165 = vsel %vm162, %v155, %v157
  %v166 = vsel %vm162, %v161, %v155
  %v167 = vperm.slane %v29, 3
  %v168 = vperm.slane %v30, 3
  %v169 = vperm.slane %v31, 3
  %v170 = vperm.slane %v32, 3
  %v171 = vmul.f32 %v166, %v167
  %v172 = vmul.f32 %v165, %v168
  %v173 = vmul.f32 %v164, %v169
  %v174 = vmul.f32 %v163, %v170
  %175 = vst [vmem:[#allocation2 + $0x60] sm:$0xff] %v171
  %176 = vst [vmem:[#allocation2 + $0x68] sm:$0xff] %v172
  %177 = vst [vmem:[#allocation2 + $0x70] sm:$0xff] %v173
  %178 = vst [vmem:[#allocation2 + $0x78] sm:$0xff] %v174
  %179 = vst [vmem:[#allocation2 + $0x80] sm:$0xff] %v37
  %180 = vst [vmem:[#allocation2 + $0x88] sm:$0xff] %v38
  %181 = vst [vmem:[#allocation2 + $0x90] sm:$0xff] %v39
  %182 = vst [vmem:[#allocation2 + $0x98] sm:$0xff] %v40
  %183 = vrot.lane.b32.xlu0 %v37, 127
  %v184 = vpop.permute.xlu0 %183
  %185 = vrot.lane.b32.xlu0 %v38, 127
  %v186 = vpop.permute.xlu0 %185
  %187 = vrot.lane.b32.xlu0 %v39, 127
  %v188 = vpop.permute.xlu0 %187
  %189 = vrot.lane.b32.xlu0 %v40, 127
  %v190 = vpop.permute.xlu0 %189
  %vm191 = vcmp.lt.s32.totalorder %v86, 127
  %v192 = vsel %vm191, %v188, %v190
  %v193 = vsel %vm191, %v186, %v188
  %v194 = vsel %vm191, %v184, %v186
  %v195 = vsel %vm191, %v190, %v184
  %v196 = vperm.slane %v29, 5
  %v197 = vperm.slane %v30, 5
  %v198 = vperm.slane %v31, 5
  %v199 = vperm.slane %v32, 5
  %v200 = vmul.f32 %v194, %v196
  %v201 = vmul.f32 %v193, %v197
  %v202 = vmul.f32 %v192, %v198
  %v203 = vmul.f32 %v195, %v199
  %204 = vst [vmem:[#allocation2 + $0xa0] sm:$0xff] %v200
  %205 = vst [vmem:[#allocation2 + $0xa8] sm:$0xff] %v201
  %206 = vst [vmem:[#allocation2 + $0xb0] sm:$0xff] %v202
  %207 = vst [vmem:[#allocation2 + $0xb8] sm:$0xff] %v203
  %208 = vrot.lane.b32.xlu0 %v37, 113
  %v209 = vpop.permute.xlu0 %208
  %210 = vrot.lane.b32.xlu0 %v38, 113
  %v211 = vpop.permute.xlu0 %210
  %212 = vrot.lane.b32.xlu0 %v39, 113
  %v213 = vpop.permute.xlu0 %212
  %214 = vrot.lane.b32.xlu0 %v40, 113
  %v215 = vpop.permute.xlu0 %214
  %vm216 = vcmp.lt.s32.totalorder %v86, 113
  %v217 = vsel %vm216, %v213, %v215
  %v218 = vsel %vm216, %v211, %v213
  %v219 = vsel %vm216, %v209, %v211
  %v220 = vsel %vm216, %v215, %v209
  %v221 = vperm.slane %v29, 6
  %v222 = vperm.slane %v30, 6
  %v223 = vperm.slane %v31, 6
  %v224 = vperm.slane %v32, 6
  %v225 = vmul.f32 %v219, %v221
  %v226 = vmul.f32 %v218, %v222
  %v227 = vmul.f32 %v217, %v223
  %v228 = vmul.f32 %v220, %v224
  %229 = vst [vmem:[#allocation2 + $0xc0] sm:$0xff] %v225
  %230 = vst [vmem:[#allocation2 + $0xc8] sm:$0xff] %v226
  %231 = vst [vmem:[#allocation2 + $0xd0] sm:$0xff] %v227
  %232 = vst [vmem:[#allocation2 + $0xd8] sm:$0xff] %v228
  %233 = vrot.lane.b32.xlu0 %v37, 112
  %v234 = vpop.permute.xlu0 %233
  %235 = vrot.lane.b32.xlu0 %v38, 112
  %v236 = vpop.permute.xlu0 %235
  %237 = vrot.lane.b32.xlu0 %v39, 112
  %v238 = vpop.permute.xlu0 %237
  %239 = vrot.lane.b32.xlu0 %v40, 112
  %v240 = vpop.permute.xlu0 %239
  %vm241 = vcmp.lt.s32.totalorder %v86, 112
  %v242 = vsel %vm241, %v238, %v240
  %v243 = vsel %vm241, %v236, %v238
  %v244 = vsel %vm241, %v234, %v236
  %v245 = vsel %vm241, %v240, %v234
  %v246 = vperm.slane %v29, 7
  %v247 = vperm.slane %v30, 7
  %v248 = vperm.slane %v31, 7
  %v249 = vperm.slane %v32, 7
  %v250 = vmul.f32 %v244, %v246
  %v251 = vmul.f32 %v243, %v247
  %v252 = vmul.f32 %v242, %v248
  %v253 = vmul.f32 %v245, %v249
  %254 = vst [vmem:[#allocation2 + $0xe0] sm:$0xff] %v250
  %255 = vst [vmem:[#allocation2 + $0xe8] sm:$0xff] %v251
  %256 = vst [vmem:[#allocation2 + $0xf0] sm:$0xff] %v252
  %257 = vst [vmem:[#allocation2 + $0xf8] sm:$0xff] %v253
  %258 = vrot.lane.b32.xlu0 %v37, 111
  %v259 = vpop.permute.xlu0 %258
  %260 = vrot.lane.b32.xlu0 %v38, 111
  %v261 = vpop.permute.xlu0 %260
  %262 = vrot.lane.b32.xlu0 %v39, 111
  %v263 = vpop.permute.xlu0 %262
  %264 = vrot.lane.b32.xlu0 %v40, 111
  %v265 = vpop.permute.xlu0 %264
  %vm266 = vcmp.lt.s32.totalorder %v86, 111
  %v267 = vsel %vm266, %v263, %v265
  %v268 = vsel %vm266, %v261, %v263
  %v269 = vsel %vm266, %v259, %v261
  %v270 = vsel %vm266, %v265, %v259
  %v271 = vperm.slane %v33, 0
  %v272 = vperm.slane %v34, 0
  %v273 = vperm.slane %v35, 0
  %v274 = vperm.slane %v36, 0
  %v275 = vmul.f32 %v269, %v271
  %v276 = vmul.f32 %v268, %v272
  %v277 = vmul.f32 %v267, %v273
  %v278 = vmul.f32 %v270, %v274
  %279 = vst [vmem:[#allocation2 + $0x100] sm:$0xff] %v275
  %280 = vst [vmem:[#allocation2 + $0x108] sm:$0xff] %v276
  %281 = vst [vmem:[#allocation2 + $0x110] sm:$0xff] %v277
  %282 = vst [vmem:[#allocation2 + $0x118] sm:$0xff] %v278
  %v283 = vld [vmem:[#allocation2] sm:$0xff]
  %v284 = vld [vmem:[#allocation2 + $0x8] sm:$0xff]
  %v285 = vld [vmem:[#allocation2 + $0x10] sm:$0xff]
  %v286 = vld [vmem:[#allocation2 + $0x18] sm:$0xff]
  %v287 = vld [vmem:[#allocation2 + $0x20] sm:$0xff]
  %v288 = vld [vmem:[#allocation2 + $0x28] sm:$0xff]
  %v289 = vld [vmem:[#allocation2 + $0x30] sm:$0xff]
  %v290 = vld [vmem:[#allocation2 + $0x38] sm:$0xff]
  %v291 = vld [vmem:[#allocation2 + $0x40] sm:$0xff]
  %v292 = vld [vmem:[#allocation2 + $0x48] sm:$0xff]
  %v293 = vld [vmem:[#allocation2 + $0x50] sm:$0xff]
  %v294 = vld [vmem:[#allocation2 + $0x58] sm:$0xff]
  %v295 = vld [vmem:[#allocation2 + $0x60] sm:$0xff]
  %v296 = vld [vmem:[#allocation2 + $0x68] sm:$0xff]
  %v297 = vld [vmem:[#allocation2 + $0x70] sm:$0xff]
  %v298 = vld [vmem:[#allocation2 + $0x78] sm:$0xff]
  %v299 = vld [vmem:[#allocation2 + $0x80] sm:$0xff]
  %v300 = vld [vmem:[#allocation2 + $0x88] sm:$0xff]
  %v301 = vld [vmem:[#allocation2 + $0x90] sm:$0xff]
  %v302 = vld [vmem:[#allocation2 + $0x98] sm:$0xff]
  %v303 = vld [vmem:[#allocation2 + $0xa0] sm:$0xff]
  %v304 = vld [vmem:[#allocation2 + $0xa8] sm:$0xff]
  %v305 = vld [vmem:[#allocation2 + $0xb0] sm:$0xff]
  %v306 = vld [vmem:[#allocation2 + $0xb8] sm:$0xff]
  %v307 = vld [vmem:[#allocation2 + $0xc0] sm:$0xff]
  %v308 = vld [vmem:[#allocation2 + $0xc8] sm:$0xff]
  %v309 = vld [vmem:[#allocation2 + $0xd0] sm:$0xff]
  %v310 = vld [vmem:[#allocation2 + $0xd8] sm:$0xff]
  %v311 = vld [vmem:[#allocation2 + $0xe0] sm:$0xff]
  %v312 = vld [vmem:[#allocation2 + $0xe8] sm:$0xff]
  %v313 = vld [vmem:[#allocation2 + $0xf0] sm:$0xff]
  %v314 = vld [vmem:[#allocation2 + $0xf8] sm:$0xff]
  %v315 = vld [vmem:[#allocation2 + $0x100] sm:$0xff]
  %v316 = vld [vmem:[#allocation2 + $0x108] sm:$0xff]
  %v317 = vld [vmem:[#allocation2 + $0x110] sm:$0xff]
  %v318 = vld [vmem:[#allocation2 + $0x118] sm:$0xff]
  %vm319 = vcmask 588800
  %v321 = vsel %vm319, %v74, 0
  %323 = vmatpush.msra.mxu0 0.0
  %324 = vmatpush.msra.mxu0 0.0
  %325 = vmatpush.msra.mxu0 0.0
  %326 = vmatpush.msra.mxu0 0.0
  %327 = vmatpush.msra.mxu0 0.0
  %328 = vmatpush.msra.mxu0 0.0
  %329 = vmatpush.msra.mxu0 0.0
  %v330 = vand.u32 %v315, 4294901760
  %331 = vmatpush.msra.mxu0 %v330
  %v332 = vand.u32 %v311, 4294901760
  %333 = vmatpush.msra.mxu0 %v332
  %v334 = vand.u32 %v307, 4294901760
  %335 = vmatpush.msra.mxu0 %v334
  %v336 = vand.u32 %v303, 4294901760
  %337 = vmatpush.msra.mxu0 %v336
  %v338 = vand.u32 %v299, 4294901760
  %339 = vmatpush.msra.mxu0 %v338
  %v340 = vand.u32 %v295, 4294901760
  %341 = vmatpush.msra.mxu0 %v340
  %v342 = vand.u32 %v291, 4294901760
  %343 = vmatpush.msra.mxu0 %v342
  %v344 = vand.u32 %v287, 4294901760
  %345 = vmatpush.msra.mxu0 %v344
  %v346 = vand.u32 %v283, 4294901760
  %347 = vmatpush.msra.mxu0 %v346
  %v348 = vand.u32 %v321, 4294901760
  %v349 = vsub.f32 %v321, %v348
  %v350 = vand.u32 %v349, 4294901760
  %v351 = vsub.f32 %v349, %v350
  %v352 = vand.u32 %v351, 4294901760
  %353 = vmatmul.f32.gmra.mxu0 %v352
  %v354 = vpop.f32.mrf.mxu0
  %v355 = vadd.f32 %v70, %v354
  %356 = vdwg.mxu0
  %357 = vmatpush.msra.mxu0 0.0
  %358 = vmatpush.msra.mxu0 0.0
  %359 = vmatpush.msra.mxu0 0.0
  %360 = vmatpush.msra.mxu0 0.0
  %361 = vmatpush.msra.mxu0 0.0
  %362 = vmatpush.msra.mxu0 0.0
  %363 = vmatpush.msra.mxu0 0.0
  %v364 = vand.u32 %v315, 4294901760
  %v365 = vsub.f32 %v315, %v364
  %v366 = vand.u32 %v365, 4294901760
  %v367 = vsub.f32 %v365, %v366
  %v368 = vand.u32 %v367, 4294901760
  %369 = vmatpush.msra.mxu0 %v368
  %v370 = vand.u32 %v311, 4294901760
  %v371 = vsub.f32 %v311, %v370
  %v372 = vand.u32 %v371, 4294901760
  %v373 = vsub.f32 %v371, %v372
  %v374 = vand.u32 %v373, 4294901760
  %375 = vmatpush.msra.mxu0 %v374
  %v376 = vand.u32 %v307, 4294901760
  %v377 = vsub.f32 %v307, %v376
  %v378 = vand.u32 %v377, 4294901760
  %v379 = vsub.f32 %v377, %v378
  %v380 = vand.u32 %v379, 4294901760
  %381 = vmatpush.msra.mxu0 %v380
  %v382 = vand.u32 %v303, 4294901760
  %v383 = vsub.f32 %v303, %v382
  %v384 = vand.u32 %v383, 4294901760
  %v385 = vsub.f32 %v383, %v384
  %v386 = vand.u32 %v385, 4294901760
  %387 = vmatpush.msra.mxu0 %v386
  %v388 = vand.u32 %v299, 4294901760
  %v389 = vsub.f32 %v299, %v388
  %v390 = vand.u32 %v389, 4294901760
  %v391 = vsub.f32 %v389, %v390
  %v392 = vand.u32 %v391, 4294901760
  %393 = vmatpush.msra.mxu0 %v392
  %v394 = vand.u32 %v295, 4294901760
  %v395 = vsub.f32 %v295, %v394
  %v396 = vand.u32 %v395, 4294901760
  %v397 = vsub.f32 %v395, %v396
  %v398 = vand.u32 %v397, 4294901760
  %399 = vmatpush.msra.mxu0 %v398
  %v400 = vand.u32 %v291, 4294901760
  %v401 = vsub.f32 %v291, %v400
  %v402 = vand.u32 %v401, 4294901760
  %v403 = vsub.f32 %v401, %v402
  %v404 = vand.u32 %v403, 4294901760
  %405 = vmatpush.msra.mxu0 %v404
  %v406 = vand.u32 %v287, 4294901760
  %v407 = vsub.f32 %v287, %v406
  %v408 = vand.u32 %v407, 4294901760
  %v409 = vsub.f32 %v407, %v408
  %v410 = vand.u32 %v409, 4294901760
  %411 = vmatpush.msra.mxu0 %v410
  %v412 = vand.u32 %v283, 4294901760
  %v413 = vsub.f32 %v283, %v412
  %v414 = vand.u32 %v413, 4294901760
  %v415 = vsub.f32 %v413, %v414
  %v416 = vand.u32 %v415, 4294901760
  %417 = vmatpush.msra.mxu0 %v416
  %v418 = vand.u32 %v321, 4294901760
  %419 = vmatmul.f32.gmra.mxu0 %v418
  %v420 = vpop.f32.mrf.mxu0
  %v421 = vadd.f32 %v355, %v420
  %422 = vdwg.mxu0
  %423 = vmatpush.msra.mxu0 0.0
  %424 = vmatpush.msra.mxu0 0.0
  %425 = vmatpush.msra.mxu0 0.0
  %426 = vmatpush.msra.mxu0 0.0
  %427 = vmatpush.msra.mxu0 0.0
  %428 = vmatpush.msra.mxu0 0.0
  %429 = vmatpush.msra.mxu0 0.0
  %v430 = vand.u32 %v315, 4294901760
  %v431 = vsub.f32 %v315, %v430
  %432 = vmatpush.msra.mxu0 %v431
  %v433 = vand.u32 %v311, 4294901760
  %v434 = vsub.f32 %v311, %v433
  %435 = vmatpush.msra.mxu0 %v434
  %v436 = vand.u32 %v307, 4294901760
  %v437 = vsub.f32 %v307, %v436
  %438 = vmatpush.msra.mxu0 %v437
  %v439 = vand.u32 %v303, 4294901760
  %v440 = vsub.f32 %v303, %v439
  %441 = vmatpush.msra.mxu0 %v440
  %v442 = vand.u32 %v299, 4294901760
  %v443 = vsub.f32 %v299, %v442
  %444 = vmatpush.msra.mxu0 %v443
  %v445 = vand.u32 %v295, 4294901760
  %v446 = vsub.f32 %v295, %v445
  %447 = vmatpush.msra.mxu0 %v446
  %v448 = vand.u32 %v291, 4294901760
  %v449 = vsub.f32 %v291, %v448
  %450 = vmatpush.msra.mxu0 %v449
  %v451 = vand.u32 %v287, 4294901760
  %v452 = vsub.f32 %v287, %v451
  %453 = vmatpush.msra.mxu0 %v452
  %v454 = vand.u32 %v283, 4294901760
  %v455 = vsub.f32 %v283, %v454
  %456 = vmatpush.msra.mxu0 %v455
  %v457 = vand.u32 %v321, 4294901760
  %v458 = vsub.f32 %v321, %v457
  %459 = vmatmul.f32.gmra.mxu0 %v458
  %v460 = vpop.f32.mrf.mxu0
  %v461 = vadd.f32 %v421, %v460
  %462 = vdwg.mxu0
  %463 = vmatpush.msra.mxu0 0.0
  %464 = vmatpush.msra.mxu0 0.0
  %465 = vmatpush.msra.mxu0 0.0
  %466 = vmatpush.msra.mxu0 0.0
  %467 = vmatpush.msra.mxu0 0.0
  %468 = vmatpush.msra.mxu0 0.0
  %469 = vmatpush.msra.mxu0 0.0
  %v470 = vand.u32 %v315, 4294901760
  %471 = vmatpush.msra.mxu0 %v470
  %v472 = vand.u32 %v311, 4294901760
  %473 = vmatpush.msra.mxu0 %v472
  %v474 = vand.u32 %v307, 4294901760
  %475 = vmatpush.msra.mxu0 %v474
  %v476 = vand.u32 %v303, 4294901760
  %477 = vmatpush.msra.mxu0 %v476
  %v478 = vand.u32 %v299, 4294901760
  %479 = vmatpush.msra.mxu0 %v478
  %v480 = vand.u32 %v295, 4294901760
  %481 = vmatpush.msra.mxu0 %v480
  %v482 = vand.u32 %v291, 4294901760
  %483 = vmatpush.msra.mxu0 %v482
  %v484 = vand.u32 %v287, 4294901760
  %485 = vmatpush.msra.mxu0 %v484
  %v486 = vand.u32 %v283, 4294901760
  %487 = vmatpush.msra.mxu0 %v486
  %v488 = vand.u32 %v321, 4294901760
  %v489 = vsub.f32 %v321, %v488
  %v490 = vand.u32 %v489, 4294901760
  %491 = vmatmul.f32.gmra.mxu0 %v490
  %v492 = vpop.f32.mrf.mxu0
  %v493 = vadd.f32 %v461, %v492
  %494 = vdwg.mxu0
  %495 = vmatpush.msra.mxu0 0.0
  %496 = vmatpush.msra.mxu0 0.0
  %497 = vmatpush.msra.mxu0 0.0
  %498 = vmatpush.msra.mxu0 0.0
  %499 = vmatpush.msra.mxu0 0.0
  %500 = vmatpush.msra.mxu0 0.0
  %501 = vmatpush.msra.mxu0 0.0
  %v502 = vand.u32 %v315, 4294901760
  %v503 = vsub.f32 %v315, %v502
  %v504 = vand.u32 %v503, 4294901760
  %505 = vmatpush.msra.mxu0 %v504
  %v506 = vand.u32 %v311, 4294901760
  %v507 = vsub.f32 %v311, %v506
  %v508 = vand.u32 %v507, 4294901760
  %509 = vmatpush.msra.mxu0 %v508
  %v510 = vand.u32 %v307, 4294901760
  %v511 = vsub.f32 %v307, %v510
  %v512 = vand.u32 %v511, 4294901760
  %513 = vmatpush.msra.mxu0 %v512
  %v514 = vand.u32 %v303, 4294901760
  %v515 = vsub.f32 %v303, %v514
  %v516 = vand.u32 %v515, 4294901760
  %517 = vmatpush.msra.mxu0 %v516
  %v518 = vand.u32 %v299, 4294901760
  %v519 = vsub.f32 %v299, %v518
  %v520 = vand.u32 %v519, 4294901760
  %521 = vmatpush.msra.mxu0 %v520
  %v522 = vand.u32 %v295, 4294901760
  %v523 = vsub.f32 %v295, %v522
  %v524 = vand.u32 %v523, 4294901760
  %525 = vmatpush.msra.mxu0 %v524
  %v526 = vand.u32 %v291, 4294901760
  %v527 = vsub.f32 %v291, %v526
  %v528 = vand.u32 %v527, 4294901760
  %529 = vmatpush.msra.mxu0 %v528
  %v530 = vand.u32 %v287, 4294901760
  %v531 = vsub.f32 %v287, %v530
  %v532 = vand.u32 %v531, 4294901760
  %533 = vmatpush.msra.mxu0 %v532
  %v534 = vand.u32 %v283, 4294901760
  %v535 = vsub.f32 %v283, %v534
  %v536 = vand.u32 %v535, 4294901760
  %537 = vmatpush.msra.mxu0 %v536
  %v538 = vand.u32 %v321, 4294901760
  %539 = vmatmul.f32.gmra.mxu0 %v538
  %v540 = vpop.f32.mrf.mxu0
  %v541 = vadd.f32 %v493, %v540
  %542 = vdwg.mxu0
  %543 = vmatpush.msra.mxu0 0.0
  %544 = vmatpush.msra.mxu0 0.0
  %545 = vmatpush.msra.mxu0 0.0
  %546 = vmatpush.msra.mxu0 0.0
  %547 = vmatpush.msra.mxu0 0.0
  %548 = vmatpush.msra.mxu0 0.0
  %549 = vmatpush.msra.mxu0 0.0
  %v550 = vand.u32 %v315, 4294901760
  %551 = vmatpush.msra.mxu0 %v550
  %v552 = vand.u32 %v311, 4294901760
  %553 = vmatpush.msra.mxu0 %v552
  %v554 = vand.u32 %v307, 4294901760
  %555 = vmatpush.msra.mxu0 %v554
  %v556 = vand.u32 %v303, 4294901760
  %557 = vmatpush.msra.mxu0 %v556
  %v558 = vand.u32 %v299, 4294901760
  %559 = vmatpush.msra.mxu0 %v558
  %v560 = vand.u32 %v295, 4294901760
  %561 = vmatpush.msra.mxu0 %v560
  %v562 = vand.u32 %v291, 4294901760
  %563 = vmatpush.msra.mxu0 %v562
  %v564 = vand.u32 %v287, 4294901760
  %565 = vmatpush.msra.mxu0 %v564
  %v566 = vand.u32 %v283, 4294901760
  %567 = vmatpush.msra.mxu0 %v566
  %v568 = vand.u32 %v321, 4294901760
  %569 = vmatmul.f32.gmra.mxu0 %v568
  %v570 = vpop.f32.mrf.mxu0
  %v571 = vadd.f32 %v541, %v570
  %572 = vdwg.mxu0
  %573 = vmatpush.msra.mxu0 0.0
  %574 = vmatpush.msra.mxu0 0.0
  %575 = vmatpush.msra.mxu0 0.0
  %576 = vmatpush.msra.mxu0 0.0
  %577 = vmatpush.msra.mxu0 0.0
  %578 = vmatpush.msra.mxu0 0.0
  %579 = vmatpush.msra.mxu0 0.0
  %v580 = vand.u32 %v316, 4294901760
  %581 = vmatpush.msra.mxu0 %v580
  %v582 = vand.u32 %v312, 4294901760
  %583 = vmatpush.msra.mxu0 %v582
  %v584 = vand.u32 %v308, 4294901760
  %585 = vmatpush.msra.mxu0 %v584
  %v586 = vand.u32 %v304, 4294901760
  %587 = vmatpush.msra.mxu0 %v586
  %v588 = vand.u32 %v300, 4294901760
  %589 = vmatpush.msra.mxu0 %v588
  %v590 = vand.u32 %v296, 4294901760
  %591 = vmatpush.msra.mxu0 %v590
  %v592 = vand.u32 %v292, 4294901760
  %593 = vmatpush.msra.mxu0 %v592
  %v594 = vand.u32 %v288, 4294901760
  %595 = vmatpush.msra.mxu0 %v594
  %v596 = vand.u32 %v284, 4294901760
  %597 = vmatpush.msra.mxu0 %v596
  %v598 = vand.u32 %v321, 4294901760
  %v599 = vsub.f32 %v321, %v598
  %v600 = vand.u32 %v599, 4294901760
  %v601 = vsub.f32 %v599, %v600
  %v602 = vand.u32 %v601, 4294901760
  %603 = vmatmul.f32.gmra.mxu0 %v602
  %v604 = vpop.f32.mrf.mxu0
  %v605 = vadd.f32 %v71, %v604
  %606 = vdwg.mxu0
  %607 = vmatpush.msra.mxu0 0.0
  %608 = vmatpush.msra.mxu0 0.0
  %609 = vmatpush.msra.mxu0 0.0
  %610 = vmatpush.msra.mxu0 0.0
  %611 = vmatpush.msra.mxu0 0.0
  %612 = vmatpush.msra.mxu0 0.0
  %613 = vmatpush.msra.mxu0 0.0
  %v614 = vand.u32 %v316, 4294901760
  %v615 = vsub.f32 %v316, %v614
  %v616 = vand.u32 %v615, 4294901760
  %v617 = vsub.f32 %v615, %v616
  %v618 = vand.u32 %v617, 4294901760
  %619 = vmatpush.msra.mxu0 %v618
  %v620 = vand.u32 %v312, 4294901760
  %v621 = vsub.f32 %v312, %v620
  %v622 = vand.u32 %v621, 4294901760
  %v623 = vsub.f32 %v621, %v622
  %v624 = vand.u32 %v623, 4294901760
  %625 = vmatpush.msra.mxu0 %v624
  %v626 = vand.u32 %v308, 4294901760
  %v627 = vsub.f32 %v308, %v626
  %v628 = vand.u32 %v627, 4294901760
  %v629 = vsub.f32 %v627, %v628
  %v630 = vand.u32 %v629, 4294901760
  %631 = vmatpush.msra.mxu0 %v630
  %v632 = vand.u32 %v304, 4294901760
  %v633 = vsub.f32 %v304, %v632
  %v634 = vand.u32 %v633, 4294901760
  %v635 = vsub.f32 %v633, %v634
  %v636 = vand.u32 %v635, 4294901760
  %637 = vmatpush.msra.mxu0 %v636
  %v638 = vand.u32 %v300, 4294901760
  %v639 = vsub.f32 %v300, %v638
  %v640 = vand.u32 %v639, 4294901760
  %v641 = vsub.f32 %v639, %v640
  %v642 = vand.u32 %v641, 4294901760
  %643 = vmatpush.msra.mxu0 %v642
  %v644 = vand.u32 %v296, 4294901760
  %v645 = vsub.f32 %v296, %v644
  %v646 = vand.u32 %v645, 4294901760
  %v647 = vsub.f32 %v645, %v646
  %v648 = vand.u32 %v647, 4294901760
  %649 = vmatpush.msra.mxu0 %v648
  %v650 = vand.u32 %v292, 4294901760
  %v651 = vsub.f32 %v292, %v650
  %v652 = vand.u32 %v651, 4294901760
  %v653 = vsub.f32 %v651, %v652
  %v654 = vand.u32 %v653, 4294901760
  %655 = vmatpush.msra.mxu0 %v654
  %v656 = vand.u32 %v288, 4294901760
  %v657 = vsub.f32 %v288, %v656
  %v658 = vand.u32 %v657, 4294901760
  %v659 = vsub.f32 %v657, %v658
  %v660 = vand.u32 %v659, 4294901760
  %661 = vmatpush.msra.mxu0 %v660
  %v662 = vand.u32 %v284, 4294901760
  %v663 = vsub.f32 %v284, %v662
  %v664 = vand.u32 %v663, 4294901760
  %v665 = vsub.f32 %v663, %v664
  %v666 = vand.u32 %v665, 4294901760
  %667 = vmatpush.msra.mxu0 %v666
  %v668 = vand.u32 %v321, 4294901760
  %669 = vmatmul.f32.gmra.mxu0 %v668
  %v670 = vpop.f32.mrf.mxu0
  %v671 = vadd.f32 %v605, %v670
  %672 = vdwg.mxu0
  %673 = vmatpush.msra.mxu0 0.0
  %674 = vmatpush.msra.mxu0 0.0
  %675 = vmatpush.msra.mxu0 0.0
  %676 = vmatpush.msra.mxu0 0.0
  %677 = vmatpush.msra.mxu0 0.0
  %678 = vmatpush.msra.mxu0 0.0
  %679 = vmatpush.msra.mxu0 0.0
  %v680 = vand.u32 %v316, 4294901760
  %v681 = vsub.f32 %v316, %v680
  %682 = vmatpush.msra.mxu0 %v681
  %v683 = vand.u32 %v312, 4294901760
  %v684 = vsub.f32 %v312, %v683
  %685 = vmatpush.msra.mxu0 %v684
  %v686 = vand.u32 %v308, 4294901760
  %v687 = vsub.f32 %v308, %v686
  %688 = vmatpush.msra.mxu0 %v687
  %v689 = vand.u32 %v304, 4294901760
  %v690 = vsub.f32 %v304, %v689
  %691 = vmatpush.msra.mxu0 %v690
  %v692 = vand.u32 %v300, 4294901760
  %v693 = vsub.f32 %v300, %v692
  %694 = vmatpush.msra.mxu0 %v693
  %v695 = vand.u32 %v296, 4294901760
  %v696 = vsub.f32 %v296, %v695
  %697 = vmatpush.msra.mxu0 %v696
  %v698 = vand.u32 %v292, 4294901760
  %v699 = vsub.f32 %v292, %v698
  %700 = vmatpush.msra.mxu0 %v699
  %v701 = vand.u32 %v288, 4294901760
  %v702 = vsub.f32 %v288, %v701
  %703 = vmatpush.msra.mxu0 %v702
  %v704 = vand.u32 %v284, 4294901760
  %v705 = vsub.f32 %v284, %v704
  %706 = vmatpush.msra.mxu0 %v705
  %v707 = vand.u32 %v321, 4294901760
  %v708 = vsub.f32 %v321, %v707
  %709 = vmatmul.f32.gmra.mxu0 %v708
  %v710 = vpop.f32.mrf.mxu0
  %v711 = vadd.f32 %v671, %v710
  %712 = vdwg.mxu0
  %713 = vmatpush.msra.mxu0 0.0
  %714 = vmatpush.msra.mxu0 0.0
  %715 = vmatpush.msra.mxu0 0.0
  %716 = vmatpush.msra.mxu0 0.0
  %717 = vmatpush.msra.mxu0 0.0
  %718 = vmatpush.msra.mxu0 0.0
  %719 = vmatpush.msra.mxu0 0.0
  %v720 = vand.u32 %v316, 4294901760
  %721 = vmatpush.msra.mxu0 %v720
  %v722 = vand.u32 %v312, 4294901760
  %723 = vmatpush.msra.mxu0 %v722
  %v724 = vand.u32 %v308, 4294901760
  %725 = vmatpush.msra.mxu0 %v724
  %v726 = vand.u32 %v304, 4294901760
  %727 = vmatpush.msra.mxu0 %v726
  %v728 = vand.u32 %v300, 4294901760
  %729 = vmatpush.msra.mxu0 %v728
  %v730 = vand.u32 %v296, 4294901760
  %731 = vmatpush.msra.mxu0 %v730
  %v732 = vand.u32 %v292, 4294901760
  %733 = vmatpush.msra.mxu0 %v732
  %v734 = vand.u32 %v288, 4294901760
  %735 = vmatpush.msra.mxu0 %v734
  %v736 = vand.u32 %v284, 4294901760
  %737 = vmatpush.msra.mxu0 %v736
  %v738 = vand.u32 %v321, 4294901760
  %v739 = vsub.f32 %v321, %v738
  %v740 = vand.u32 %v739, 4294901760
  %741 = vmatmul.f32.gmra.mxu0 %v740
  %v742 = vpop.f32.mrf.mxu0
  %v743 = vadd.f32 %v711, %v742
  %744 = vdwg.mxu0
  %745 = vmatpush.msra.mxu0 0.0
  %746 = vmatpush.msra.mxu0 0.0
  %747 = vmatpush.msra.mxu0 0.0
  %748 = vmatpush.msra.mxu0 0.0
  %749 = vmatpush.msra.mxu0 0.0
  %750 = vmatpush.msra.mxu0 0.0
  %751 = vmatpush.msra.mxu0 0.0
  %v752 = vand.u32 %v316, 4294901760
  %v753 = vsub.f32 %v316, %v752
  %v754 = vand.u32 %v753, 4294901760
  %755 = vmatpush.msra.mxu0 %v754
  %v756 = vand.u32 %v312, 4294901760
  %v757 = vsub.f32 %v312, %v756
  %v758 = vand.u32 %v757, 4294901760
  %759 = vmatpush.msra.mxu0 %v758
  %v760 = vand.u32 %v308, 4294901760
  %v761 = vsub.f32 %v308, %v760
  %v762 = vand.u32 %v761, 4294901760
  %763 = vmatpush.msra.mxu0 %v762
  %v764 = vand.u32 %v304, 4294901760
  %v765 = vsub.f32 %v304, %v764
  %v766 = vand.u32 %v765, 4294901760
  %767 = vmatpush.msra.mxu0 %v766
  %v768 = vand.u32 %v300, 4294901760
  %v769 = vsub.f32 %v300, %v768
  %v770 = vand.u32 %v769, 4294901760
  %771 = vmatpush.msra.mxu0 %v770
  %v772 = vand.u32 %v296, 4294901760
  %v773 = vsub.f32 %v296, %v772
  %v774 = vand.u32 %v773, 4294901760
  %775 = vmatpush.msra.mxu0 %v774
  %v776 = vand.u32 %v292, 4294901760
  %v777 = vsub.f32 %v292, %v776
  %v778 = vand.u32 %v777, 4294901760
  %779 = vmatpush.msra.mxu0 %v778
  %v780 = vand.u32 %v288, 4294901760
  %v781 = vsub.f32 %v288, %v780
  %v782 = vand.u32 %v781, 4294901760
  %783 = vmatpush.msra.mxu0 %v782
  %v784 = vand.u32 %v284, 4294901760
  %v785 = vsub.f32 %v284, %v784
  %v786 = vand.u32 %v785, 4294901760
  %787 = vmatpush.msra.mxu0 %v786
  %v788 = vand.u32 %v321, 4294901760
  %789 = vmatmul.f32.gmra.mxu0 %v788
  %v790 = vpop.f32.mrf.mxu0
  %v791 = vadd.f32 %v743, %v790
  %792 = vdwg.mxu0
  %793 = vmatpush.msra.mxu0 0.0
  %794 = vmatpush.msra.mxu0 0.0
  %795 = vmatpush.msra.mxu0 0.0
  %796 = vmatpush.msra.mxu0 0.0
  %797 = vmatpush.msra.mxu0 0.0
  %798 = vmatpush.msra.mxu0 0.0
  %799 = vmatpush.msra.mxu0 0.0
  %v800 = vand.u32 %v316, 4294901760
  %801 = vmatpush.msra.mxu0 %v800
  %v802 = vand.u32 %v312, 4294901760
  %803 = vmatpush.msra.mxu0 %v802
  %v804 = vand.u32 %v308, 4294901760
  %805 = vmatpush.msra.mxu0 %v804
  %v806 = vand.u32 %v304, 4294901760
  %807 = vmatpush.msra.mxu0 %v806
  %v808 = vand.u32 %v300, 4294901760
  %809 = vmatpush.msra.mxu0 %v808
  %v810 = vand.u32 %v296, 4294901760
  %811 = vmatpush.msra.mxu0 %v810
  %v812 = vand.u32 %v292, 4294901760
  %813 = vmatpush.msra.mxu0 %v812
  %v814 = vand.u32 %v288, 4294901760
  %815 = vmatpush.msra.mxu0 %v814
  %v816 = vand.u32 %v284, 4294901760
  %817 = vmatpush.msra.mxu0 %v816
  %v818 = vand.u32 %v321, 4294901760
  %819 = vmatmul.f32.gmra.mxu0 %v818
  %v820 = vpop.f32.mrf.mxu0
  %v821 = vadd.f32 %v791, %v820
  %822 = vdwg.mxu0
  %823 = vmatpush.msra.mxu0 0.0
  %824 = vmatpush.msra.mxu0 0.0
  %825 = vmatpush.msra.mxu0 0.0
  %826 = vmatpush.msra.mxu0 0.0
  %827 = vmatpush.msra.mxu0 0.0
  %828 = vmatpush.msra.mxu0 0.0
  %829 = vmatpush.msra.mxu0 0.0
  %v830 = vand.u32 %v317, 4294901760
  %831 = vmatpush.msra.mxu0 %v830
  %v832 = vand.u32 %v313, 4294901760
  %833 = vmatpush.msra.mxu0 %v832
  %v834 = vand.u32 %v309, 4294901760
  %835 = vmatpush.msra.mxu0 %v834
  %v836 = vand.u32 %v305, 4294901760
  %837 = vmatpush.msra.mxu0 %v836
  %v838 = vand.u32 %v301, 4294901760
  %839 = vmatpush.msra.mxu0 %v838
  %v840 = vand.u32 %v297, 4294901760
  %841 = vmatpush.msra.mxu0 %v840
  %v842 = vand.u32 %v293, 4294901760
  %843 = vmatpush.msra.mxu0 %v842
  %v844 = vand.u32 %v289, 4294901760
  %845 = vmatpush.msra.mxu0 %v844
  %v846 = vand.u32 %v285, 4294901760
  %847 = vmatpush.msra.mxu0 %v846
  %v848 = vand.u32 %v321, 4294901760
  %v849 = vsub.f32 %v321, %v848
  %v850 = vand.u32 %v849, 4294901760
  %v851 = vsub.f32 %v849, %v850
  %v852 = vand.u32 %v851, 4294901760
  %853 = vmatmul.f32.gmra.mxu0 %v852
  %v854 = vpop.f32.mrf.mxu0
  %v855 = vadd.f32 %v72, %v854
  %856 = vdwg.mxu0
  %857 = vmatpush.msra.mxu0 0.0
  %858 = vmatpush.msra.mxu0 0.0
  %859 = vmatpush.msra.mxu0 0.0
  %860 = vmatpush.msra.mxu0 0.0
  %861 = vmatpush.msra.mxu0 0.0
  %862 = vmatpush.msra.mxu0 0.0
  %863 = vmatpush.msra.mxu0 0.0
  %v864 = vand.u32 %v317, 4294901760
  %v865 = vsub.f32 %v317, %v864
  %v866 = vand.u32 %v865, 4294901760
  %v867 = vsub.f32 %v865, %v866
  %v868 = vand.u32 %v867, 4294901760
  %869 = vmatpush.msra.mxu0 %v868
  %v870 = vand.u32 %v313, 4294901760
  %v871 = vsub.f32 %v313, %v870
  %v872 = vand.u32 %v871, 4294901760
  %v873 = vsub.f32 %v871, %v872
  %v874 = vand.u32 %v873, 4294901760
  %875 = vmatpush.msra.mxu0 %v874
  %v876 = vand.u32 %v309, 4294901760
  %v877 = vsub.f32 %v309, %v876
  %v878 = vand.u32 %v877, 4294901760
  %v879 = vsub.f32 %v877, %v878
  %v880 = vand.u32 %v879, 4294901760
  %881 = vmatpush.msra.mxu0 %v880
  %v882 = vand.u32 %v305, 4294901760
  %v883 = vsub.f32 %v305, %v882
  %v884 = vand.u32 %v883, 4294901760
  %v885 = vsub.f32 %v883, %v884
  %v886 = vand.u32 %v885, 4294901760
  %887 = vmatpush.msra.mxu0 %v886
  %v888 = vand.u32 %v301, 4294901760
  %v889 = vsub.f32 %v301, %v888
  %v890 = vand.u32 %v889, 4294901760
  %v891 = vsub.f32 %v889, %v890
  %v892 = vand.u32 %v891, 4294901760
  %893 = vmatpush.msra.mxu0 %v892
  %v894 = vand.u32 %v297, 4294901760
  %v895 = vsub.f32 %v297, %v894
  %v896 = vand.u32 %v895, 4294901760
  %v897 = vsub.f32 %v895, %v896
  %v898 = vand.u32 %v897, 4294901760
  %899 = vmatpush.msra.mxu0 %v898
  %v900 = vand.u32 %v293, 4294901760
  %v901 = vsub.f32 %v293, %v900
  %v902 = vand.u32 %v901, 4294901760
  %v903 = vsub.f32 %v901, %v902
  %v904 = vand.u32 %v903, 4294901760
  %905 = vmatpush.msra.mxu0 %v904
  %v906 = vand.u32 %v289, 4294901760
  %v907 = vsub.f32 %v289, %v906
  %v908 = vand.u32 %v907, 4294901760
  %v909 = vsub.f32 %v907, %v908
  %v910 = vand.u32 %v909, 4294901760
  %911 = vmatpush.msra.mxu0 %v910
  %v912 = vand.u32 %v285, 4294901760
  %v913 = vsub.f32 %v285, %v912
  %v914 = vand.u32 %v913, 4294901760
  %v915 = vsub.f32 %v913, %v914
  %v916 = vand.u32 %v915, 4294901760
  %917 = vmatpush.msra.mxu0 %v916
  %v918 = vand.u32 %v321, 4294901760
  %919 = vmatmul.f32.gmra.mxu0 %v918
  %v920 = vpop.f32.mrf.mxu0
  %v921 = vadd.f32 %v855, %v920
  %922 = vdwg.mxu0
  %923 = vmatpush.msra.mxu0 0.0
  %924 = vmatpush.msra.mxu0 0.0
  %925 = vmatpush.msra.mxu0 0.0
  %926 = vmatpush.msra.mxu0 0.0
  %927 = vmatpush.msra.mxu0 0.0
  %928 = vmatpush.msra.mxu0 0.0
  %929 = vmatpush.msra.mxu0 0.0
  %v930 = vand.u32 %v317, 4294901760
  %v931 = vsub.f32 %v317, %v930
  %932 = vmatpush.msra.mxu0 %v931
  %v933 = vand.u32 %v313, 4294901760
  %v934 = vsub.f32 %v313, %v933
  %935 = vmatpush.msra.mxu0 %v934
  %v936 = vand.u32 %v309, 4294901760
  %v937 = vsub.f32 %v309, %v936
  %938 = vmatpush.msra.mxu0 %v937
  %v939 = vand.u32 %v305, 4294901760
  %v940 = vsub.f32 %v305, %v939
  %941 = vmatpush.msra.mxu0 %v940
  %v942 = vand.u32 %v301, 4294901760
  %v943 = vsub.f32 %v301, %v942
  %944 = vmatpush.msra.mxu0 %v943
  %v945 = vand.u32 %v297, 4294901760
  %v946 = vsub.f32 %v297, %v945
  %947 = vmatpush.msra.mxu0 %v946
  %v948 = vand.u32 %v293, 4294901760
  %v949 = vsub.f32 %v293, %v948
  %950 = vmatpush.msra.mxu0 %v949
  %v951 = vand.u32 %v289, 4294901760
  %v952 = vsub.f32 %v289, %v951
  %953 = vmatpush.msra.mxu0 %v952
  %v954 = vand.u32 %v285, 4294901760
  %v955 = vsub.f32 %v285, %v954
  %956 = vmatpush.msra.mxu0 %v955
  %v957 = vand.u32 %v321, 4294901760
  %v958 = vsub.f32 %v321, %v957
  %959 = vmatmul.f32.gmra.mxu0 %v958
  %v960 = vpop.f32.mrf.mxu0
  %v961 = vadd.f32 %v921, %v960
  %962 = vdwg.mxu0
  %963 = vmatpush.msra.mxu0 0.0
  %964 = vmatpush.msra.mxu0 0.0
  %965 = vmatpush.msra.mxu0 0.0
  %966 = vmatpush.msra.mxu0 0.0
  %967 = vmatpush.msra.mxu0 0.0
  %968 = vmatpush.msra.mxu0 0.0
  %969 = vmatpush.msra.mxu0 0.0
  %v970 = vand.u32 %v317, 4294901760
  %971 = vmatpush.msra.mxu0 %v970
  %v972 = vand.u32 %v313, 4294901760
  %973 = vmatpush.msra.mxu0 %v972
  %v974 = vand.u32 %v309, 4294901760
  %975 = vmatpush.msra.mxu0 %v974
  %v976 = vand.u32 %v305, 4294901760
  %977 = vmatpush.msra.mxu0 %v976
  %v978 = vand.u32 %v301, 4294901760
  %979 = vmatpush.msra.mxu0 %v978
  %v980 = vand.u32 %v297, 4294901760
  %981 = vmatpush.msra.mxu0 %v980
  %v982 = vand.u32 %v293, 4294901760
  %983 = vmatpush.msra.mxu0 %v982
  %v984 = vand.u32 %v289, 4294901760
  %985 = vmatpush.msra.mxu0 %v984
  %v986 = vand.u32 %v285, 4294901760
  %987 = vmatpush.msra.mxu0 %v986
  %v988 = vand.u32 %v321, 4294901760
  %v989 = vsub.f32 %v321, %v988
  %v990 = vand.u32 %v989, 4294901760
  %991 = vmatmul.f32.gmra.mxu0 %v990
  %v992 = vpop.f32.mrf.mxu0
  %v993 = vadd.f32 %v961, %v992
  %994 = vdwg.mxu0
  %995 = vmatpush.msra.mxu0 0.0
  %996 = vmatpush.msra.mxu0 0.0
  %997 = vmatpush.msra.mxu0 0.0
  %998 = vmatpush.msra.mxu0 0.0
  %999 = vmatpush.msra.mxu0 0.0
  %1000 = vmatpush.msra.mxu0 0.0
  %1001 = vmatpush.msra.mxu0 0.0
  %v1002 = vand.u32 %v317, 4294901760
  %v1003 = vsub.f32 %v317, %v1002
  %v1004 = vand.u32 %v1003, 4294901760
  %1005 = vmatpush.msra.mxu0 %v1004
  %v1006 = vand.u32 %v313, 4294901760
  %v1007 = vsub.f32 %v313, %v1006
  %v1008 = vand.u32 %v1007, 4294901760
  %1009 = vmatpush.msra.mxu0 %v1008
  %v1010 = vand.u32 %v309, 4294901760
  %v1011 = vsub.f32 %v309, %v1010
  %v1012 = vand.u32 %v1011, 4294901760
  %1013 = vmatpush.msra.mxu0 %v1012
  %v1014 = vand.u32 %v305, 4294901760
  %v1015 = vsub.f32 %v305, %v1014
  %v1016 = vand.u32 %v1015, 4294901760
  %1017 = vmatpush.msra.mxu0 %v1016
  %v1018 = vand.u32 %v301, 4294901760
  %v1019 = vsub.f32 %v301, %v1018
  %v1020 = vand.u32 %v1019, 4294901760
  %1021 = vmatpush.msra.mxu0 %v1020
  %v1022 = vand.u32 %v297, 4294901760
  %v1023 = vsub.f32 %v297, %v1022
  %v1024 = vand.u32 %v1023, 4294901760
  %1025 = vmatpush.msra.mxu0 %v1024
  %v1026 = vand.u32 %v293, 4294901760
  %v1027 = vsub.f32 %v293, %v1026
  %v1028 = vand.u32 %v1027, 4294901760
  %1029 = vmatpush.msra.mxu0 %v1028
  %v1030 = vand.u32 %v289, 4294901760
  %v1031 = vsub.f32 %v289, %v1030
  %v1032 = vand.u32 %v1031, 4294901760
  %1033 = vmatpush.msra.mxu0 %v1032
  %v1034 = vand.u32 %v285, 4294901760
  %v1035 = vsub.f32 %v285, %v1034
  %v1036 = vand.u32 %v1035, 4294901760
  %1037 = vmatpush.msra.mxu0 %v1036
  %v1038 = vand.u32 %v321, 4294901760
  %1039 = vmatmul.f32.gmra.mxu0 %v1038
  %v1040 = vpop.f32.mrf.mxu0
  %v1041 = vadd.f32 %v993, %v1040
  %1042 = vdwg.mxu0
  %1043 = vmatpush.msra.mxu0 0.0
  %1044 = vmatpush.msra.mxu0 0.0
  %1045 = vmatpush.msra.mxu0 0.0
  %1046 = vmatpush.msra.mxu0 0.0
  %1047 = vmatpush.msra.mxu0 0.0
  %1048 = vmatpush.msra.mxu0 0.0
  %1049 = vmatpush.msra.mxu0 0.0
  %v1050 = vand.u32 %v317, 4294901760
  %1051 = vmatpush.msra.mxu0 %v1050
  %v1052 = vand.u32 %v313, 4294901760
  %1053 = vmatpush.msra.mxu0 %v1052
  %v1054 = vand.u32 %v309, 4294901760
  %1055 = vmatpush.msra.mxu0 %v1054
  %v1056 = vand.u32 %v305, 4294901760
  %1057 = vmatpush.msra.mxu0 %v1056
  %v1058 = vand.u32 %v301, 4294901760
  %1059 = vmatpush.msra.mxu0 %v1058
  %v1060 = vand.u32 %v297, 4294901760
  %1061 = vmatpush.msra.mxu0 %v1060
  %v1062 = vand.u32 %v293, 4294901760
  %1063 = vmatpush.msra.mxu0 %v1062
  %v1064 = vand.u32 %v289, 4294901760
  %1065 = vmatpush.msra.mxu0 %v1064
  %v1066 = vand.u32 %v285, 4294901760
  %1067 = vmatpush.msra.mxu0 %v1066
  %v1068 = vand.u32 %v321, 4294901760
  %1069 = vmatmul.f32.gmra.mxu0 %v1068
  %v1070 = vpop.f32.mrf.mxu0
  %v1071 = vadd.f32 %v1041, %v1070
  %1072 = vdwg.mxu0
  %1073 = vmatpush.msra.mxu0 0.0
  %1074 = vmatpush.msra.mxu0 0.0
  %1075 = vmatpush.msra.mxu0 0.0
  %1076 = vmatpush.msra.mxu0 0.0
  %1077 = vmatpush.msra.mxu0 0.0
  %1078 = vmatpush.msra.mxu0 0.0
  %1079 = vmatpush.msra.mxu0 0.0
  %v1080 = vand.u32 %v318, 4294901760
  %1081 = vmatpush.msra.mxu0 %v1080
  %v1082 = vand.u32 %v314, 4294901760
  %1083 = vmatpush.msra.mxu0 %v1082
  %v1084 = vand.u32 %v310, 4294901760
  %1085 = vmatpush.msra.mxu0 %v1084
  %v1086 = vand.u32 %v306, 4294901760
  %1087 = vmatpush.msra.mxu0 %v1086
  %v1088 = vand.u32 %v302, 4294901760
  %1089 = vmatpush.msra.mxu0 %v1088
  %v1090 = vand.u32 %v298, 4294901760
  %1091 = vmatpush.msra.mxu0 %v1090
  %v1092 = vand.u32 %v294, 4294901760
  %1093 = vmatpush.msra.mxu0 %v1092
  %v1094 = vand.u32 %v290, 4294901760
  %1095 = vmatpush.msra.mxu0 %v1094
  %v1096 = vand.u32 %v286, 4294901760
  %1097 = vmatpush.msra.mxu0 %v1096
  %v1098 = vand.u32 %v321, 4294901760
  %v1099 = vsub.f32 %v321, %v1098
  %v1100 = vand.u32 %v1099, 4294901760
  %v1101 = vsub.f32 %v1099, %v1100
  %v1102 = vand.u32 %v1101, 4294901760
  %1103 = vmatmul.f32.gmra.mxu0 %v1102
  %v1104 = vpop.f32.mrf.mxu0
  %v1105 = vadd.f32 %v73, %v1104
  %1106 = vdwg.mxu0
  %1107 = vmatpush.msra.mxu0 0.0
  %1108 = vmatpush.msra.mxu0 0.0
  %1109 = vmatpush.msra.mxu0 0.0
  %1110 = vmatpush.msra.mxu0 0.0
  %1111 = vmatpush.msra.mxu0 0.0
  %1112 = vmatpush.msra.mxu0 0.0
  %1113 = vmatpush.msra.mxu0 0.0
  %v1114 = vand.u32 %v318, 4294901760
  %v1115 = vsub.f32 %v318, %v1114
  %v1116 = vand.u32 %v1115, 4294901760
  %v1117 = vsub.f32 %v1115, %v1116
  %v1118 = vand.u32 %v1117, 4294901760
  %1119 = vmatpush.msra.mxu0 %v1118
  %v1120 = vand.u32 %v314, 4294901760
  %v1121 = vsub.f32 %v314, %v1120
  %v1122 = vand.u32 %v1121, 4294901760
  %v1123 = vsub.f32 %v1121, %v1122
  %v1124 = vand.u32 %v1123, 4294901760
  %1125 = vmatpush.msra.mxu0 %v1124
  %v1126 = vand.u32 %v310, 4294901760
  %v1127 = vsub.f32 %v310, %v1126
  %v1128 = vand.u32 %v1127, 4294901760
  %v1129 = vsub.f32 %v1127, %v1128
  %v1130 = vand.u32 %v1129, 4294901760
  %1131 = vmatpush.msra.mxu0 %v1130
  %v1132 = vand.u32 %v306, 4294901760
  %v1133 = vsub.f32 %v306, %v1132
  %v1134 = vand.u32 %v1133, 4294901760
  %v1135 = vsub.f32 %v1133, %v1134
  %v1136 = vand.u32 %v1135, 4294901760
  %1137 = vmatpush.msra.mxu0 %v1136
  %v1138 = vand.u32 %v302, 4294901760
  %v1139 = vsub.f32 %v302, %v1138
  %v1140 = vand.u32 %v1139, 4294901760
  %v1141 = vsub.f32 %v1139, %v1140
  %v1142 = vand.u32 %v1141, 4294901760
  %1143 = vmatpush.msra.mxu0 %v1142
  %v1144 = vand.u32 %v298, 4294901760
  %v1145 = vsub.f32 %v298, %v1144
  %v1146 = vand.u32 %v1145, 4294901760
  %v1147 = vsub.f32 %v1145, %v1146
  %v1148 = vand.u32 %v1147, 4294901760
  %1149 = vmatpush.msra.mxu0 %v1148
  %v1150 = vand.u32 %v294, 4294901760
  %v1151 = vsub.f32 %v294, %v1150
  %v1152 = vand.u32 %v1151, 4294901760
  %v1153 = vsub.f32 %v1151, %v1152
  %v1154 = vand.u32 %v1153, 4294901760
  %1155 = vmatpush.msra.mxu0 %v1154
  %v1156 = vand.u32 %v290, 4294901760
  %v1157 = vsub.f32 %v290, %v1156
  %v1158 = vand.u32 %v1157, 4294901760
  %v1159 = vsub.f32 %v1157, %v1158
  %v1160 = vand.u32 %v1159, 4294901760
  %1161 = vmatpush.msra.mxu0 %v1160
  %v1162 = vand.u32 %v286, 4294901760
  %v1163 = vsub.f32 %v286, %v1162
  %v1164 = vand.u32 %v1163, 4294901760
  %v1165 = vsub.f32 %v1163, %v1164
  %v1166 = vand.u32 %v1165, 4294901760
  %1167 = vmatpush.msra.mxu0 %v1166
  %v1168 = vand.u32 %v321, 4294901760
  %1169 = vmatmul.f32.gmra.mxu0 %v1168
  %v1170 = vpop.f32.mrf.mxu0
  %v1171 = vadd.f32 %v1105, %v1170
  %1172 = vdwg.mxu0
  %1173 = vmatpush.msra.mxu0 0.0
  %1174 = vmatpush.msra.mxu0 0.0
  %1175 = vmatpush.msra.mxu0 0.0
  %1176 = vmatpush.msra.mxu0 0.0
  %1177 = vmatpush.msra.mxu0 0.0
  %1178 = vmatpush.msra.mxu0 0.0
  %1179 = vmatpush.msra.mxu0 0.0
  %v1180 = vand.u32 %v318, 4294901760
  %v1181 = vsub.f32 %v318, %v1180
  %1182 = vmatpush.msra.mxu0 %v1181
  %v1183 = vand.u32 %v314, 4294901760
  %v1184 = vsub.f32 %v314, %v1183
  %1185 = vmatpush.msra.mxu0 %v1184
  %v1186 = vand.u32 %v310, 4294901760
  %v1187 = vsub.f32 %v310, %v1186
  %1188 = vmatpush.msra.mxu0 %v1187
  %v1189 = vand.u32 %v306, 4294901760
  %v1190 = vsub.f32 %v306, %v1189
  %1191 = vmatpush.msra.mxu0 %v1190
  %v1192 = vand.u32 %v302, 4294901760
  %v1193 = vsub.f32 %v302, %v1192
  %1194 = vmatpush.msra.mxu0 %v1193
  %v1195 = vand.u32 %v298, 4294901760
  %v1196 = vsub.f32 %v298, %v1195
  %1197 = vmatpush.msra.mxu0 %v1196
  %v1198 = vand.u32 %v294, 4294901760
  %v1199 = vsub.f32 %v294, %v1198
  %1200 = vmatpush.msra.mxu0 %v1199
  %v1201 = vand.u32 %v290, 4294901760
  %v1202 = vsub.f32 %v290, %v1201
  %1203 = vmatpush.msra.mxu0 %v1202
  %v1204 = vand.u32 %v286, 4294901760
  %v1205 = vsub.f32 %v286, %v1204
  %1206 = vmatpush.msra.mxu0 %v1205
  %v1207 = vand.u32 %v321, 4294901760
  %v1208 = vsub.f32 %v321, %v1207
  %1209 = vmatmul.f32.gmra.mxu0 %v1208
  %v1210 = vpop.f32.mrf.mxu0
  %v1211 = vadd.f32 %v1171, %v1210
  %1212 = vdwg.mxu0
  %1213 = vmatpush.msra.mxu0 0.0
  %1214 = vmatpush.msra.mxu0 0.0
  %1215 = vmatpush.msra.mxu0 0.0
  %1216 = vmatpush.msra.mxu0 0.0
  %1217 = vmatpush.msra.mxu0 0.0
  %1218 = vmatpush.msra.mxu0 0.0
  %1219 = vmatpush.msra.mxu0 0.0
  %v1220 = vand.u32 %v318, 4294901760
  %1221 = vmatpush.msra.mxu0 %v1220
  %v1222 = vand.u32 %v314, 4294901760
  %1223 = vmatpush.msra.mxu0 %v1222
  %v1224 = vand.u32 %v310, 4294901760
  %1225 = vmatpush.msra.mxu0 %v1224
  %v1226 = vand.u32 %v306, 4294901760
  %1227 = vmatpush.msra.mxu0 %v1226
  %v1228 = vand.u32 %v302, 4294901760
  %1229 = vmatpush.msra.mxu0 %v1228
  %v1230 = vand.u32 %v298, 4294901760
  %1231 = vmatpush.msra.mxu0 %v1230
  %v1232 = vand.u32 %v294, 4294901760
  %1233 = vmatpush.msra.mxu0 %v1232
  %v1234 = vand.u32 %v290, 4294901760
  %1235 = vmatpush.msra.mxu0 %v1234
  %v1236 = vand.u32 %v286, 4294901760
  %1237 = vmatpush.msra.mxu0 %v1236
  %v1238 = vand.u32 %v321, 4294901760
  %v1239 = vsub.f32 %v321, %v1238
  %v1240 = vand.u32 %v1239, 4294901760
  %1241 = vmatmul.f32.gmra.mxu0 %v1240
  %v1242 = vpop.f32.mrf.mxu0
  %v1243 = vadd.f32 %v1211, %v1242
  %1244 = vdwg.mxu0
  %1245 = vmatpush.msra.mxu0 0.0
  %1246 = vmatpush.msra.mxu0 0.0
  %1247 = vmatpush.msra.mxu0 0.0
  %1248 = vmatpush.msra.mxu0 0.0
  %1249 = vmatpush.msra.mxu0 0.0
  %1250 = vmatpush.msra.mxu0 0.0
  %1251 = vmatpush.msra.mxu0 0.0
  %v1252 = vand.u32 %v318, 4294901760
  %v1253 = vsub.f32 %v318, %v1252
  %v1254 = vand.u32 %v1253, 4294901760
  %1255 = vmatpush.msra.mxu0 %v1254
  %v1256 = vand.u32 %v314, 4294901760
  %v1257 = vsub.f32 %v314, %v1256
  %v1258 = vand.u32 %v1257, 4294901760
  %1259 = vmatpush.msra.mxu0 %v1258
  %v1260 = vand.u32 %v310, 4294901760
  %v1261 = vsub.f32 %v310, %v1260
  %v1262 = vand.u32 %v1261, 4294901760
  %1263 = vmatpush.msra.mxu0 %v1262
  %v1264 = vand.u32 %v306, 4294901760
  %v1265 = vsub.f32 %v306, %v1264
  %v1266 = vand.u32 %v1265, 4294901760
  %1267 = vmatpush.msra.mxu0 %v1266
  %v1268 = vand.u32 %v302, 4294901760
  %v1269 = vsub.f32 %v302, %v1268
  %v1270 = vand.u32 %v1269, 4294901760
  %1271 = vmatpush.msra.mxu0 %v1270
  %v1272 = vand.u32 %v298, 4294901760
  %v1273 = vsub.f32 %v298, %v1272
  %v1274 = vand.u32 %v1273, 4294901760
  %1275 = vmatpush.msra.mxu0 %v1274
  %v1276 = vand.u32 %v294, 4294901760
  %v1277 = vsub.f32 %v294, %v1276
  %v1278 = vand.u32 %v1277, 4294901760
  %1279 = vmatpush.msra.mxu0 %v1278
  %v1280 = vand.u32 %v290, 4294901760
  %v1281 = vsub.f32 %v290, %v1280
  %v1282 = vand.u32 %v1281, 4294901760
  %1283 = vmatpush.msra.mxu0 %v1282
  %v1284 = vand.u32 %v286, 4294901760
  %v1285 = vsub.f32 %v286, %v1284
  %v1286 = vand.u32 %v1285, 4294901760
  %1287 = vmatpush.msra.mxu0 %v1286
  %v1288 = vand.u32 %v321, 4294901760
  %1289 = vmatmul.f32.gmra.mxu0 %v1288
  %v1290 = vpop.f32.mrf.mxu0
  %v1291 = vadd.f32 %v1243, %v1290
  %1292 = vdwg.mxu0
  %1293 = vmatpush.msra.mxu0 0.0
  %1294 = vmatpush.msra.mxu0 0.0
  %1295 = vmatpush.msra.mxu0 0.0
  %1296 = vmatpush.msra.mxu0 0.0
  %1297 = vmatpush.msra.mxu0 0.0
  %1298 = vmatpush.msra.mxu0 0.0
  %1299 = vmatpush.msra.mxu0 0.0
  %v1300 = vand.u32 %v318, 4294901760
  %1301 = vmatpush.msra.mxu0 %v1300
  %v1302 = vand.u32 %v314, 4294901760
  %1303 = vmatpush.msra.mxu0 %v1302
  %v1304 = vand.u32 %v310, 4294901760
  %1305 = vmatpush.msra.mxu0 %v1304
  %v1306 = vand.u32 %v306, 4294901760
  %1307 = vmatpush.msra.mxu0 %v1306
  %v1308 = vand.u32 %v302, 4294901760
  %1309 = vmatpush.msra.mxu0 %v1308
  %v1310 = vand.u32 %v298, 4294901760
  %1311 = vmatpush.msra.mxu0 %v1310
  %v1312 = vand.u32 %v294, 4294901760
  %1313 = vmatpush.msra.mxu0 %v1312
  %v1314 = vand.u32 %v290, 4294901760
  %1315 = vmatpush.msra.mxu0 %v1314
  %v1316 = vand.u32 %v286, 4294901760
  %1317 = vmatpush.msra.mxu0 %v1316
  %v1318 = vand.u32 %v321, 4294901760
  %1319 = vmatmul.f32.gmra.mxu0 %v1318
  %v1320 = vpop.f32.mrf.mxu0
  %v1321 = vadd.f32 %v1291, %v1320
  %1322 = vdwg.mxu0
  %v1323 = vsel %vm41, %v571, 0.0
  %v1324 = vsel %vm41, %v821, 0.0
  %v1325 = vadd.f32 %v1323, %v1324
  %v1326 = vsel %vm41, %v1071, 0.0
  %v1327 = vadd.f32 %v1325, %v1326
  %v1328 = vsel %vm41, %v1321, 0.0
  %v1329 = vadd.f32 %v1327, %v1328
  %1330 = vadd.xlane.f32.xlu0 %v1329
  %v1331 = vpop.xlane.xlu0 %1330
  %v1332 = vmul.f32 %v1331, 0.001953125
  %v1333 = vsub.f32 %v571, %v1332
  %v1334 = vsub.f32 %v821, %v1332
  %v1335 = vsub.f32 %v1071, %v1332
  %v1336 = vsub.f32 %v1321, %v1332
  %v1337 = vmul.f32 %v1333, %v1333
  %v1338 = vmul.f32 %v1334, %v1334
  %v1339 = vmul.f32 %v1335, %v1335
  %v1340 = vmul.f32 %v1336, %v1336
  %v1341 = vsel %vm41, %v1337, 0.0
  %v1342 = vsel %vm41, %v1338, 0.0
  %v1343 = vadd.f32 %v1341, %v1342
  %v1344 = vsel %vm41, %v1339, 0.0
  %v1345 = vadd.f32 %v1343, %v1344
  %v1346 = vsel %vm41, %v1340, 0.0
  %v1347 = vadd.f32 %v1345, %v1346
  %1348 = vadd.xlane.f32.xlu0 %v1347
  %v1349 = vpop.xlane.xlu0 %1348
  %v1350 = vmul.f32 %v1349, 0.001953125
  %v1351 = vadd.f32 %v1350, 1e-05
  %v1352 = vrsqrt.pop %v1351
  %v1353 = vmul.f32 %v1352, %v1351
  %v1354 = vmul.f32 %v1353, %v1352
  %v1355 = vmul.f32 0.5, %v1354
  %v1356 = vsub.f32 1.5, %v1355
  %v1357 = vmul.f32 %v1352, %v1356
  %vm1358 = vweird.f32 %v1351
  %vm1359 = vweird.f32 %v1352
  %vm1360 = vmor %vm1358, %vm1359
  %v1361 = vsel %vm1360, %v1352, %v1357
  %v1362 = vmul.f32 %v1333, %v1361
  %v1363 = vmul.f32 %v1334, %v1361
  %v1364 = vmul.f32 %v1335, %v1361
  %v1365 = vmul.f32 %v1336, %v1361
  %1367 = vset.pattern.permute.xlu0 0
  %1368 = vperm.xlu0 %1367, %v75
  %v1369 = vpop.permute.xlu0 %1368
  %v1371 = vmul.f32 %v1362, %v1369
  %v1372 = vmul.f32 %v1363, %v1369
  %v1373 = vmul.f32 %v1364, %v1369
  %v1374 = vmul.f32 %v1365, %v1369
  %1376 = vset.pattern.permute.xlu0 0
  %1377 = vperm.xlu0 %1376, %v76
  %v1378 = vpop.permute.xlu0 %1377
  %v1380 = vadd.f32 %v1371, %v1378
  %v1381 = vadd.f32 %v1372, %v1378
  %v1382 = vadd.f32 %v1373, %v1378
  %v1383 = vadd.f32 %v1374, %v1378
  %v1384 = vsub.f32 0.5, %v1380
  %v1385 = vsub.f32 0.5, %v1381
  %v1386 = vsub.f32 0.5, %v1382
  %v1387 = vsub.f32 0.5, %v1383
  %v1388 = vsub.f32 0.0, %v1384
  %v1389 = vsub.f32 0.0, %v1385
  %v1390 = vsub.f32 0.0, %v1386
  %v1391 = vsub.f32 0.0, %v1387
  %v1392 = vxor.u32 %v1388, 2147483648
  %v1393 = vxor.u32 %v1389, 2147483648
  %v1394 = vxor.u32 %v1390, 2147483648
  %v1395 = vxor.u32 %v1391, 2147483648
  %v1396 = vmul.f32 %v1392, 1.442695
  %v1397 = vpow.pop %v1396
  %v1398 = vmul.f32 %v1393, 1.442695
  %v1399 = vpow.pop %v1398
  %v1400 = vmul.f32 %v1394, 1.442695
  %v1401 = vpow.pop %v1400
  %v1402 = vmul.f32 %v1395, 1.442695
  %v1403 = vpow.pop %v1402
  %v1404 = vadd.f32 %v1397, 1.0
  %v1405 = vadd.f32 %v1399, 1.0
  %v1406 = vadd.f32 %v1401, 1.0
  %v1407 = vadd.f32 %v1403, 1.0
  %v1408 = vrcp.pop %v1404
  %v1409 = vmul.f32 %v1404, %v1408
  %v1410 = vsub.f32 1.0, %v1409
  %v1411 = vmul.f32 %v1408, %v1410
  %v1412 = vadd.f32 %v1408, %v1411
  %vm1413 = vweird.f32 %v1404
  %vm1414 = vweird.f32 %v1408
  %vm1415 = vmor %vm1413, %vm1414
  %v1416 = vsel %vm1415, %v1408, %v1412
  %v1417 = vand.u32 2147483647, %v1404
  %vm1418 = vcmp.eq.f32.partialorder %v1417, 8.507059e+37
  %v1419 = vand.u32 %v1404, 2147483648
  %v1420 = vor.u32 1.1754944e-38, %v1419
  %v1421 = vsel %vm1418, %v1420, %v1416
  %v1422 = vmul.f32 1.0, %v1421
  %v1423 = vrcp.pop %v1405
  %v1424 = vmul.f32 %v1405, %v1423
  %v1425 = vsub.f32 1.0, %v1424
  %v1426 = vmul.f32 %v1423, %v1425
  %v1427 = vadd.f32 %v1423, %v1426
  %vm1428 = vweird.f32 %v1405
  %vm1429 = vweird.f32 %v1423
  %vm1430 = vmor %vm1428, %vm1429
  %v1431 = vsel %vm1430, %v1423, %v1427
  %v1432 = vand.u32 2147483647, %v1405
  %vm1433 = vcmp.eq.f32.partialorder %v1432, 8.507059e+37
  %v1434 = vand.u32 %v1405, 2147483648
  %v1435 = vor.u32 1.1754944e-38, %v1434
  %v1436 = vsel %vm1433, %v1435, %v1431
  %v1437 = vmul.f32 1.0, %v1436
  %v1438 = vrcp.pop %v1406
  %v1439 = vmul.f32 %v1406, %v1438
  %v1440 = vsub.f32 1.0, %v1439
  %v1441 = vmul.f32 %v1438, %v1440
  %v1442 = vadd.f32 %v1438, %v1441
  %vm1443 = vweird.f32 %v1406
  %vm1444 = vweird.f32 %v1438
  %vm1445 = vmor %vm1443, %vm1444
  %v1446 = vsel %vm1445, %v1438, %v1442
  %v1447 = vand.u32 2147483647, %v1406
  %vm1448 = vcmp.eq.f32.partialorder %v1447, 8.507059e+37
  %v1449 = vand.u32 %v1406, 2147483648
  %v1450 = vor.u32 1.1754944e-38, %v1449
  %v1451 = vsel %vm1448, %v1450, %v1446
  %v1452 = vmul.f32 1.0, %v1451
  %v1453 = vrcp.pop %v1407
  %v1454 = vmul.f32 %v1407, %v1453
  %v1455 = vsub.f32 1.0, %v1454
  %v1456 = vmul.f32 %v1453, %v1455
  %v1457 = vadd.f32 %v1453, %v1456
  %vm1458 = vweird.f32 %v1407
  %vm1459 = vweird.f32 %v1453
  %vm1460 = vmor %vm1458, %vm1459
  %v1461 = vsel %vm1460, %v1453, %v1457
  %v1462 = vand.u32 2147483647, %v1407
  %vm1463 = vcmp.eq.f32.partialorder %v1462, 8.507059e+37
  %v1464 = vand.u32 %v1407, 2147483648
  %v1465 = vor.u32 1.1754944e-38, %v1464
  %v1466 = vsel %vm1463, %v1465, %v1461
  %v1467 = vmul.f32 1.0, %v1466
  %v1468 = vmul.f32 %v1422, 0.8
  %v1469 = vmul.f32 %v1437, 0.8
  %v1470 = vmul.f32 %v1452, 0.8
  %v1471 = vmul.f32 %v1467, 0.8
  %v1472 = vadd.f32 %v1468, 0.1
  %v1473 = vadd.f32 %v1469, 0.1
  %v1474 = vadd.f32 %v1470, 0.1
  %v1475 = vadd.f32 %v1471, 0.1
  %v1476 = vsub.f32 %v1472, %v1380
  %v1477 = vsub.f32 %v1473, %v1381
  %v1478 = vsub.f32 %v1474, %v1382
  %v1479 = vsub.f32 %v1475, %v1383
  %v1480 = vsub.f32 0.0, %v1476
  %v1481 = vsub.f32 0.0, %v1477
  %v1482 = vsub.f32 0.0, %v1478
  %v1483 = vsub.f32 0.0, %v1479
  %v1484 = vxor.u32 %v1480, 2147483648
  %v1485 = vxor.u32 %v1481, 2147483648
  %v1486 = vxor.u32 %v1482, 2147483648
  %v1487 = vxor.u32 %v1483, 2147483648
  %v1488 = vmul.f32 %v1484, 1.442695
  %v1489 = vpow.pop %v1488
  %v1490 = vmul.f32 %v1485, 1.442695
  %v1491 = vpow.pop %v1490
  %v1492 = vmul.f32 %v1486, 1.442695
  %v1493 = vpow.pop %v1492
  %v1494 = vmul.f32 %v1487, 1.442695
  %v1495 = vpow.pop %v1494
  %v1496 = vadd.f32 %v1489, 1.0
  %v1497 = vadd.f32 %v1491, 1.0
  %v1498 = vadd.f32 %v1493, 1.0
  %v1499 = vadd.f32 %v1495, 1.0
  %v1500 = vrcp.pop %v1496
  %v1501 = vmul.f32 %v1496, %v1500
  %v1502 = vsub.f32 1.0, %v1501
  %v1503 = vmul.f32 %v1500, %v1502
  %v1504 = vadd.f32 %v1500, %v1503
  %vm1505 = vweird.f32 %v1496
  %vm1506 = vweird.f32 %v1500
  %vm1507 = vmor %vm1505, %vm1506
  %v1508 = vsel %vm1507, %v1500, %v1504
  %v1509 = vand.u32 2147483647, %v1496
  %vm1510 = vcmp.eq.f32.partialorder %v1509, 8.507059e+37
  %v1511 = vand.u32 %v1496, 2147483648
  %v1512 = vor.u32 1.1754944e-38, %v1511
  %v1513 = vsel %vm1510, %v1512, %v1508
  %v1514 = vmul.f32 1.0, %v1513
  %v1515 = vrcp.pop %v1497
  %v1516 = vmul.f32 %v1497, %v1515
  %v1517 = vsub.f32 1.0, %v1516
  %v1518 = vmul.f32 %v1515, %v1517
  %v1519 = vadd.f32 %v1515, %v1518
  %vm1520 = vweird.f32 %v1497
  %vm1521 = vweird.f32 %v1515
  %vm1522 = vmor %vm1520, %vm1521
  %v1523 = vsel %vm1522, %v1515, %v1519
  %v1524 = vand.u32 2147483647, %v1497
  %vm1525 = vcmp.eq.f32.partialorder %v1524, 8.507059e+37
  %v1526 = vand.u32 %v1497, 2147483648
  %v1527 = vor.u32 1.1754944e-38, %v1526
  %v1528 = vsel %vm1525, %v1527, %v1523
  %v1529 = vmul.f32 1.0, %v1528
  %v1530 = vrcp.pop %v1498
  %v1531 = vmul.f32 %v1498, %v1530
  %v1532 = vsub.f32 1.0, %v1531
  %v1533 = vmul.f32 %v1530, %v1532
  %v1534 = vadd.f32 %v1530, %v1533
  %vm1535 = vweird.f32 %v1498
  %vm1536 = vweird.f32 %v1530
  %vm1537 = vmor %vm1535, %vm1536
  %v1538 = vsel %vm1537, %v1530, %v1534
  %v1539 = vand.u32 2147483647, %v1498
  %vm1540 = vcmp.eq.f32.partialorder %v1539, 8.507059e+37
  %v1541 = vand.u32 %v1498, 2147483648
  %v1542 = vor.u32 1.1754944e-38, %v1541
  %v1543 = vsel %vm1540, %v1542, %v1538
  %v1544 = vmul.f32 1.0, %v1543
  %v1545 = vrcp.pop %v1499
  %v1546 = vmul.f32 %v1499, %v1545
  %v1547 = vsub.f32 1.0, %v1546
  %v1548 = vmul.f32 %v1545, %v1547
  %v1549 = vadd.f32 %v1545, %v1548
  %vm1550 = vweird.f32 %v1499
  %vm1551 = vweird.f32 %v1545
  %vm1552 = vmor %vm1550, %vm1551
  %v1553 = vsel %vm1552, %v1545, %v1549
  %v1554 = vand.u32 2147483647, %v1499
  %vm1555 = vcmp.eq.f32.partialorder %v1554, 8.507059e+37
  %v1556 = vand.u32 %v1499, 2147483648
  %v1557 = vor.u32 1.1754944e-38, %v1556
  %v1558 = vsel %vm1555, %v1557, %v1553
  %v1559 = vmul.f32 1.0, %v1558
  %v1560 = vmul.f32 %v1472, 0.2
  %v1561 = vmul.f32 %v1473, 0.2
  %v1562 = vmul.f32 %v1474, 0.2
  %v1563 = vmul.f32 %v1475, 0.2
  %v1564 = vmul.f32 %v1514, 0.8
  %v1565 = vmul.f32 %v1529, 0.8
  %v1566 = vmul.f32 %v1544, 0.8
  %v1567 = vmul.f32 %v1559, 0.8
  %v1568 = vadd.f32 %v1560, %v1564
  %v1569 = vadd.f32 %v1561, %v1565
  %v1570 = vadd.f32 %v1562, %v1566
  %v1571 = vadd.f32 %v1563, %v1567
  %v1572 = vsel %vm41, %v1568, 0.0
  %v1573 = vrot.slane %v1572, 4
  %v1574 = vadd.f32 %v1572, %v1573
  %v1575 = vrot.slane %v1574, 2
  %v1576 = vadd.f32 %v1574, %v1575
  %v1577 = vrot.slane %v1576, 1
  %v1578 = vadd.f32 %v1576, %v1577
  %v1579 = vsel %vm41, %v1569, 0.0
  %v1580 = vrot.slane %v1579, 4
  %v1581 = vadd.f32 %v1579, %v1580
  %v1582 = vrot.slane %v1581, 2
  %v1583 = vadd.f32 %v1581, %v1582
  %v1584 = vrot.slane %v1583, 1
  %v1585 = vadd.f32 %v1583, %v1584
  %v1586 = vsel %vm41, %v1570, 0.0
  %v1587 = vrot.slane %v1586, 4
  %v1588 = vadd.f32 %v1586, %v1587
  %v1589 = vrot.slane %v1588, 2
  %v1590 = vadd.f32 %v1588, %v1589
  %v1591 = vrot.slane %v1590, 1
  %v1592 = vadd.f32 %v1590, %v1591
  %v1593 = vsel %vm41, %v1571, 0.0
  %v1594 = vrot.slane %v1593, 4
  %v1595 = vadd.f32 %v1593, %v1594
  %v1596 = vrot.slane %v1595, 2
  %v1597 = vadd.f32 %v1595, %v1596
  %v1598 = vrot.slane %v1597, 1
  %v1599 = vadd.f32 %v1597, %v1598
  %v1600 = vmul.f32 %v1578, 0.25
  %v1601 = vmul.f32 %v1585, 0.25
  %v1602 = vmul.f32 %v1592, 0.25
  %v1603 = vmul.f32 %v1599, 0.25
  %v1604 = vld [vmem:[%s5] sm:$0xf]
  %v1605 = vld [vmem:[%s6] sm:$0xf]
  %v1606 = vld [vmem:[%s7] sm:$0xf]
  %1607 = vrot.lane.b32.xlu0 %v1572, 17
  %v1608 = vpop.permute.xlu0 %1607
  %1609 = vrot.lane.b32.xlu0 %v1579, 17
  %v1610 = vpop.permute.xlu0 %1609
  %1611 = vrot.lane.b32.xlu0 %v1586, 17
  %v1612 = vpop.permute.xlu0 %1611
  %1613 = vrot.lane.b32.xlu0 %v1593, 17
  %v1614 = vpop.permute.xlu0 %1613
  %v1615 = vsel %vm87, %v1612, %v1614
  %v1616 = vsel %vm87, %v1610, %v1612
  %v1617 = vsel %vm87, %v1608, %v1610
  %v1618 = vsel %vm87, %v1614, %v1608
  %v1619 = vmul.f32 %v1618, %v92
  %v1620 = vmul.f32 %v1617, %v93
  %v1621 = vmul.f32 %v1616, %v94
  %v1622 = vmul.f32 %v1615, %v95
  %1623 = vst [vmem:[#allocation2] sm:$0xff] %v1619
  %1624 = vst [vmem:[#allocation2 + $0x8] sm:$0xff] %v1620
  %1625 = vst [vmem:[#allocation2 + $0x10] sm:$0xff] %v1621
  %1626 = vst [vmem:[#allocation2 + $0x18] sm:$0xff] %v1622
  %1627 = vrot.lane.b32.xlu0 %v1572, 16
  %v1628 = vpop.permute.xlu0 %1627
  %1629 = vrot.lane.b32.xlu0 %v1579, 16
  %v1630 = vpop.permute.xlu0 %1629
  %1631 = vrot.lane.b32.xlu0 %v1586, 16
  %v1632 = vpop.permute.xlu0 %1631
  %1633 = vrot.lane.b32.xlu0 %v1593, 16
  %v1634 = vpop.permute.xlu0 %1633
  %v1635 = vsel %vm112, %v1632, %v1634
  %v1636 = vsel %vm112, %v1630, %v1632
  %v1637 = vsel %vm112, %v1628, %v1630
  %v1638 = vsel %vm112, %v1634, %v1628
  %v1639 = vmul.f32 %v1638, %v117
  %v1640 = vmul.f32 %v1637, %v118
  %v1641 = vmul.f32 %v1636, %v119
  %v1642 = vmul.f32 %v1635, %v120
  %1643 = vst [vmem:[#allocation2 + $0x20] sm:$0xff] %v1639
  %1644 = vst [vmem:[#allocation2 + $0x28] sm:$0xff] %v1640
  %1645 = vst [vmem:[#allocation2 + $0x30] sm:$0xff] %v1641
  %1646 = vst [vmem:[#allocation2 + $0x38] sm:$0xff] %v1642
  %1647 = vrot.lane.b32.xlu0 %v1572, 15
  %v1648 = vpop.permute.xlu0 %1647
  %1649 = vrot.lane.b32.xlu0 %v1579, 15
  %v1650 = vpop.permute.xlu0 %1649
  %1651 = vrot.lane.b32.xlu0 %v1586, 15
  %v1652 = vpop.permute.xlu0 %1651
  %1653 = vrot.lane.b32.xlu0 %v1593, 15
  %v1654 = vpop.permute.xlu0 %1653
  %v1655 = vsel %vm137, %v1652, %v1654
  %v1656 = vsel %vm137, %v1650, %v1652
  %v1657 = vsel %vm137, %v1648, %v1650
  %v1658 = vsel %vm137, %v1654, %v1648
  %v1659 = vmul.f32 %v1658, %v142
  %v1660 = vmul.f32 %v1657, %v143
  %v1661 = vmul.f32 %v1656, %v144
  %v1662 = vmul.f32 %v1655, %v145
  %1663 = vst [vmem:[#allocation2 + $0x40] sm:$0xff] %v1659
  %1664 = vst [vmem:[#allocation2 + $0x48] sm:$0xff] %v1660
  %1665 = vst [vmem:[#allocation2 + $0x50] sm:$0xff] %v1661
  %1666 = vst [vmem:[#allocation2 + $0x58] sm:$0xff] %v1662
  %1667 = vrot.lane.b32.xlu0 %v1572, 1
  %v1668 = vpop.permute.xlu0 %1667
  %1669 = vrot.lane.b32.xlu0 %v1579, 1
  %v1670 = vpop.permute.xlu0 %1669
  %1671 = vrot.lane.b32.xlu0 %v1586, 1
  %v1672 = vpop.permute.xlu0 %1671
  %1673 = vrot.lane.b32.xlu0 %v1593, 1
  %v1674 = vpop.permute.xlu0 %1673
  %v1675 = vsel %vm162, %v1672, %v1674
  %v1676 = vsel %vm162, %v1670, %v1672
  %v1677 = vsel %vm162, %v1668, %v1670
  %v1678 = vsel %vm162, %v1674, %v1668
  %v1679 = vmul.f32 %v1678, %v167
  %v1680 = vmul.f32 %v1677, %v168
  %v1681 = vmul.f32 %v1676, %v169
  %v1682 = vmul.f32 %v1675, %v170
  %1683 = vst [vmem:[#allocation2 + $0x60] sm:$0xff] %v1679
  %1684 = vst [vmem:[#allocation2 + $0x68] sm:$0xff] %v1680
  %1685 = vst [vmem:[#allocation2 + $0x70] sm:$0xff] %v1681
  %1686 = vst [vmem:[#allocation2 + $0x78] sm:$0xff] %v1682
  %1687 = vst [vmem:[#allocation2 + $0x80] sm:$0xff] %v1572
  %1688 = vst [vmem:[#allocation2 + $0x88] sm:$0xff] %v1579
  %1689 = vst [vmem:[#allocation2 + $0x90] sm:$0xff] %v1586
  %1690 = vst [vmem:[#allocation2 + $0x98] sm:$0xff] %v1593
  %1691 = vrot.lane.b32.xlu0 %v1572, 127
  %v1692 = vpop.permute.xlu0 %1691
  %1693 = vrot.lane.b32.xlu0 %v1579, 127
  %v1694 = vpop.permute.xlu0 %1693
  %1695 = vrot.lane.b32.xlu0 %v1586, 127
  %v1696 = vpop.permute.xlu0 %1695
  %1697 = vrot.lane.b32.xlu0 %v1593, 127
  %v1698 = vpop.permute.xlu0 %1697
  %v1699 = vsel %vm191, %v1696, %v1698
  %v1700 = vsel %vm191, %v1694, %v1696
  %v1701 = vsel %vm191, %v1692, %v1694
  %v1702 = vsel %vm191, %v1698, %v1692
  %v1703 = vmul.f32 %v1701, %v196
  %v1704 = vmul.f32 %v1700, %v197
  %v1705 = vmul.f32 %v1699, %v198
  %v1706 = vmul.f32 %v1702, %v199
  %1707 = vst [vmem:[#allocation2 + $0xa0] sm:$0xff] %v1703
  %1708 = vst [vmem:[#allocation2 + $0xa8] sm:$0xff] %v1704
  %1709 = vst [vmem:[#allocation2 + $0xb0] sm:$0xff] %v1705
  %1710 = vst [vmem:[#allocation2 + $0xb8] sm:$0xff] %v1706
  %1711 = vrot.lane.b32.xlu0 %v1572, 113
  %v1712 = vpop.permute.xlu0 %1711
  %1713 = vrot.lane.b32.xlu0 %v1579, 113
  %v1714 = vpop.permute.xlu0 %1713
  %1715 = vrot.lane.b32.xlu0 %v1586, 113
  %v1716 = vpop.permute.xlu0 %1715
  %1717 = vrot.lane.b32.xlu0 %v1593, 113
  %v1718 = vpop.permute.xlu0 %1717
  %v1719 = vsel %vm216, %v1716, %v1718
  %v1720 = vsel %vm216, %v1714, %v1716
  %v1721 = vsel %vm216, %v1712, %v1714
  %v1722 = vsel %vm216, %v1718, %v1712
  %v1723 = vmul.f32 %v1721, %v221
  %v1724 = vmul.f32 %v1720, %v222
  %v1725 = vmul.f32 %v1719, %v223
  %v1726 = vmul.f32 %v1722, %v224
  %1727 = vst [vmem:[#allocation2 + $0xc0] sm:$0xff] %v1723
  %1728 = vst [vmem:[#allocation2 + $0xc8] sm:$0xff] %v1724
  %1729 = vst [vmem:[#allocation2 + $0xd0] sm:$0xff] %v1725
  %1730 = vst [vmem:[#allocation2 + $0xd8] sm:$0xff] %v1726
  %1731 = vrot.lane.b32.xlu0 %v1572, 112
  %v1732 = vpop.permute.xlu0 %1731
  %1733 = vrot.lane.b32.xlu0 %v1579, 112
  %v1734 = vpop.permute.xlu0 %1733
  %1735 = vrot.lane.b32.xlu0 %v1586, 112
  %v1736 = vpop.permute.xlu0 %1735
  %1737 = vrot.lane.b32.xlu0 %v1593, 112
  %v1738 = vpop.permute.xlu0 %1737
  %v1739 = vsel %vm241, %v1736, %v1738
  %v1740 = vsel %vm241, %v1734, %v1736
  %v1741 = vsel %vm241, %v1732, %v1734
  %v1742 = vsel %vm241, %v1738, %v1732
  %v1743 = vmul.f32 %v1741, %v246
  %v1744 = vmul.f32 %v1740, %v247
  %v1745 = vmul.f32 %v1739, %v248
  %v1746 = vmul.f32 %v1742, %v249
  %1747 = vst [vmem:[#allocation2 + $0xe0] sm:$0xff] %v1743
  %1748 = vst [vmem:[#allocation2 + $0xe8] sm:$0xff] %v1744
  %1749 = vst [vmem:[#allocation2 + $0xf0] sm:$0xff] %v1745
  %1750 = vst [vmem:[#allocation2 + $0xf8] sm:$0xff] %v1746
  %1751 = vrot.lane.b32.xlu0 %v1572, 111
  %v1752 = vpop.permute.xlu0 %1751
  %1753 = vrot.lane.b32.xlu0 %v1579, 111
  %v1754 = vpop.permute.xlu0 %1753
  %1755 = vrot.lane.b32.xlu0 %v1586, 111
  %v1756 = vpop.permute.xlu0 %1755
  %1757 = vrot.lane.b32.xlu0 %v1593, 111
  %v1758 = vpop.permute.xlu0 %1757
  %v1759 = vsel %vm266, %v1756, %v1758
  %v1760 = vsel %vm266, %v1754, %v1756
  %v1761 = vsel %vm266, %v1752, %v1754
  %v1762 = vsel %vm266, %v1758, %v1752
  %v1763 = vmul.f32 %v1761, %v271
  %v1764 = vmul.f32 %v1760, %v272
  %v1765 = vmul.f32 %v1759, %v273
  %v1766 = vmul.f32 %v1762, %v274
  %1767 = vst [vmem:[#allocation2 + $0x100] sm:$0xff] %v1763
  %1768 = vst [vmem:[#allocation2 + $0x108] sm:$0xff] %v1764
  %1769 = vst [vmem:[#allocation2 + $0x110] sm:$0xff] %v1765
  %1770 = vst [vmem:[#allocation2 + $0x118] sm:$0xff] %v1766
  %v1771 = vld [vmem:[#allocation2] sm:$0xff]
  %v1772 = vld [vmem:[#allocation2 + $0x8] sm:$0xff]
  %v1773 = vld [vmem:[#allocation2 + $0x10] sm:$0xff]
  %v1774 = vld [vmem:[#allocation2 + $0x18] sm:$0xff]
  %v1775 = vld [vmem:[#allocation2 + $0x20] sm:$0xff]
  %v1776 = vld [vmem:[#allocation2 + $0x28] sm:$0xff]
  %v1777 = vld [vmem:[#allocation2 + $0x30] sm:$0xff]
  %v1778 = vld [vmem:[#allocation2 + $0x38] sm:$0xff]
  %v1779 = vld [vmem:[#allocation2 + $0x40] sm:$0xff]
  %v1780 = vld [vmem:[#allocation2 + $0x48] sm:$0xff]
  %v1781 = vld [vmem:[#allocation2 + $0x50] sm:$0xff]
  %v1782 = vld [vmem:[#allocation2 + $0x58] sm:$0xff]
  %v1783 = vld [vmem:[#allocation2 + $0x60] sm:$0xff]
  %v1784 = vld [vmem:[#allocation2 + $0x68] sm:$0xff]
  %v1785 = vld [vmem:[#allocation2 + $0x70] sm:$0xff]
  %v1786 = vld [vmem:[#allocation2 + $0x78] sm:$0xff]
  %v1787 = vld [vmem:[#allocation2 + $0x80] sm:$0xff]
  %v1788 = vld [vmem:[#allocation2 + $0x88] sm:$0xff]
  %v1789 = vld [vmem:[#allocation2 + $0x90] sm:$0xff]
  %v1790 = vld [vmem:[#allocation2 + $0x98] sm:$0xff]
  %v1791 = vld [vmem:[#allocation2 + $0xa0] sm:$0xff]
  %v1792 = vld [vmem:[#allocation2 + $0xa8] sm:$0xff]
  %v1793 = vld [vmem:[#allocation2 + $0xb0] sm:$0xff]
  %v1794 = vld [vmem:[#allocation2 + $0xb8] sm:$0xff]
  %v1795 = vld [vmem:[#allocation2 + $0xc0] sm:$0xff]
  %v1796 = vld [vmem:[#allocation2 + $0xc8] sm:$0xff]
  %v1797 = vld [vmem:[#allocation2 + $0xd0] sm:$0xff]
  %v1798 = vld [vmem:[#allocation2 + $0xd8] sm:$0xff]
  %v1799 = vld [vmem:[#allocation2 + $0xe0] sm:$0xff]
  %v1800 = vld [vmem:[#allocation2 + $0xe8] sm:$0xff]
  %v1801 = vld [vmem:[#allocation2 + $0xf0] sm:$0xff]
  %v1802 = vld [vmem:[#allocation2 + $0xf8] sm:$0xff]
  %v1803 = vld [vmem:[#allocation2 + $0x100] sm:$0xff]
  %v1804 = vld [vmem:[#allocation2 + $0x108] sm:$0xff]
  %v1805 = vld [vmem:[#allocation2 + $0x110] sm:$0xff]
  %v1806 = vld [vmem:[#allocation2 + $0x118] sm:$0xff]
  %v1808 = vsel %vm319, %v1604, 0
  %1810 = vmatpush.msra.mxu0 0.0
  %1811 = vmatpush.msra.mxu0 0.0
  %1812 = vmatpush.msra.mxu0 0.0
  %1813 = vmatpush.msra.mxu0 0.0
  %1814 = vmatpush.msra.mxu0 0.0
  %1815 = vmatpush.msra.mxu0 0.0
  %1816 = vmatpush.msra.mxu0 0.0
  %v1817 = vand.u32 %v1803, 4294901760
  %1818 = vmatpush.msra.mxu0 %v1817
  %v1819 = vand.u32 %v1799, 4294901760
  %1820 = vmatpush.msra.mxu0 %v1819
  %v1821 = vand.u32 %v1795, 4294901760
  %1822 = vmatpush.msra.mxu0 %v1821
  %v1823 = vand.u32 %v1791, 4294901760
  %1824 = vmatpush.msra.mxu0 %v1823
  %v1825 = vand.u32 %v1787, 4294901760
  %1826 = vmatpush.msra.mxu0 %v1825
  %v1827 = vand.u32 %v1783, 4294901760
  %1828 = vmatpush.msra.mxu0 %v1827
  %v1829 = vand.u32 %v1779, 4294901760
  %1830 = vmatpush.msra.mxu0 %v1829
  %v1831 = vand.u32 %v1775, 4294901760
  %1832 = vmatpush.msra.mxu0 %v1831
  %v1833 = vand.u32 %v1771, 4294901760
  %1834 = vmatpush.msra.mxu0 %v1833
  %v1835 = vand.u32 %v1808, 4294901760
  %v1836 = vsub.f32 %v1808, %v1835
  %v1837 = vand.u32 %v1836, 4294901760
  %v1838 = vsub.f32 %v1836, %v1837
  %v1839 = vand.u32 %v1838, 4294901760
  %1840 = vmatmul.f32.gmra.mxu0 %v1839
  %v1841 = vpop.f32.mrf.mxu0
  %v1842 = vadd.f32 %v1600, %v1841
  %1843 = vdwg.mxu0
  %1844 = vmatpush.msra.mxu0 0.0
  %1845 = vmatpush.msra.mxu0 0.0
  %1846 = vmatpush.msra.mxu0 0.0
  %1847 = vmatpush.msra.mxu0 0.0
  %1848 = vmatpush.msra.mxu0 0.0
  %1849 = vmatpush.msra.mxu0 0.0
  %1850 = vmatpush.msra.mxu0 0.0
  %v1851 = vand.u32 %v1803, 4294901760
  %v1852 = vsub.f32 %v1803, %v1851
  %v1853 = vand.u32 %v1852, 4294901760
  %v1854 = vsub.f32 %v1852, %v1853
  %v1855 = vand.u32 %v1854, 4294901760
  %1856 = vmatpush.msra.mxu0 %v1855
  %v1857 = vand.u32 %v1799, 4294901760
  %v1858 = vsub.f32 %v1799, %v1857
  %v1859 = vand.u32 %v1858, 4294901760
  %v1860 = vsub.f32 %v1858, %v1859
  %v1861 = vand.u32 %v1860, 4294901760
  %1862 = vmatpush.msra.mxu0 %v1861
  %v1863 = vand.u32 %v1795, 4294901760
  %v1864 = vsub.f32 %v1795, %v1863
  %v1865 = vand.u32 %v1864, 4294901760
  %v1866 = vsub.f32 %v1864, %v1865
  %v1867 = vand.u32 %v1866, 4294901760
  %1868 = vmatpush.msra.mxu0 %v1867
  %v1869 = vand.u32 %v1791, 4294901760
  %v1870 = vsub.f32 %v1791, %v1869
  %v1871 = vand.u32 %v1870, 4294901760
  %v1872 = vsub.f32 %v1870, %v1871
  %v1873 = vand.u32 %v1872, 4294901760
  %1874 = vmatpush.msra.mxu0 %v1873
  %v1875 = vand.u32 %v1787, 4294901760
  %v1876 = vsub.f32 %v1787, %v1875
  %v1877 = vand.u32 %v1876, 4294901760
  %v1878 = vsub.f32 %v1876, %v1877
  %v1879 = vand.u32 %v1878, 4294901760
  %1880 = vmatpush.msra.mxu0 %v1879
  %v1881 = vand.u32 %v1783, 4294901760
  %v1882 = vsub.f32 %v1783, %v1881
  %v1883 = vand.u32 %v1882, 4294901760
  %v1884 = vsub.f32 %v1882, %v1883
  %v1885 = vand.u32 %v1884, 4294901760
  %1886 = vmatpush.msra.mxu0 %v1885
  %v1887 = vand.u32 %v1779, 4294901760
  %v1888 = vsub.f32 %v1779, %v1887
  %v1889 = vand.u32 %v1888, 4294901760
  %v1890 = vsub.f32 %v1888, %v1889
  %v1891 = vand.u32 %v1890, 4294901760
  %1892 = vmatpush.msra.mxu0 %v1891
  %v1893 = vand.u32 %v1775, 4294901760
  %v1894 = vsub.f32 %v1775, %v1893
  %v1895 = vand.u32 %v1894, 4294901760
  %v1896 = vsub.f32 %v1894, %v1895
  %v1897 = vand.u32 %v1896, 4294901760
  %1898 = vmatpush.msra.mxu0 %v1897
  %v1899 = vand.u32 %v1771, 4294901760
  %v1900 = vsub.f32 %v1771, %v1899
  %v1901 = vand.u32 %v1900, 4294901760
  %v1902 = vsub.f32 %v1900, %v1901
  %v1903 = vand.u32 %v1902, 4294901760
  %1904 = vmatpush.msra.mxu0 %v1903
  %v1905 = vand.u32 %v1808, 4294901760
  %1906 = vmatmul.f32.gmra.mxu0 %v1905
  %v1907 = vpop.f32.mrf.mxu0
  %v1908 = vadd.f32 %v1842, %v1907
  %1909 = vdwg.mxu0
  %1910 = vmatpush.msra.mxu0 0.0
  %1911 = vmatpush.msra.mxu0 0.0
  %1912 = vmatpush.msra.mxu0 0.0
  %1913 = vmatpush.msra.mxu0 0.0
  %1914 = vmatpush.msra.mxu0 0.0
  %1915 = vmatpush.msra.mxu0 0.0
  %1916 = vmatpush.msra.mxu0 0.0
  %v1917 = vand.u32 %v1803, 4294901760
  %v1918 = vsub.f32 %v1803, %v1917
  %1919 = vmatpush.msra.mxu0 %v1918
  %v1920 = vand.u32 %v1799, 4294901760
  %v1921 = vsub.f32 %v1799, %v1920
  %1922 = vmatpush.msra.mxu0 %v1921
  %v1923 = vand.u32 %v1795, 4294901760
  %v1924 = vsub.f32 %v1795, %v1923
  %1925 = vmatpush.msra.mxu0 %v1924
  %v1926 = vand.u32 %v1791, 4294901760
  %v1927 = vsub.f32 %v1791, %v1926
  %1928 = vmatpush.msra.mxu0 %v1927
  %v1929 = vand.u32 %v1787, 4294901760
  %v1930 = vsub.f32 %v1787, %v1929
  %1931 = vmatpush.msra.mxu0 %v1930
  %v1932 = vand.u32 %v1783, 4294901760
  %v1933 = vsub.f32 %v1783, %v1932
  %1934 = vmatpush.msra.mxu0 %v1933
  %v1935 = vand.u32 %v1779, 4294901760
  %v1936 = vsub.f32 %v1779, %v1935
  %1937 = vmatpush.msra.mxu0 %v1936
  %v1938 = vand.u32 %v1775, 4294901760
  %v1939 = vsub.f32 %v1775, %v1938
  %1940 = vmatpush.msra.mxu0 %v1939
  %v1941 = vand.u32 %v1771, 4294901760
  %v1942 = vsub.f32 %v1771, %v1941
  %1943 = vmatpush.msra.mxu0 %v1942
  %v1944 = vand.u32 %v1808, 4294901760
  %v1945 = vsub.f32 %v1808, %v1944
  %1946 = vmatmul.f32.gmra.mxu0 %v1945
  %v1947 = vpop.f32.mrf.mxu0
  %v1948 = vadd.f32 %v1908, %v1947
  %1949 = vdwg.mxu0
  %1950 = vmatpush.msra.mxu0 0.0
  %1951 = vmatpush.msra.mxu0 0.0
  %1952 = vmatpush.msra.mxu0 0.0
  %1953 = vmatpush.msra.mxu0 0.0
  %1954 = vmatpush.msra.mxu0 0.0
  %1955 = vmatpush.msra.mxu0 0.0
  %1956 = vmatpush.msra.mxu0 0.0
  %v1957 = vand.u32 %v1803, 4294901760
  %1958 = vmatpush.msra.mxu0 %v1957
  %v1959 = vand.u32 %v1799, 4294901760
  %1960 = vmatpush.msra.mxu0 %v1959
  %v1961 = vand.u32 %v1795, 4294901760
  %1962 = vmatpush.msra.mxu0 %v1961
  %v1963 = vand.u32 %v1791, 4294901760
  %1964 = vmatpush.msra.mxu0 %v1963
  %v1965 = vand.u32 %v1787, 4294901760
  %1966 = vmatpush.msra.mxu0 %v1965
  %v1967 = vand.u32 %v1783, 4294901760
  %1968 = vmatpush.msra.mxu0 %v1967
  %v1969 = vand.u32 %v1779, 4294901760
  %1970 = vmatpush.msra.mxu0 %v1969
  %v1971 = vand.u32 %v1775, 4294901760
  %1972 = vmatpush.msra.mxu0 %v1971
  %v1973 = vand.u32 %v1771, 4294901760
  %1974 = vmatpush.msra.mxu0 %v1973
  %v1975 = vand.u32 %v1808, 4294901760
  %v1976 = vsub.f32 %v1808, %v1975
  %v1977 = vand.u32 %v1976, 4294901760
  %1978 = vmatmul.f32.gmra.mxu0 %v1977
  %v1979 = vpop.f32.mrf.mxu0
  %v1980 = vadd.f32 %v1948, %v1979
  %1981 = vdwg.mxu0
  %1982 = vmatpush.msra.mxu0 0.0
  %1983 = vmatpush.msra.mxu0 0.0
  %1984 = vmatpush.msra.mxu0 0.0
  %1985 = vmatpush.msra.mxu0 0.0
  %1986 = vmatpush.msra.mxu0 0.0
  %1987 = vmatpush.msra.mxu0 0.0
  %1988 = vmatpush.msra.mxu0 0.0
  %v1989 = vand.u32 %v1803, 4294901760
  %v1990 = vsub.f32 %v1803, %v1989
  %v1991 = vand.u32 %v1990, 4294901760
  %1992 = vmatpush.msra.mxu0 %v1991
  %v1993 = vand.u32 %v1799, 4294901760
  %v1994 = vsub.f32 %v1799, %v1993
  %v1995 = vand.u32 %v1994, 4294901760
  %1996 = vmatpush.msra.mxu0 %v1995
  %v1997 = vand.u32 %v1795, 4294901760
  %v1998 = vsub.f32 %v1795, %v1997
  %v1999 = vand.u32 %v1998, 4294901760
  %2000 = vmatpush.msra.mxu0 %v1999
  %v2001 = vand.u32 %v1791, 4294901760
  %v2002 = vsub.f32 %v1791, %v2001
  %v2003 = vand.u32 %v2002, 4294901760
  %2004 = vmatpush.msra.mxu0 %v2003
  %v2005 = vand.u32 %v1787, 4294901760
  %v2006 = vsub.f32 %v1787, %v2005
  %v2007 = vand.u32 %v2006, 4294901760
  %2008 = vmatpush.msra.mxu0 %v2007
  %v2009 = vand.u32 %v1783, 4294901760
  %v2010 = vsub.f32 %v1783, %v2009
  %v2011 = vand.u32 %v2010, 4294901760
  %2012 = vmatpush.msra.mxu0 %v2011
  %v2013 = vand.u32 %v1779, 4294901760
  %v2014 = vsub.f32 %v1779, %v2013
  %v2015 = vand.u32 %v2014, 4294901760
  %2016 = vmatpush.msra.mxu0 %v2015
  %v2017 = vand.u32 %v1775, 4294901760
  %v2018 = vsub.f32 %v1775, %v2017
  %v2019 = vand.u32 %v2018, 4294901760
  %2020 = vmatpush.msra.mxu0 %v2019
  %v2021 = vand.u32 %v1771, 4294901760
  %v2022 = vsub.f32 %v1771, %v2021
  %v2023 = vand.u32 %v2022, 4294901760
  %2024 = vmatpush.msra.mxu0 %v2023
  %v2025 = vand.u32 %v1808, 4294901760
  %2026 = vmatmul.f32.gmra.mxu0 %v2025
  %v2027 = vpop.f32.mrf.mxu0
  %v2028 = vadd.f32 %v1980, %v2027
  %2029 = vdwg.mxu0
  %2030 = vmatpush.msra.mxu0 0.0
  %2031 = vmatpush.msra.mxu0 0.0
  %2032 = vmatpush.msra.mxu0 0.0
  %2033 = vmatpush.msra.mxu0 0.0
  %2034 = vmatpush.msra.mxu0 0.0
  %2035 = vmatpush.msra.mxu0 0.0
  %2036 = vmatpush.msra.mxu0 0.0
  %v2037 = vand.u32 %v1803, 4294901760
  %2038 = vmatpush.msra.mxu0 %v2037
  %v2039 = vand.u32 %v1799, 4294901760
  %2040 = vmatpush.msra.mxu0 %v2039
  %v2041 = vand.u32 %v1795, 4294901760
  %2042 = vmatpush.msra.mxu0 %v2041
  %v2043 = vand.u32 %v1791, 4294901760
  %2044 = vmatpush.msra.mxu0 %v2043
  %v2045 = vand.u32 %v1787, 4294901760
  %2046 = vmatpush.msra.mxu0 %v2045
  %v2047 = vand.u32 %v1783, 4294901760
  %2048 = vmatpush.msra.mxu0 %v2047
  %v2049 = vand.u32 %v1779, 4294901760
  %2050 = vmatpush.msra.mxu0 %v2049
  %v2051 = vand.u32 %v1775, 4294901760
  %2052 = vmatpush.msra.mxu0 %v2051
  %v2053 = vand.u32 %v1771, 4294901760
  %2054 = vmatpush.msra.mxu0 %v2053
  %v2055 = vand.u32 %v1808, 4294901760
  %2056 = vmatmul.f32.gmra.mxu0 %v2055
  %v2057 = vpop.f32.mrf.mxu0
  %v2058 = vadd.f32 %v2028, %v2057
  %2059 = vdwg.mxu0
  %2060 = vmatpush.msra.mxu0 0.0
  %2061 = vmatpush.msra.mxu0 0.0
  %2062 = vmatpush.msra.mxu0 0.0
  %2063 = vmatpush.msra.mxu0 0.0
  %2064 = vmatpush.msra.mxu0 0.0
  %2065 = vmatpush.msra.mxu0 0.0
  %2066 = vmatpush.msra.mxu0 0.0
  %v2067 = vand.u32 %v1804, 4294901760
  %2068 = vmatpush.msra.mxu0 %v2067
  %v2069 = vand.u32 %v1800, 4294901760
  %2070 = vmatpush.msra.mxu0 %v2069
  %v2071 = vand.u32 %v1796, 4294901760
  %2072 = vmatpush.msra.mxu0 %v2071
  %v2073 = vand.u32 %v1792, 4294901760
  %2074 = vmatpush.msra.mxu0 %v2073
  %v2075 = vand.u32 %v1788, 4294901760
  %2076 = vmatpush.msra.mxu0 %v2075
  %v2077 = vand.u32 %v1784, 4294901760
  %2078 = vmatpush.msra.mxu0 %v2077
  %v2079 = vand.u32 %v1780, 4294901760
  %2080 = vmatpush.msra.mxu0 %v2079
  %v2081 = vand.u32 %v1776, 4294901760
  %2082 = vmatpush.msra.mxu0 %v2081
  %v2083 = vand.u32 %v1772, 4294901760
  %2084 = vmatpush.msra.mxu0 %v2083
  %v2085 = vand.u32 %v1808, 4294901760
  %v2086 = vsub.f32 %v1808, %v2085
  %v2087 = vand.u32 %v2086, 4294901760
  %v2088 = vsub.f32 %v2086, %v2087
  %v2089 = vand.u32 %v2088, 4294901760
  %2090 = vmatmul.f32.gmra.mxu0 %v2089
  %v2091 = vpop.f32.mrf.mxu0
  %v2092 = vadd.f32 %v1601, %v2091
  %2093 = vdwg.mxu0
  %2094 = vmatpush.msra.mxu0 0.0
  %2095 = vmatpush.msra.mxu0 0.0
  %2096 = vmatpush.msra.mxu0 0.0
  %2097 = vmatpush.msra.mxu0 0.0
  %2098 = vmatpush.msra.mxu0 0.0
  %2099 = vmatpush.msra.mxu0 0.0
  %2100 = vmatpush.msra.mxu0 0.0
  %v2101 = vand.u32 %v1804, 4294901760
  %v2102 = vsub.f32 %v1804, %v2101
  %v2103 = vand.u32 %v2102, 4294901760
  %v2104 = vsub.f32 %v2102, %v2103
  %v2105 = vand.u32 %v2104, 4294901760
  %2106 = vmatpush.msra.mxu0 %v2105
  %v2107 = vand.u32 %v1800, 4294901760
  %v2108 = vsub.f32 %v1800, %v2107
  %v2109 = vand.u32 %v2108, 4294901760
  %v2110 = vsub.f32 %v2108, %v2109
  %v2111 = vand.u32 %v2110, 4294901760
  %2112 = vmatpush.msra.mxu0 %v2111
  %v2113 = vand.u32 %v1796, 4294901760
  %v2114 = vsub.f32 %v1796, %v2113
  %v2115 = vand.u32 %v2114, 4294901760
  %v2116 = vsub.f32 %v2114, %v2115
  %v2117 = vand.u32 %v2116, 4294901760
  %2118 = vmatpush.msra.mxu0 %v2117
  %v2119 = vand.u32 %v1792, 4294901760
  %v2120 = vsub.f32 %v1792, %v2119
  %v2121 = vand.u32 %v2120, 4294901760
  %v2122 = vsub.f32 %v2120, %v2121
  %v2123 = vand.u32 %v2122, 4294901760
  %2124 = vmatpush.msra.mxu0 %v2123
  %v2125 = vand.u32 %v1788, 4294901760
  %v2126 = vsub.f32 %v1788, %v2125
  %v2127 = vand.u32 %v2126, 4294901760
  %v2128 = vsub.f32 %v2126, %v2127
  %v2129 = vand.u32 %v2128, 4294901760
  %2130 = vmatpush.msra.mxu0 %v2129
  %v2131 = vand.u32 %v1784, 4294901760
  %v2132 = vsub.f32 %v1784, %v2131
  %v2133 = vand.u32 %v2132, 4294901760
  %v2134 = vsub.f32 %v2132, %v2133
  %v2135 = vand.u32 %v2134, 4294901760
  %2136 = vmatpush.msra.mxu0 %v2135
  %v2137 = vand.u32 %v1780, 4294901760
  %v2138 = vsub.f32 %v1780, %v2137
  %v2139 = vand.u32 %v2138, 4294901760
  %v2140 = vsub.f32 %v2138, %v2139
  %v2141 = vand.u32 %v2140, 4294901760
  %2142 = vmatpush.msra.mxu0 %v2141
  %v2143 = vand.u32 %v1776, 4294901760
  %v2144 = vsub.f32 %v1776, %v2143
  %v2145 = vand.u32 %v2144, 4294901760
  %v2146 = vsub.f32 %v2144, %v2145
  %v2147 = vand.u32 %v2146, 4294901760
  %2148 = vmatpush.msra.mxu0 %v2147
  %v2149 = vand.u32 %v1772, 4294901760
  %v2150 = vsub.f32 %v1772, %v2149
  %v2151 = vand.u32 %v2150, 4294901760
  %v2152 = vsub.f32 %v2150, %v2151
  %v2153 = vand.u32 %v2152, 4294901760
  %2154 = vmatpush.msra.mxu0 %v2153
  %v2155 = vand.u32 %v1808, 4294901760
  %2156 = vmatmul.f32.gmra.mxu0 %v2155
  %v2157 = vpop.f32.mrf.mxu0
  %v2158 = vadd.f32 %v2092, %v2157
  %2159 = vdwg.mxu0
  %2160 = vmatpush.msra.mxu0 0.0
  %2161 = vmatpush.msra.mxu0 0.0
  %2162 = vmatpush.msra.mxu0 0.0
  %2163 = vmatpush.msra.mxu0 0.0
  %2164 = vmatpush.msra.mxu0 0.0
  %2165 = vmatpush.msra.mxu0 0.0
  %2166 = vmatpush.msra.mxu0 0.0
  %v2167 = vand.u32 %v1804, 4294901760
  %v2168 = vsub.f32 %v1804, %v2167
  %2169 = vmatpush.msra.mxu0 %v2168
  %v2170 = vand.u32 %v1800, 4294901760
  %v2171 = vsub.f32 %v1800, %v2170
  %2172 = vmatpush.msra.mxu0 %v2171
  %v2173 = vand.u32 %v1796, 4294901760
  %v2174 = vsub.f32 %v1796, %v2173
  %2175 = vmatpush.msra.mxu0 %v2174
  %v2176 = vand.u32 %v1792, 4294901760
  %v2177 = vsub.f32 %v1792, %v2176
  %2178 = vmatpush.msra.mxu0 %v2177
  %v2179 = vand.u32 %v1788, 4294901760
  %v2180 = vsub.f32 %v1788, %v2179
  %2181 = vmatpush.msra.mxu0 %v2180
  %v2182 = vand.u32 %v1784, 4294901760
  %v2183 = vsub.f32 %v1784, %v2182
  %2184 = vmatpush.msra.mxu0 %v2183
  %v2185 = vand.u32 %v1780, 4294901760
  %v2186 = vsub.f32 %v1780, %v2185
  %2187 = vmatpush.msra.mxu0 %v2186
  %v2188 = vand.u32 %v1776, 4294901760
  %v2189 = vsub.f32 %v1776, %v2188
  %2190 = vmatpush.msra.mxu0 %v2189
  %v2191 = vand.u32 %v1772, 4294901760
  %v2192 = vsub.f32 %v1772, %v2191
  %2193 = vmatpush.msra.mxu0 %v2192
  %v2194 = vand.u32 %v1808, 4294901760
  %v2195 = vsub.f32 %v1808, %v2194
  %2196 = vmatmul.f32.gmra.mxu0 %v2195
  %v2197 = vpop.f32.mrf.mxu0
  %v2198 = vadd.f32 %v2158, %v2197
  %2199 = vdwg.mxu0
  %2200 = vmatpush.msra.mxu0 0.0
  %2201 = vmatpush.msra.mxu0 0.0
  %2202 = vmatpush.msra.mxu0 0.0
  %2203 = vmatpush.msra.mxu0 0.0
  %2204 = vmatpush.msra.mxu0 0.0
  %2205 = vmatpush.msra.mxu0 0.0
  %2206 = vmatpush.msra.mxu0 0.0
  %v2207 = vand.u32 %v1804, 4294901760
  %2208 = vmatpush.msra.mxu0 %v2207
  %v2209 = vand.u32 %v1800, 4294901760
  %2210 = vmatpush.msra.mxu0 %v2209
  %v2211 = vand.u32 %v1796, 4294901760
  %2212 = vmatpush.msra.mxu0 %v2211
  %v2213 = vand.u32 %v1792, 4294901760
  %2214 = vmatpush.msra.mxu0 %v2213
  %v2215 = vand.u32 %v1788, 4294901760
  %2216 = vmatpush.msra.mxu0 %v2215
  %v2217 = vand.u32 %v1784, 4294901760
  %2218 = vmatpush.msra.mxu0 %v2217
  %v2219 = vand.u32 %v1780, 4294901760
  %2220 = vmatpush.msra.mxu0 %v2219
  %v2221 = vand.u32 %v1776, 4294901760
  %2222 = vmatpush.msra.mxu0 %v2221
  %v2223 = vand.u32 %v1772, 4294901760
  %2224 = vmatpush.msra.mxu0 %v2223
  %v2225 = vand.u32 %v1808, 4294901760
  %v2226 = vsub.f32 %v1808, %v2225
  %v2227 = vand.u32 %v2226, 4294901760
  %2228 = vmatmul.f32.gmra.mxu0 %v2227
  %v2229 = vpop.f32.mrf.mxu0
  %v2230 = vadd.f32 %v2198, %v2229
  %2231 = vdwg.mxu0
  %2232 = vmatpush.msra.mxu0 0.0
  %2233 = vmatpush.msra.mxu0 0.0
  %2234 = vmatpush.msra.mxu0 0.0
  %2235 = vmatpush.msra.mxu0 0.0
  %2236 = vmatpush.msra.mxu0 0.0
  %2237 = vmatpush.msra.mxu0 0.0
  %2238 = vmatpush.msra.mxu0 0.0
  %v2239 = vand.u32 %v1804, 4294901760
  %v2240 = vsub.f32 %v1804, %v2239
  %v2241 = vand.u32 %v2240, 4294901760
  %2242 = vmatpush.msra.mxu0 %v2241
  %v2243 = vand.u32 %v1800, 4294901760
  %v2244 = vsub.f32 %v1800, %v2243
  %v2245 = vand.u32 %v2244, 4294901760
  %2246 = vmatpush.msra.mxu0 %v2245
  %v2247 = vand.u32 %v1796, 4294901760
  %v2248 = vsub.f32 %v1796, %v2247
  %v2249 = vand.u32 %v2248, 4294901760
  %2250 = vmatpush.msra.mxu0 %v2249
  %v2251 = vand.u32 %v1792, 4294901760
  %v2252 = vsub.f32 %v1792, %v2251
  %v2253 = vand.u32 %v2252, 4294901760
  %2254 = vmatpush.msra.mxu0 %v2253
  %v2255 = vand.u32 %v1788, 4294901760
  %v2256 = vsub.f32 %v1788, %v2255
  %v2257 = vand.u32 %v2256, 4294901760
  %2258 = vmatpush.msra.mxu0 %v2257
  %v2259 = vand.u32 %v1784, 4294901760
  %v2260 = vsub.f32 %v1784, %v2259
  %v2261 = vand.u32 %v2260, 4294901760
  %2262 = vmatpush.msra.mxu0 %v2261
  %v2263 = vand.u32 %v1780, 4294901760
  %v2264 = vsub.f32 %v1780, %v2263
  %v2265 = vand.u32 %v2264, 4294901760
  %2266 = vmatpush.msra.mxu0 %v2265
  %v2267 = vand.u32 %v1776, 4294901760
  %v2268 = vsub.f32 %v1776, %v2267
  %v2269 = vand.u32 %v2268, 4294901760
  %2270 = vmatpush.msra.mxu0 %v2269
  %v2271 = vand.u32 %v1772, 4294901760
  %v2272 = vsub.f32 %v1772, %v2271
  %v2273 = vand.u32 %v2272, 4294901760
  %2274 = vmatpush.msra.mxu0 %v2273
  %v2275 = vand.u32 %v1808, 4294901760
  %2276 = vmatmul.f32.gmra.mxu0 %v2275
  %v2277 = vpop.f32.mrf.mxu0
  %v2278 = vadd.f32 %v2230, %v2277
  %2279 = vdwg.mxu0
  %2280 = vmatpush.msra.mxu0 0.0
  %2281 = vmatpush.msra.mxu0 0.0
  %2282 = vmatpush.msra.mxu0 0.0
  %2283 = vmatpush.msra.mxu0 0.0
  %2284 = vmatpush.msra.mxu0 0.0
  %2285 = vmatpush.msra.mxu0 0.0
  %2286 = vmatpush.msra.mxu0 0.0
  %v2287 = vand.u32 %v1804, 4294901760
  %2288 = vmatpush.msra.mxu0 %v2287
  %v2289 = vand.u32 %v1800, 4294901760
  %2290 = vmatpush.msra.mxu0 %v2289
  %v2291 = vand.u32 %v1796, 4294901760
  %2292 = vmatpush.msra.mxu0 %v2291
  %v2293 = vand.u32 %v1792, 4294901760
  %2294 = vmatpush.msra.mxu0 %v2293
  %v2295 = vand.u32 %v1788, 4294901760
  %2296 = vmatpush.msra.mxu0 %v2295
  %v2297 = vand.u32 %v1784, 4294901760
  %2298 = vmatpush.msra.mxu0 %v2297
  %v2299 = vand.u32 %v1780, 4294901760
  %2300 = vmatpush.msra.mxu0 %v2299
  %v2301 = vand.u32 %v1776, 4294901760
  %2302 = vmatpush.msra.mxu0 %v2301
  %v2303 = vand.u32 %v1772, 4294901760
  %2304 = vmatpush.msra.mxu0 %v2303
  %v2305 = vand.u32 %v1808, 4294901760
  %2306 = vmatmul.f32.gmra.mxu0 %v2305
  %v2307 = vpop.f32.mrf.mxu0
  %v2308 = vadd.f32 %v2278, %v2307
  %2309 = vdwg.mxu0
  %2310 = vmatpush.msra.mxu0 0.0
  %2311 = vmatpush.msra.mxu0 0.0
  %2312 = vmatpush.msra.mxu0 0.0
  %2313 = vmatpush.msra.mxu0 0.0
  %2314 = vmatpush.msra.mxu0 0.0
  %2315 = vmatpush.msra.mxu0 0.0
  %2316 = vmatpush.msra.mxu0 0.0
  %v2317 = vand.u32 %v1805, 4294901760
  %2318 = vmatpush.msra.mxu0 %v2317
  %v2319 = vand.u32 %v1801, 4294901760
  %2320 = vmatpush.msra.mxu0 %v2319
  %v2321 = vand.u32 %v1797, 4294901760
  %2322 = vmatpush.msra.mxu0 %v2321
  %v2323 = vand.u32 %v1793, 4294901760
  %2324 = vmatpush.msra.mxu0 %v2323
  %v2325 = vand.u32 %v1789, 4294901760
  %2326 = vmatpush.msra.mxu0 %v2325
  %v2327 = vand.u32 %v1785, 4294901760
  %2328 = vmatpush.msra.mxu0 %v2327
  %v2329 = vand.u32 %v1781, 4294901760
  %2330 = vmatpush.msra.mxu0 %v2329
  %v2331 = vand.u32 %v1777, 4294901760
  %2332 = vmatpush.msra.mxu0 %v2331
  %v2333 = vand.u32 %v1773, 4294901760
  %2334 = vmatpush.msra.mxu0 %v2333
  %v2335 = vand.u32 %v1808, 4294901760
  %v2336 = vsub.f32 %v1808, %v2335
  %v2337 = vand.u32 %v2336, 4294901760
  %v2338 = vsub.f32 %v2336, %v2337
  %v2339 = vand.u32 %v2338, 4294901760
  %2340 = vmatmul.f32.gmra.mxu0 %v2339
  %v2341 = vpop.f32.mrf.mxu0
  %v2342 = vadd.f32 %v1602, %v2341
  %2343 = vdwg.mxu0
  %2344 = vmatpush.msra.mxu0 0.0
  %2345 = vmatpush.msra.mxu0 0.0
  %2346 = vmatpush.msra.mxu0 0.0
  %2347 = vmatpush.msra.mxu0 0.0
  %2348 = vmatpush.msra.mxu0 0.0
  %2349 = vmatpush.msra.mxu0 0.0
  %2350 = vmatpush.msra.mxu0 0.0
  %v2351 = vand.u32 %v1805, 4294901760
  %v2352 = vsub.f32 %v1805, %v2351
  %v2353 = vand.u32 %v2352, 4294901760
  %v2354 = vsub.f32 %v2352, %v2353
  %v2355 = vand.u32 %v2354, 4294901760
  %2356 = vmatpush.msra.mxu0 %v2355
  %v2357 = vand.u32 %v1801, 4294901760
  %v2358 = vsub.f32 %v1801, %v2357
  %v2359 = vand.u32 %v2358, 4294901760
  %v2360 = vsub.f32 %v2358, %v2359
  %v2361 = vand.u32 %v2360, 4294901760
  %2362 = vmatpush.msra.mxu0 %v2361
  %v2363 = vand.u32 %v1797, 4294901760
  %v2364 = vsub.f32 %v1797, %v2363
  %v2365 = vand.u32 %v2364, 4294901760
  %v2366 = vsub.f32 %v2364, %v2365
  %v2367 = vand.u32 %v2366, 4294901760
  %2368 = vmatpush.msra.mxu0 %v2367
  %v2369 = vand.u32 %v1793, 4294901760
  %v2370 = vsub.f32 %v1793, %v2369
  %v2371 = vand.u32 %v2370, 4294901760
  %v2372 = vsub.f32 %v2370, %v2371
  %v2373 = vand.u32 %v2372, 4294901760
  %2374 = vmatpush.msra.mxu0 %v2373
  %v2375 = vand.u32 %v1789, 4294901760
  %v2376 = vsub.f32 %v1789, %v2375
  %v2377 = vand.u32 %v2376, 4294901760
  %v2378 = vsub.f32 %v2376, %v2377
  %v2379 = vand.u32 %v2378, 4294901760
  %2380 = vmatpush.msra.mxu0 %v2379
  %v2381 = vand.u32 %v1785, 4294901760
  %v2382 = vsub.f32 %v1785, %v2381
  %v2383 = vand.u32 %v2382, 4294901760
  %v2384 = vsub.f32 %v2382, %v2383
  %v2385 = vand.u32 %v2384, 4294901760
  %2386 = vmatpush.msra.mxu0 %v2385
  %v2387 = vand.u32 %v1781, 4294901760
  %v2388 = vsub.f32 %v1781, %v2387
  %v2389 = vand.u32 %v2388, 4294901760
  %v2390 = vsub.f32 %v2388, %v2389
  %v2391 = vand.u32 %v2390, 4294901760
  %2392 = vmatpush.msra.mxu0 %v2391
  %v2393 = vand.u32 %v1777, 4294901760
  %v2394 = vsub.f32 %v1777, %v2393
  %v2395 = vand.u32 %v2394, 4294901760
  %v2396 = vsub.f32 %v2394, %v2395
  %v2397 = vand.u32 %v2396, 4294901760
  %2398 = vmatpush.msra.mxu0 %v2397
  %v2399 = vand.u32 %v1773, 4294901760
  %v2400 = vsub.f32 %v1773, %v2399
  %v2401 = vand.u32 %v2400, 4294901760
  %v2402 = vsub.f32 %v2400, %v2401
  %v2403 = vand.u32 %v2402, 4294901760
  %2404 = vmatpush.msra.mxu0 %v2403
  %v2405 = vand.u32 %v1808, 4294901760
  %2406 = vmatmul.f32.gmra.mxu0 %v2405
  %v2407 = vpop.f32.mrf.mxu0
  %v2408 = vadd.f32 %v2342, %v2407
  %2409 = vdwg.mxu0
  %2410 = vmatpush.msra.mxu0 0.0
  %2411 = vmatpush.msra.mxu0 0.0
  %2412 = vmatpush.msra.mxu0 0.0
  %2413 = vmatpush.msra.mxu0 0.0
  %2414 = vmatpush.msra.mxu0 0.0
  %2415 = vmatpush.msra.mxu0 0.0
  %2416 = vmatpush.msra.mxu0 0.0
  %v2417 = vand.u32 %v1805, 4294901760
  %v2418 = vsub.f32 %v1805, %v2417
  %2419 = vmatpush.msra.mxu0 %v2418
  %v2420 = vand.u32 %v1801, 4294901760
  %v2421 = vsub.f32 %v1801, %v2420
  %2422 = vmatpush.msra.mxu0 %v2421
  %v2423 = vand.u32 %v1797, 4294901760
  %v2424 = vsub.f32 %v1797, %v2423
  %2425 = vmatpush.msra.mxu0 %v2424
  %v2426 = vand.u32 %v1793, 4294901760
  %v2427 = vsub.f32 %v1793, %v2426
  %2428 = vmatpush.msra.mxu0 %v2427
  %v2429 = vand.u32 %v1789, 4294901760
  %v2430 = vsub.f32 %v1789, %v2429
  %2431 = vmatpush.msra.mxu0 %v2430
  %v2432 = vand.u32 %v1785, 4294901760
  %v2433 = vsub.f32 %v1785, %v2432
  %2434 = vmatpush.msra.mxu0 %v2433
  %v2435 = vand.u32 %v1781, 4294901760
  %v2436 = vsub.f32 %v1781, %v2435
  %2437 = vmatpush.msra.mxu0 %v2436
  %v2438 = vand.u32 %v1777, 4294901760
  %v2439 = vsub.f32 %v1777, %v2438
  %2440 = vmatpush.msra.mxu0 %v2439
  %v2441 = vand.u32 %v1773, 4294901760
  %v2442 = vsub.f32 %v1773, %v2441
  %2443 = vmatpush.msra.mxu0 %v2442
  %v2444 = vand.u32 %v1808, 4294901760
  %v2445 = vsub.f32 %v1808, %v2444
  %2446 = vmatmul.f32.gmra.mxu0 %v2445
  %v2447 = vpop.f32.mrf.mxu0
  %v2448 = vadd.f32 %v2408, %v2447
  %2449 = vdwg.mxu0
  %2450 = vmatpush.msra.mxu0 0.0
  %2451 = vmatpush.msra.mxu0 0.0
  %2452 = vmatpush.msra.mxu0 0.0
  %2453 = vmatpush.msra.mxu0 0.0
  %2454 = vmatpush.msra.mxu0 0.0
  %2455 = vmatpush.msra.mxu0 0.0
  %2456 = vmatpush.msra.mxu0 0.0
  %v2457 = vand.u32 %v1805, 4294901760
  %2458 = vmatpush.msra.mxu0 %v2457
  %v2459 = vand.u32 %v1801, 4294901760
  %2460 = vmatpush.msra.mxu0 %v2459
  %v2461 = vand.u32 %v1797, 4294901760
  %2462 = vmatpush.msra.mxu0 %v2461
  %v2463 = vand.u32 %v1793, 4294901760
  %2464 = vmatpush.msra.mxu0 %v2463
  %v2465 = vand.u32 %v1789, 4294901760
  %2466 = vmatpush.msra.mxu0 %v2465
  %v2467 = vand.u32 %v1785, 4294901760
  %2468 = vmatpush.msra.mxu0 %v2467
  %v2469 = vand.u32 %v1781, 4294901760
  %2470 = vmatpush.msra.mxu0 %v2469
  %v2471 = vand.u32 %v1777, 4294901760
  %2472 = vmatpush.msra.mxu0 %v2471
  %v2473 = vand.u32 %v1773, 4294901760
  %2474 = vmatpush.msra.mxu0 %v2473
  %v2475 = vand.u32 %v1808, 4294901760
  %v2476 = vsub.f32 %v1808, %v2475
  %v2477 = vand.u32 %v2476, 4294901760
  %2478 = vmatmul.f32.gmra.mxu0 %v2477
  %v2479 = vpop.f32.mrf.mxu0
  %v2480 = vadd.f32 %v2448, %v2479
  %2481 = vdwg.mxu0
  %2482 = vmatpush.msra.mxu0 0.0
  %2483 = vmatpush.msra.mxu0 0.0
  %2484 = vmatpush.msra.mxu0 0.0
  %2485 = vmatpush.msra.mxu0 0.0
  %2486 = vmatpush.msra.mxu0 0.0
  %2487 = vmatpush.msra.mxu0 0.0
  %2488 = vmatpush.msra.mxu0 0.0
  %v2489 = vand.u32 %v1805, 4294901760
  %v2490 = vsub.f32 %v1805, %v2489
  %v2491 = vand.u32 %v2490, 4294901760
  %2492 = vmatpush.msra.mxu0 %v2491
  %v2493 = vand.u32 %v1801, 4294901760
  %v2494 = vsub.f32 %v1801, %v2493
  %v2495 = vand.u32 %v2494, 4294901760
  %2496 = vmatpush.msra.mxu0 %v2495
  %v2497 = vand.u32 %v1797, 4294901760
  %v2498 = vsub.f32 %v1797, %v2497
  %v2499 = vand.u32 %v2498, 4294901760
  %2500 = vmatpush.msra.mxu0 %v2499
  %v2501 = vand.u32 %v1793, 4294901760
  %v2502 = vsub.f32 %v1793, %v2501
  %v2503 = vand.u32 %v2502, 4294901760
  %2504 = vmatpush.msra.mxu0 %v2503
  %v2505 = vand.u32 %v1789, 4294901760
  %v2506 = vsub.f32 %v1789, %v2505
  %v2507 = vand.u32 %v2506, 4294901760
  %2508 = vmatpush.msra.mxu0 %v2507
  %v2509 = vand.u32 %v1785, 4294901760
  %v2510 = vsub.f32 %v1785, %v2509
  %v2511 = vand.u32 %v2510, 4294901760
  %2512 = vmatpush.msra.mxu0 %v2511
  %v2513 = vand.u32 %v1781, 4294901760
  %v2514 = vsub.f32 %v1781, %v2513
  %v2515 = vand.u32 %v2514, 4294901760
  %2516 = vmatpush.msra.mxu0 %v2515
  %v2517 = vand.u32 %v1777, 4294901760
  %v2518 = vsub.f32 %v1777, %v2517
  %v2519 = vand.u32 %v2518, 4294901760
  %2520 = vmatpush.msra.mxu0 %v2519
  %v2521 = vand.u32 %v1773, 4294901760
  %v2522 = vsub.f32 %v1773, %v2521
  %v2523 = vand.u32 %v2522, 4294901760
  %2524 = vmatpush.msra.mxu0 %v2523
  %v2525 = vand.u32 %v1808, 4294901760
  %2526 = vmatmul.f32.gmra.mxu0 %v2525
  %v2527 = vpop.f32.mrf.mxu0
  %v2528 = vadd.f32 %v2480, %v2527
  %2529 = vdwg.mxu0
  %2530 = vmatpush.msra.mxu0 0.0
  %2531 = vmatpush.msra.mxu0 0.0
  %2532 = vmatpush.msra.mxu0 0.0
  %2533 = vmatpush.msra.mxu0 0.0
  %2534 = vmatpush.msra.mxu0 0.0
  %2535 = vmatpush.msra.mxu0 0.0
  %2536 = vmatpush.msra.mxu0 0.0
  %v2537 = vand.u32 %v1805, 4294901760
  %2538 = vmatpush.msra.mxu0 %v2537
  %v2539 = vand.u32 %v1801, 4294901760
  %2540 = vmatpush.msra.mxu0 %v2539
  %v2541 = vand.u32 %v1797, 4294901760
  %2542 = vmatpush.msra.mxu0 %v2541
  %v2543 = vand.u32 %v1793, 4294901760
  %2544 = vmatpush.msra.mxu0 %v2543
  %v2545 = vand.u32 %v1789, 4294901760
  %2546 = vmatpush.msra.mxu0 %v2545
  %v2547 = vand.u32 %v1785, 4294901760
  %2548 = vmatpush.msra.mxu0 %v2547
  %v2549 = vand.u32 %v1781, 4294901760
  %2550 = vmatpush.msra.mxu0 %v2549
  %v2551 = vand.u32 %v1777, 4294901760
  %2552 = vmatpush.msra.mxu0 %v2551
  %v2553 = vand.u32 %v1773, 4294901760
  %2554 = vmatpush.msra.mxu0 %v2553
  %v2555 = vand.u32 %v1808, 4294901760
  %2556 = vmatmul.f32.gmra.mxu0 %v2555
  %v2557 = vpop.f32.mrf.mxu0
  %v2558 = vadd.f32 %v2528, %v2557
  %2559 = vdwg.mxu0
  %2560 = vmatpush.msra.mxu0 0.0
  %2561 = vmatpush.msra.mxu0 0.0
  %2562 = vmatpush.msra.mxu0 0.0
  %2563 = vmatpush.msra.mxu0 0.0
  %2564 = vmatpush.msra.mxu0 0.0
  %2565 = vmatpush.msra.mxu0 0.0
  %2566 = vmatpush.msra.mxu0 0.0
  %v2567 = vand.u32 %v1806, 4294901760
  %2568 = vmatpush.msra.mxu0 %v2567
  %v2569 = vand.u32 %v1802, 4294901760
  %2570 = vmatpush.msra.mxu0 %v2569
  %v2571 = vand.u32 %v1798, 4294901760
  %2572 = vmatpush.msra.mxu0 %v2571
  %v2573 = vand.u32 %v1794, 4294901760
  %2574 = vmatpush.msra.mxu0 %v2573
  %v2575 = vand.u32 %v1790, 4294901760
  %2576 = vmatpush.msra.mxu0 %v2575
  %v2577 = vand.u32 %v1786, 4294901760
  %2578 = vmatpush.msra.mxu0 %v2577
  %v2579 = vand.u32 %v1782, 4294901760
  %2580 = vmatpush.msra.mxu0 %v2579
  %v2581 = vand.u32 %v1778, 4294901760
  %2582 = vmatpush.msra.mxu0 %v2581
  %v2583 = vand.u32 %v1774, 4294901760
  %2584 = vmatpush.msra.mxu0 %v2583
  %v2585 = vand.u32 %v1808, 4294901760
  %v2586 = vsub.f32 %v1808, %v2585
  %v2587 = vand.u32 %v2586, 4294901760
  %v2588 = vsub.f32 %v2586, %v2587
  %v2589 = vand.u32 %v2588, 4294901760
  %2590 = vmatmul.f32.gmra.mxu0 %v2589
  %v2591 = vpop.f32.mrf.mxu0
  %v2592 = vadd.f32 %v1603, %v2591
  %2593 = vdwg.mxu0
  %2594 = vmatpush.msra.mxu0 0.0
  %2595 = vmatpush.msra.mxu0 0.0
  %2596 = vmatpush.msra.mxu0 0.0
  %2597 = vmatpush.msra.mxu0 0.0
  %2598 = vmatpush.msra.mxu0 0.0
  %2599 = vmatpush.msra.mxu0 0.0
  %2600 = vmatpush.msra.mxu0 0.0
  %v2601 = vand.u32 %v1806, 4294901760
  %v2602 = vsub.f32 %v1806, %v2601
  %v2603 = vand.u32 %v2602, 4294901760
  %v2604 = vsub.f32 %v2602, %v2603
  %v2605 = vand.u32 %v2604, 4294901760
  %2606 = vmatpush.msra.mxu0 %v2605
  %v2607 = vand.u32 %v1802, 4294901760
  %v2608 = vsub.f32 %v1802, %v2607
  %v2609 = vand.u32 %v2608, 4294901760
  %v2610 = vsub.f32 %v2608, %v2609
  %v2611 = vand.u32 %v2610, 4294901760
  %2612 = vmatpush.msra.mxu0 %v2611
  %v2613 = vand.u32 %v1798, 4294901760
  %v2614 = vsub.f32 %v1798, %v2613
  %v2615 = vand.u32 %v2614, 4294901760
  %v2616 = vsub.f32 %v2614, %v2615
  %v2617 = vand.u32 %v2616, 4294901760
  %2618 = vmatpush.msra.mxu0 %v2617
  %v2619 = vand.u32 %v1794, 4294901760
  %v2620 = vsub.f32 %v1794, %v2619
  %v2621 = vand.u32 %v2620, 4294901760
  %v2622 = vsub.f32 %v2620, %v2621
  %v2623 = vand.u32 %v2622, 4294901760
  %2624 = vmatpush.msra.mxu0 %v2623
  %v2625 = vand.u32 %v1790, 4294901760
  %v2626 = vsub.f32 %v1790, %v2625
  %v2627 = vand.u32 %v2626, 4294901760
  %v2628 = vsub.f32 %v2626, %v2627
  %v2629 = vand.u32 %v2628, 4294901760
  %2630 = vmatpush.msra.mxu0 %v2629
  %v2631 = vand.u32 %v1786, 4294901760
  %v2632 = vsub.f32 %v1786, %v2631
  %v2633 = vand.u32 %v2632, 4294901760
  %v2634 = vsub.f32 %v2632, %v2633
  %v2635 = vand.u32 %v2634, 4294901760
  %2636 = vmatpush.msra.mxu0 %v2635
  %v2637 = vand.u32 %v1782, 4294901760
  %v2638 = vsub.f32 %v1782, %v2637
  %v2639 = vand.u32 %v2638, 4294901760
  %v2640 = vsub.f32 %v2638, %v2639
  %v2641 = vand.u32 %v2640, 4294901760
  %2642 = vmatpush.msra.mxu0 %v2641
  %v2643 = vand.u32 %v1778, 4294901760
  %v2644 = vsub.f32 %v1778, %v2643
  %v2645 = vand.u32 %v2644, 4294901760
  %v2646 = vsub.f32 %v2644, %v2645
  %v2647 = vand.u32 %v2646, 4294901760
  %2648 = vmatpush.msra.mxu0 %v2647
  %v2649 = vand.u32 %v1774, 4294901760
  %v2650 = vsub.f32 %v1774, %v2649
  %v2651 = vand.u32 %v2650, 4294901760
  %v2652 = vsub.f32 %v2650, %v2651
  %v2653 = vand.u32 %v2652, 4294901760
  %2654 = vmatpush.msra.mxu0 %v2653
  %v2655 = vand.u32 %v1808, 4294901760
  %2656 = vmatmul.f32.gmra.mxu0 %v2655
  %v2657 = vpop.f32.mrf.mxu0
  %v2658 = vadd.f32 %v2592, %v2657
  %2659 = vdwg.mxu0
  %2660 = vmatpush.msra.mxu0 0.0
  %2661 = vmatpush.msra.mxu0 0.0
  %2662 = vmatpush.msra.mxu0 0.0
  %2663 = vmatpush.msra.mxu0 0.0
  %2664 = vmatpush.msra.mxu0 0.0
  %2665 = vmatpush.msra.mxu0 0.0
  %2666 = vmatpush.msra.mxu0 0.0
  %v2667 = vand.u32 %v1806, 4294901760
  %v2668 = vsub.f32 %v1806, %v2667
  %2669 = vmatpush.msra.mxu0 %v2668
  %v2670 = vand.u32 %v1802, 4294901760
  %v2671 = vsub.f32 %v1802, %v2670
  %2672 = vmatpush.msra.mxu0 %v2671
  %v2673 = vand.u32 %v1798, 4294901760
  %v2674 = vsub.f32 %v1798, %v2673
  %2675 = vmatpush.msra.mxu0 %v2674
  %v2676 = vand.u32 %v1794, 4294901760
  %v2677 = vsub.f32 %v1794, %v2676
  %2678 = vmatpush.msra.mxu0 %v2677
  %v2679 = vand.u32 %v1790, 4294901760
  %v2680 = vsub.f32 %v1790, %v2679
  %2681 = vmatpush.msra.mxu0 %v2680
  %v2682 = vand.u32 %v1786, 4294901760
  %v2683 = vsub.f32 %v1786, %v2682
  %2684 = vmatpush.msra.mxu0 %v2683
  %v2685 = vand.u32 %v1782, 4294901760
  %v2686 = vsub.f32 %v1782, %v2685
  %2687 = vmatpush.msra.mxu0 %v2686
  %v2688 = vand.u32 %v1778, 4294901760
  %v2689 = vsub.f32 %v1778, %v2688
  %2690 = vmatpush.msra.mxu0 %v2689
  %v2691 = vand.u32 %v1774, 4294901760
  %v2692 = vsub.f32 %v1774, %v2691
  %2693 = vmatpush.msra.mxu0 %v2692
  %v2694 = vand.u32 %v1808, 4294901760
  %v2695 = vsub.f32 %v1808, %v2694
  %2696 = vmatmul.f32.gmra.mxu0 %v2695
  %v2697 = vpop.f32.mrf.mxu0
  %v2698 = vadd.f32 %v2658, %v2697
  %2699 = vdwg.mxu0
  %2700 = vmatpush.msra.mxu0 0.0
  %2701 = vmatpush.msra.mxu0 0.0
  %2702 = vmatpush.msra.mxu0 0.0
  %2703 = vmatpush.msra.mxu0 0.0
  %2704 = vmatpush.msra.mxu0 0.0
  %2705 = vmatpush.msra.mxu0 0.0
  %2706 = vmatpush.msra.mxu0 0.0
  %v2707 = vand.u32 %v1806, 4294901760
  %2708 = vmatpush.msra.mxu0 %v2707
  %v2709 = vand.u32 %v1802, 4294901760
  %2710 = vmatpush.msra.mxu0 %v2709
  %v2711 = vand.u32 %v1798, 4294901760
  %2712 = vmatpush.msra.mxu0 %v2711
  %v2713 = vand.u32 %v1794, 4294901760
  %2714 = vmatpush.msra.mxu0 %v2713
  %v2715 = vand.u32 %v1790, 4294901760
  %2716 = vmatpush.msra.mxu0 %v2715
  %v2717 = vand.u32 %v1786, 4294901760
  %2718 = vmatpush.msra.mxu0 %v2717
  %v2719 = vand.u32 %v1782, 4294901760
  %2720 = vmatpush.msra.mxu0 %v2719
  %v2721 = vand.u32 %v1778, 4294901760
  %2722 = vmatpush.msra.mxu0 %v2721
  %v2723 = vand.u32 %v1774, 4294901760
  %2724 = vmatpush.msra.mxu0 %v2723
  %v2725 = vand.u32 %v1808, 4294901760
  %v2726 = vsub.f32 %v1808, %v2725
  %v2727 = vand.u32 %v2726, 4294901760
  %2728 = vmatmul.f32.gmra.mxu0 %v2727
  %v2729 = vpop.f32.mrf.mxu0
  %v2730 = vadd.f32 %v2698, %v2729
  %2731 = vdwg.mxu0
  %2732 = vmatpush.msra.mxu0 0.0
  %2733 = vmatpush.msra.mxu0 0.0
  %2734 = vmatpush.msra.mxu0 0.0
  %2735 = vmatpush.msra.mxu0 0.0
  %2736 = vmatpush.msra.mxu0 0.0
  %2737 = vmatpush.msra.mxu0 0.0
  %2738 = vmatpush.msra.mxu0 0.0
  %v2739 = vand.u32 %v1806, 4294901760
  %v2740 = vsub.f32 %v1806, %v2739
  %v2741 = vand.u32 %v2740, 4294901760
  %2742 = vmatpush.msra.mxu0 %v2741
  %v2743 = vand.u32 %v1802, 4294901760
  %v2744 = vsub.f32 %v1802, %v2743
  %v2745 = vand.u32 %v2744, 4294901760
  %2746 = vmatpush.msra.mxu0 %v2745
  %v2747 = vand.u32 %v1798, 4294901760
  %v2748 = vsub.f32 %v1798, %v2747
  %v2749 = vand.u32 %v2748, 4294901760
  %2750 = vmatpush.msra.mxu0 %v2749
  %v2751 = vand.u32 %v1794, 4294901760
  %v2752 = vsub.f32 %v1794, %v2751
  %v2753 = vand.u32 %v2752, 4294901760
  %2754 = vmatpush.msra.mxu0 %v2753
  %v2755 = vand.u32 %v1790, 4294901760
  %v2756 = vsub.f32 %v1790, %v2755
  %v2757 = vand.u32 %v2756, 4294901760
  %2758 = vmatpush.msra.mxu0 %v2757
  %v2759 = vand.u32 %v1786, 4294901760
  %v2760 = vsub.f32 %v1786, %v2759
  %v2761 = vand.u32 %v2760, 4294901760
  %2762 = vmatpush.msra.mxu0 %v2761
  %v2763 = vand.u32 %v1782, 4294901760
  %v2764 = vsub.f32 %v1782, %v2763
  %v2765 = vand.u32 %v2764, 4294901760
  %2766 = vmatpush.msra.mxu0 %v2765
  %v2767 = vand.u32 %v1778, 4294901760
  %v2768 = vsub.f32 %v1778, %v2767
  %v2769 = vand.u32 %v2768, 4294901760
  %2770 = vmatpush.msra.mxu0 %v2769
  %v2771 = vand.u32 %v1774, 4294901760
  %v2772 = vsub.f32 %v1774, %v2771
  %v2773 = vand.u32 %v2772, 4294901760
  %2774 = vmatpush.msra.mxu0 %v2773
  %v2775 = vand.u32 %v1808, 4294901760
  %2776 = vmatmul.f32.gmra.mxu0 %v2775
  %v2777 = vpop.f32.mrf.mxu0
  %v2778 = vadd.f32 %v2730, %v2777
  %2779 = vdwg.mxu0
  %2780 = vmatpush.msra.mxu0 0.0
  %2781 = vmatpush.msra.mxu0 0.0
  %2782 = vmatpush.msra.mxu0 0.0
  %2783 = vmatpush.msra.mxu0 0.0
  %2784 = vmatpush.msra.mxu0 0.0
  %2785 = vmatpush.msra.mxu0 0.0
  %2786 = vmatpush.msra.mxu0 0.0
  %v2787 = vand.u32 %v1806, 4294901760
  %2788 = vmatpush.msra.mxu0 %v2787
  %v2789 = vand.u32 %v1802, 4294901760
  %2790 = vmatpush.msra.mxu0 %v2789
  %v2791 = vand.u32 %v1798, 4294901760
  %2792 = vmatpush.msra.mxu0 %v2791
  %v2793 = vand.u32 %v1794, 4294901760
  %2794 = vmatpush.msra.mxu0 %v2793
  %v2795 = vand.u32 %v1790, 4294901760
  %2796 = vmatpush.msra.mxu0 %v2795
  %v2797 = vand.u32 %v1786, 4294901760
  %2798 = vmatpush.msra.mxu0 %v2797
  %v2799 = vand.u32 %v1782, 4294901760
  %2800 = vmatpush.msra.mxu0 %v2799
  %v2801 = vand.u32 %v1778, 4294901760
  %2802 = vmatpush.msra.mxu0 %v2801
  %v2803 = vand.u32 %v1774, 4294901760
  %2804 = vmatpush.msra.mxu0 %v2803
  %v2805 = vand.u32 %v1808, 4294901760
  %2806 = vmatmul.f32.gmra.mxu0 %v2805
  %v2807 = vpop.f32.mrf.mxu0
  %v2808 = vadd.f32 %v2778, %v2807
  %2809 = vdwg.mxu0
  %v2810 = vsel %vm41, %v2058, 0.0
  %v2811 = vsel %vm41, %v2308, 0.0
  %v2812 = vadd.f32 %v2810, %v2811
  %v2813 = vsel %vm41, %v2558, 0.0
  %v2814 = vadd.f32 %v2812, %v2813
  %v2815 = vsel %vm41, %v2808, 0.0
  %v2816 = vadd.f32 %v2814, %v2815
  %2817 = vadd.xlane.f32.xlu0 %v2816
  %v2818 = vpop.xlane.xlu0 %2817
  %v2819 = vmul.f32 %v2818, 0.001953125
  %v2820 = vsub.f32 %v2058, %v2819
  %v2821 = vsub.f32 %v2308, %v2819
  %v2822 = vsub.f32 %v2558, %v2819
  %v2823 = vsub.f32 %v2808, %v2819
  %v2824 = vmul.f32 %v2820, %v2820
  %v2825 = vmul.f32 %v2821, %v2821
  %v2826 = vmul.f32 %v2822, %v2822
  %v2827 = vmul.f32 %v2823, %v2823
  %v2828 = vsel %vm41, %v2824, 0.0
  %v2829 = vsel %vm41, %v2825, 0.0
  %v2830 = vadd.f32 %v2828, %v2829
  %v2831 = vsel %vm41, %v2826, 0.0
  %v2832 = vadd.f32 %v2830, %v2831
  %v2833 = vsel %vm41, %v2827, 0.0
  %v2834 = vadd.f32 %v2832, %v2833
  %2835 = vadd.xlane.f32.xlu0 %v2834
  %v2836 = vpop.xlane.xlu0 %2835
  %v2837 = vmul.f32 %v2836, 0.001953125
  %v2838 = vadd.f32 %v2837, 1e-05
  %v2839 = vrsqrt.pop %v2838
  %v2840 = vmul.f32 %v2839, %v2838
  %v2841 = vmul.f32 %v2840, %v2839
  %v2842 = vmul.f32 0.5, %v2841
  %v2843 = vsub.f32 1.5, %v2842
  %v2844 = vmul.f32 %v2839, %v2843
  %vm2845 = vweird.f32 %v2838
  %vm2846 = vweird.f32 %v2839
  %vm2847 = vmor %vm2845, %vm2846
  %v2848 = vsel %vm2847, %v2839, %v2844
  %v2849 = vmul.f32 %v2820, %v2848
  %v2850 = vmul.f32 %v2821, %v2848
  %v2851 = vmul.f32 %v2822, %v2848
  %v2852 = vmul.f32 %v2823, %v2848
  %2854 = vset.pattern.permute.xlu0 0
  %2855 = vperm.xlu0 %2854, %v1605
  %v2856 = vpop.permute.xlu0 %2855
  %v2858 = vmul.f32 %v2849, %v2856
  %v2859 = vmul.f32 %v2850, %v2856
  %v2860 = vmul.f32 %v2851, %v2856
  %v2861 = vmul.f32 %v2852, %v2856
  %2863 = vset.pattern.permute.xlu0 0
  %2864 = vperm.xlu0 %2863, %v1606
  %v2865 = vpop.permute.xlu0 %2864
  %v2867 = vadd.f32 %v2858, %v2865
  %v2868 = vadd.f32 %v2859, %v2865
  %v2869 = vadd.f32 %v2860, %v2865
  %v2870 = vadd.f32 %v2861, %v2865
  %v2871 = vsub.f32 0.5, %v2867
  %v2872 = vsub.f32 0.5, %v2868
  %v2873 = vsub.f32 0.5, %v2869
  %v2874 = vsub.f32 0.5, %v2870
  %v2875 = vsub.f32 0.0, %v2871
  %v2876 = vsub.f32 0.0, %v2872
  %v2877 = vsub.f32 0.0, %v2873
  %v2878 = vsub.f32 0.0, %v2874
  %v2879 = vxor.u32 %v2875, 2147483648
  %v2880 = vxor.u32 %v2876, 2147483648
  %v2881 = vxor.u32 %v2877, 2147483648
  %v2882 = vxor.u32 %v2878, 2147483648
  %v2883 = vmul.f32 %v2879, 1.442695
  %v2884 = vpow.pop %v2883
  %v2885 = vmul.f32 %v2880, 1.442695
  %v2886 = vpow.pop %v2885
  %v2887 = vmul.f32 %v2881, 1.442695
  %v2888 = vpow.pop %v2887
  %v2889 = vmul.f32 %v2882, 1.442695
  %v2890 = vpow.pop %v2889
  %v2891 = vadd.f32 %v2884, 1.0
  %v2892 = vadd.f32 %v2886, 1.0
  %v2893 = vadd.f32 %v2888, 1.0
  %v2894 = vadd.f32 %v2890, 1.0
  %v2895 = vrcp.pop %v2891
  %v2896 = vmul.f32 %v2891, %v2895
  %v2897 = vsub.f32 1.0, %v2896
  %v2898 = vmul.f32 %v2895, %v2897
  %v2899 = vadd.f32 %v2895, %v2898
  %vm2900 = vweird.f32 %v2891
  %vm2901 = vweird.f32 %v2895
  %vm2902 = vmor %vm2900, %vm2901
  %v2903 = vsel %vm2902, %v2895, %v2899
  %v2904 = vand.u32 2147483647, %v2891
  %vm2905 = vcmp.eq.f32.partialorder %v2904, 8.507059e+37
  %v2906 = vand.u32 %v2891, 2147483648
  %v2907 = vor.u32 1.1754944e-38, %v2906
  %v2908 = vsel %vm2905, %v2907, %v2903
  %v2909 = vmul.f32 1.0, %v2908
  %v2910 = vrcp.pop %v2892
  %v2911 = vmul.f32 %v2892, %v2910
  %v2912 = vsub.f32 1.0, %v2911
  %v2913 = vmul.f32 %v2910, %v2912
  %v2914 = vadd.f32 %v2910, %v2913
  %vm2915 = vweird.f32 %v2892
  %vm2916 = vweird.f32 %v2910
  %vm2917 = vmor %vm2915, %vm2916
  %v2918 = vsel %vm2917, %v2910, %v2914
  %v2919 = vand.u32 2147483647, %v2892
  %vm2920 = vcmp.eq.f32.partialorder %v2919, 8.507059e+37
  %v2921 = vand.u32 %v2892, 2147483648
  %v2922 = vor.u32 1.1754944e-38, %v2921
  %v2923 = vsel %vm2920, %v2922, %v2918
  %v2924 = vmul.f32 1.0, %v2923
  %v2925 = vrcp.pop %v2893
  %v2926 = vmul.f32 %v2893, %v2925
  %v2927 = vsub.f32 1.0, %v2926
  %v2928 = vmul.f32 %v2925, %v2927
  %v2929 = vadd.f32 %v2925, %v2928
  %vm2930 = vweird.f32 %v2893
  %vm2931 = vweird.f32 %v2925
  %vm2932 = vmor %vm2930, %vm2931
  %v2933 = vsel %vm2932, %v2925, %v2929
  %v2934 = vand.u32 2147483647, %v2893
  %vm2935 = vcmp.eq.f32.partialorder %v2934, 8.507059e+37
  %v2936 = vand.u32 %v2893, 2147483648
  %v2937 = vor.u32 1.1754944e-38, %v2936
  %v2938 = vsel %vm2935, %v2937, %v2933
  %v2939 = vmul.f32 1.0, %v2938
  %v2940 = vrcp.pop %v2894
  %v2941 = vmul.f32 %v2894, %v2940
  %v2942 = vsub.f32 1.0, %v2941
  %v2943 = vmul.f32 %v2940, %v2942
  %v2944 = vadd.f32 %v2940, %v2943
  %vm2945 = vweird.f32 %v2894
  %vm2946 = vweird.f32 %v2940
  %vm2947 = vmor %vm2945, %vm2946
  %v2948 = vsel %vm2947, %v2940, %v2944
  %v2949 = vand.u32 2147483647, %v2894
  %vm2950 = vcmp.eq.f32.partialorder %v2949, 8.507059e+37
  %v2951 = vand.u32 %v2894, 2147483648
  %v2952 = vor.u32 1.1754944e-38, %v2951
  %v2953 = vsel %vm2950, %v2952, %v2948
  %v2954 = vmul.f32 1.0, %v2953
  %v2955 = vmul.f32 %v2909, 0.8
  %v2956 = vmul.f32 %v2924, 0.8
  %v2957 = vmul.f32 %v2939, 0.8
  %v2958 = vmul.f32 %v2954, 0.8
  %v2959 = vadd.f32 %v2955, 0.1
  %v2960 = vadd.f32 %v2956, 0.1
  %v2961 = vadd.f32 %v2957, 0.1
  %v2962 = vadd.f32 %v2958, 0.1
  %v2963 = vsub.f32 %v2959, %v2867
  %v2964 = vsub.f32 %v2960, %v2868
  %v2965 = vsub.f32 %v2961, %v2869
  %v2966 = vsub.f32 %v2962, %v2870
  %v2967 = vsub.f32 0.0, %v2963
  %v2968 = vsub.f32 0.0, %v2964
  %v2969 = vsub.f32 0.0, %v2965
  %v2970 = vsub.f32 0.0, %v2966
  %v2971 = vxor.u32 %v2967, 2147483648
  %v2972 = vxor.u32 %v2968, 2147483648
  %v2973 = vxor.u32 %v2969, 2147483648
  %v2974 = vxor.u32 %v2970, 2147483648
  %v2975 = vmul.f32 %v2971, 1.442695
  %v2976 = vpow.pop %v2975
  %v2977 = vmul.f32 %v2972, 1.442695
  %v2978 = vpow.pop %v2977
  %v2979 = vmul.f32 %v2973, 1.442695
  %v2980 = vpow.pop %v2979
  %v2981 = vmul.f32 %v2974, 1.442695
  %v2982 = vpow.pop %v2981
  %v2983 = vadd.f32 %v2976, 1.0
  %v2984 = vadd.f32 %v2978, 1.0
  %v2985 = vadd.f32 %v2980, 1.0
  %v2986 = vadd.f32 %v2982, 1.0
  %v2987 = vrcp.pop %v2983
  %v2988 = vmul.f32 %v2983, %v2987
  %v2989 = vsub.f32 1.0, %v2988
  %v2990 = vmul.f32 %v2987, %v2989
  %v2991 = vadd.f32 %v2987, %v2990
  %vm2992 = vweird.f32 %v2983
  %vm2993 = vweird.f32 %v2987
  %vm2994 = vmor %vm2992, %vm2993
  %v2995 = vsel %vm2994, %v2987, %v2991
  %v2996 = vand.u32 2147483647, %v2983
  %vm2997 = vcmp.eq.f32.partialorder %v2996, 8.507059e+37
  %v2998 = vand.u32 %v2983, 2147483648
  %v2999 = vor.u32 1.1754944e-38, %v2998
  %v3000 = vsel %vm2997, %v2999, %v2995
  %v3001 = vmul.f32 1.0, %v3000
  %v3002 = vrcp.pop %v2984
  %v3003 = vmul.f32 %v2984, %v3002
  %v3004 = vsub.f32 1.0, %v3003
  %v3005 = vmul.f32 %v3002, %v3004
  %v3006 = vadd.f32 %v3002, %v3005
  %vm3007 = vweird.f32 %v2984
  %vm3008 = vweird.f32 %v3002
  %vm3009 = vmor %vm3007, %vm3008
  %v3010 = vsel %vm3009, %v3002, %v3006
  %v3011 = vand.u32 2147483647, %v2984
  %vm3012 = vcmp.eq.f32.partialorder %v3011, 8.507059e+37
  %v3013 = vand.u32 %v2984, 2147483648
  %v3014 = vor.u32 1.1754944e-38, %v3013
  %v3015 = vsel %vm3012, %v3014, %v3010
  %v3016 = vmul.f32 1.0, %v3015
  %v3017 = vrcp.pop %v2985
  %v3018 = vmul.f32 %v2985, %v3017
  %v3019 = vsub.f32 1.0, %v3018
  %v3020 = vmul.f32 %v3017, %v3019
  %v3021 = vadd.f32 %v3017, %v3020
  %vm3022 = vweird.f32 %v2985
  %vm3023 = vweird.f32 %v3017
  %vm3024 = vmor %vm3022, %vm3023
  %v3025 = vsel %vm3024, %v3017, %v3021
  %v3026 = vand.u32 2147483647, %v2985
  %vm3027 = vcmp.eq.f32.partialorder %v3026, 8.507059e+37
  %v3028 = vand.u32 %v2985, 2147483648
  %v3029 = vor.u32 1.1754944e-38, %v3028
  %v3030 = vsel %vm3027, %v3029, %v3025
  %v3031 = vmul.f32 1.0, %v3030
  %v3032 = vrcp.pop %v2986
  %v3033 = vmul.f32 %v2986, %v3032
  %v3034 = vsub.f32 1.0, %v3033
  %v3035 = vmul.f32 %v3032, %v3034
  %v3036 = vadd.f32 %v3032, %v3035
  %vm3037 = vweird.f32 %v2986
  %vm3038 = vweird.f32 %v3032
  %vm3039 = vmor %vm3037, %vm3038
  %v3040 = vsel %vm3039, %v3032, %v3036
  %v3041 = vand.u32 2147483647, %v2986
  %vm3042 = vcmp.eq.f32.partialorder %v3041, 8.507059e+37
  %v3043 = vand.u32 %v2986, 2147483648
  %v3044 = vor.u32 1.1754944e-38, %v3043
  %v3045 = vsel %vm3042, %v3044, %v3040
  %v3046 = vmul.f32 1.0, %v3045
  %v3047 = vmul.f32 %v2959, 0.2
  %v3048 = vmul.f32 %v2960, 0.2
  %v3049 = vmul.f32 %v2961, 0.2
  %v3050 = vmul.f32 %v2962, 0.2
  %v3051 = vmul.f32 %v3001, 0.8
  %v3052 = vmul.f32 %v3016, 0.8
  %v3053 = vmul.f32 %v3031, 0.8
  %v3054 = vmul.f32 %v3046, 0.8
  %v3055 = vadd.f32 %v3047, %v3051
  %v3056 = vadd.f32 %v3048, %v3052
  %v3057 = vadd.f32 %v3049, %v3053
  %v3058 = vadd.f32 %v3050, %v3054
  %v3063 = vrot.slane %v3056, 4
  %v3064 = vrot.slane %v3058, 4
  %v3065 = vsel %vm41, %v3055, %v3063
  %v3066 = vsel %vm41, %v3057, %v3064
  %3069 = vst [vmem:[%s8] sm:$0xff] %v3065
  %3070 = vst [vmem:[%s8 + $0x8] sm:$0xff] %v3066
  // Predicated region
  $region34: #{mgpc_conv_first.1} parent=0 // pred_check
    _
  $region35: #{mgpc_conv_first.1} parent=0 // pred_check_branch
    %3072 = sbr.rel (0) target = $region37
  $region36: #{mgpc_conv_first.1} parent=0 // pred_region
    _
  $region37: #{mgpc_conv_first.1} parent=0 // pred_fallthru
    _
  // Predicated region
  $region38: #{mgpc_conv_first.1} parent=0 // pred_check
    _
  $region39: #{mgpc_conv_first.1} parent=0 // pred_check_branch
    %3074 = sbr.rel (0) target = $region41
  $region40: #{mgpc_conv_first.1} parent=0 // pred_region
    _
  $region41: #{mgpc_conv_first.1} parent=0 // pred_fallthru
    _

</llo_original>
